<compile_context>
chip_gen: v5e
topology: v5e:2x2
jax: 0.10.0
libtpu: 0.0.40
codegen_flags: <defaults>
</compile_context>

<pallas_src>
import functools

import jax
import jax.numpy as jnp
import numpy as np
from jax.experimental import pallas as pl
from jax.experimental.pallas import tpu as pltpu


def _round_up(x, m):
    return (x + m - 1) // m * m


def _cdiv(a, b):
    return -(-a // b)


def _vmem_limit_bytes():
    """Generation-aware VMEM limit (v7x: 64 MiB/TC, v5e/v6e: 128 MiB)."""
    cap = 128 * 1024 * 1024
    try:
        info = pltpu.get_tpu_info()
        cap = int(getattr(info, "vmem_capacity_bytes", cap))
    except Exception:
        pass
    if cap <= 64 * 1024 * 1024:
        return 40 * 1024 * 1024          # leave Mosaic internal-scratch headroom
    return 96 * 1024 * 1024


def _pick_tile_h(H, W, wpp, pad, n_taps, cin_p, tile_co, in_bytes, out_bytes,
                 vmem_limit):
    """Largest tile_h whose full working set fits a conservative VMEM budget."""
    budget = int(vmem_limit * 0.5)
    cands = [c for c in (128, 64, 32, 16, 8, 4, 2, 1) if c <= H] or [1]
    for th in cands:
        if th * wpp > 4096 and th != cands[-1]:
            continue                      # cap accumulator / MXU M dimension
        rows = th + 2 * pad
        use = (2 * (rows * wpp + wpp) * cin_p * in_bytes      # 2-slot halo slab
               + 2 * rows * wpp * cin_p * in_bytes            # shifted slab loads
               + 2 * n_taps * cin_p * tile_co * in_bytes      # 2x-buffered weights
               + 2 * th * W * tile_co * out_bytes             # 2x-buffered out blocks
               + th * wpp * tile_co * 4                       # f32 accumulator
               + 4 * tile_co * 4)                             # bias
        if use <= budget:
            return th
    return 1


def _conv_bn_relu_kernel(x_hbm, w_ref, b_ref, o_ref, slab_ref, sem_ref, *,
                         kh, kw, tile_h, pad, wpp, w_out, n_h, apply_relu):
    """One (batch n, h-tile, cout-tile) grid step.

    x_hbm:    (N, Hp*wpp, cin_p)          padded input (flat H*W), stays in HBM
    w_ref:    (kh*kw, cin_p, tile_co)     BN-scale-folded weights (compute dtype)
    b_ref:    (1, tile_co)                folded BN bias (f32)
    o_ref:    (1, tile_h, W, tile_co)     lane-dense output tile
    slab_ref: (2, rows*wpp + wpp, cin_p)  VMEM halo slabs (2-slot double buffer)
    sem_ref:  (2,)                        DMA semaphores
    """
    n = pl.program_id(0)
    h = pl.program_id(1)
    co = pl.program_id(2)

    rows = tile_h + 2 * pad               # input rows needed per output tile
    seg = rows * wpp                       # flat elements DMA'd per tile

    def slab_copy(h_idx, slot):
        return pltpu.make_async_copy(
            x_hbm.at[n, pl.ds(h_idx * (tile_h * wpp), seg)],
            slab_ref.at[slot, pl.ds(0, seg)],
            sem_ref.at[slot])

    slot = jax.lax.rem(h, 2)

    # Input-slab DMA management runs only on the first cout tile of each (n, h).
    # The state is scoped to one batch element (primed at h == 0, fully drained
    # by h == n_h - 1), which keeps the batch grid axis safely "parallel".
    @pl.when(co == 0)
    def _manage_dma():
        @pl.when(h == 0)
        def _prime():
            zero = jnp.zeros((wpp, slab_ref.shape[-1]), slab_ref.dtype)
            slab_ref[0, pl.ds(seg, wpp)] = zero   # spare tail row touched by the
            slab_ref[1, pl.ds(seg, wpp)] = zero   # shifted taps (dropped columns)
            slab_copy(0, 0).start()
        slab_copy(h, slot).wait()
        @pl.when(h + 1 < n_h)
        def _prefetch_next():
            slab_copy(h + 1, 1 - slot).start()

    tile_co = o_ref.shape[-1]
    acc = jnp.zeros((tile_h * wpp, tile_co), jnp.float32)
    for dkw in range(kw):                  # static unroll over the taps
        # Column shift handled once per dkw by an offset slab load; the kh taps
        # below are then sublane-aligned slices of it (no per-tap copies).
        shifted = slab_ref[slot, pl.ds(dkw, seg)]
        for dkh in range(kh):
            tap = shifted[dkh * wpp:(dkh + tile_h) * wpp]
            acc += jnp.dot(tap, w_ref[dkh * kw + dkw],
                           preferred_element_type=jnp.float32)

    y = acc + b_ref[...]                   # fused (folded) BatchNorm bias
    if apply_relu:
        y = jnp.maximum(y, 0.0)
    # Drop the width halo / alignment columns at the store (lane dim stays dense).
    y = y.reshape(tile_h, wpp, tile_co)[:, :w_out, :]
    o_ref[0] = y.astype(o_ref.dtype)


def conv_bn_relu(x_nchw, weight_oihw, bn_gamma=None, bn_beta=None,
                 bn_mean=None, bn_var=None, *, conv_bias=None,
                 stride=1, pad=1, dilation=1, groups=1,
                 has_bn=True, has_relu=True, eps=1e-5,
                 tile_h=None, tile_co=None, compute_dtype=jnp.bfloat16):
    """ConvBnRelu forward: Conv2d(odd k, stride 1, pad (k-1)//2, groups 1)
    -> BatchNorm2d (inference) -> ReLU.   x: (N, Cin, H, W) -> (N, Cout, H, W).
    """
    if stride != 1 or dilation != 1 or groups != 1:
        raise NotImplementedError("only stride=1, dilation=1, groups=1 supported")
    N, Cin, H, W = x_nchw.shape
    Cout, Cin_w, KH, KW = weight_oihw.shape
    assert Cin_w == Cin, "weight/input channel mismatch"
    assert KH % 2 == 1 and KW % 2 == 1 and pad == (KH - 1) // 2 == (KW - 1) // 2, \
        "kernel geometry must be 'same': odd ksize, pad=(ksize-1)//2"
    out_dtype = x_nchw.dtype

    # ---- fold BatchNorm (inference) and conv bias into a per-Cout scale/bias ----
    if has_bn:
        scale = (bn_gamma / jnp.sqrt(bn_var + eps)).astype(jnp.float32)
        bias = (bn_beta - bn_mean * scale).astype(jnp.float32)
    else:
        scale = jnp.ones((Cout,), jnp.float32)
        bias = jnp.zeros((Cout,), jnp.float32)
    if conv_bias is not None:
        bias = bias + conv_bias.astype(jnp.float32) * scale
    # NOTE: folding the BN scale into bf16 weights loses a little precision when
    # running_var is tiny; use compute_dtype=jnp.float32 to debug numerics.

    # ---- tiling parameters ----
    cin_p = _round_up(Cin, 128)
    cout_p = _round_up(Cout, 128)
    if tile_co is None:
        tile_co = 256 if cout_p % 256 == 0 else 128
    assert cout_p % tile_co == 0, "tile_co must divide the padded Cout"
    in_bytes = jnp.dtype(compute_dtype).itemsize
    out_bytes = jnp.dtype(out_dtype).itemsize
    sublane = 8 * (4 // in_bytes)                    # 8 rows f32, 16 rows bf16
    wpp = _round_up(W + 2 * pad, sublane)            # layout-preserving flatten
    vmem_limit = _vmem_limit_bytes()
    if tile_h is None:
        tile_h = _pick_tile_h(H, W, wpp, pad, KH * KW, cin_p, tile_co,
                              in_bytes, out_bytes, vmem_limit)
    n_h = _cdiv(H, tile_h)                           # ragged H -> pad + crop
    H_out = n_h * tile_h
    Hp = H_out + 2 * pad
    n_co = cout_p // tile_co
    rows = tile_h + 2 * pad
    seg = rows * wpp

    # ---- wrapper glue: BN folding into weights, layout, padding ----
    w_hwio = jnp.transpose(weight_oihw, (2, 3, 1, 0)).astype(jnp.float32)
    w_hwio = w_hwio * scale[None, None, None, :]     # fold BN scale
    w_p = jnp.pad(w_hwio, ((0, 0), (0, 0), (0, cin_p - Cin), (0, cout_p - Cout)))
    w_k = w_p.reshape(KH * KW, cin_p, cout_p).astype(compute_dtype)
    bias_p = jnp.pad(bias, (0, cout_p - Cout)).reshape(1, cout_p)

    x_nhwc = jnp.transpose(x_nchw, (0, 2, 3, 1)).astype(compute_dtype)
    # one fused pad: spatial halo + ragged-H tail + sublane-multiple W + channels
    x_p = jnp.pad(x_nhwc, ((0, 0), (pad, Hp - H - pad),
                           (pad, wpp - W - pad), (0, cin_p - Cin)))
    x_flat = x_p.reshape(N, Hp * wpp, cin_p)         # row-major: free reshape

    kernel = functools.partial(
        _conv_bn_relu_kernel, kh=KH, kw=KW, tile_h=tile_h, pad=pad, wpp=wpp,
        w_out=W, n_h=n_h, apply_relu=has_relu)

    out_padded = pl.pallas_call(
        kernel,
        out_shape=jax.ShapeDtypeStruct((N, H_out, W, cout_p), out_dtype),
        grid_spec=pltpu.PrefetchScalarGridSpec(
            num_scalar_prefetch=0,
            grid=(N, n_h, n_co),
            in_specs=[
                pl.BlockSpec(memory_space=pl.ANY),   # input stays in HBM
                pl.BlockSpec((KH * KW, cin_p, tile_co),
                             lambda n, h, c: (0, 0, c)),
                pl.BlockSpec((1, tile_co), lambda n, h, c: (0, c)),
            ],
            out_specs=pl.BlockSpec((1, tile_h, W, tile_co),
                                   lambda n, h, c: (n, h, 0, c)),
            scratch_shapes=[
                pltpu.VMEM((2, seg + wpp, cin_p), compute_dtype),
                pltpu.SemaphoreType.DMA((2,)),
            ]),
        compiler_params=pltpu.CompilerParams(
            # Batch shards across TensorCores; h / cout stay sequential because
            # the manual slab double-buffer state crosses those axes.
            dimension_semantics=("parallel", "arbitrary", "arbitrary"),
            vmem_limit_bytes=vmem_limit),
    )(x_flat, w_k, bias_p)

    out_nhwc = out_padded[:, :H, :, :Cout]           # crop ragged-H / channel pad
    return jnp.transpose(out_nhwc, (0, 3, 1, 2))     # back to NCHW


def _reference(x_nchw, weight_oihw, bn_gamma, bn_beta, bn_mean, bn_var,
               *, pad=1, eps=1e-5):
    y = jax.lax.conv_general_dilated(
        x_nchw, weight_oihw, window_strides=(1, 1),
        padding=((pad, pad), (pad, pad)),
        dimension_numbers=("NCHW", "OIHW", "NCHW"))
    scale = bn_gamma / jnp.sqrt(bn_var + eps)
    bias = bn_beta - bn_mean * scale
    y = y * scale[None, :, None, None] + bias[None, :, None, None]
    return jnp.maximum(y, 0.0)


if __name__ == "__main__":
    key = jax.random.PRNGKey(0)
    keys = jax.random.split(key, 11)

    N, Cin, H, W = 2, 4, 16, 16
    Cout, K = 8, 3

    x = jax.random.normal(keys[0], (N, Cin, H, W), jnp.float32)
    # Conv2d(in=4, out=8, k=3, stride=1, pad=1, bias=False) weight: (Cout, Cin, K, K)
    w = jax.random.normal(keys[1], (Cout, Cin, K, K), jnp.float32) * 0.1
    # BatchNorm2d(Cout) parameters / running stats (inference semantics)
    gamma = 1.0 + 0.1 * jax.random.normal(keys[2], (Cout,), jnp.float32)
    beta = 0.1 * jax.random.normal(keys[3], (Cout,), jnp.float32)
    running_mean = 0.1 * jax.random.normal(keys[4], (Cout,), jnp.float32)
    running_var = 1.0 + 0.1 * jax.random.uniform(keys[5], (Cout,), jnp.float32)

    ref = _reference(x, w, gamma, beta, running_mean, running_var)

    # Production path: bf16 MXU operands, f32 accumulation, auto-picked tiles.
    out = conv_bn_relu(x, w, gamma, beta, running_mean, running_var)
    jax.block_until_ready(out)
    np.testing.assert_allclose(np.asarray(out), np.asarray(ref),
                               rtol=3e-2, atol=3e-2)

    # Multi-h-tile path: exercises the double-buffered halo DMA + prefetch.
    out_t4 = conv_bn_relu(x, w, gamma, beta, running_mean, running_var, tile_h=4)
    jax.block_until_ready(out_t4)
    np.testing.assert_allclose(np.asarray(out_t4), np.asarray(ref),
                               rtol=3e-2, atol=3e-2)

    # Ragged H tiling (H % tile_h != 0): last tile padded then cropped.
    out_t6 = conv_bn_relu(x, w, gamma, beta, running_mean, running_var, tile_h=6)
    jax.block_until_ready(out_t6)
    np.testing.assert_allclose(np.asarray(out_t6), np.asarray(ref),
                               rtol=3e-2, atol=3e-2)

    # Debug-only full-precision path (tight tolerance vs the XLA reference).
    out_f32 = conv_bn_relu(x, w, gamma, beta, running_mean, running_var,
                           compute_dtype=jnp.float32)
    jax.block_until_ready(out_f32)
    np.testing.assert_allclose(np.asarray(out_f32), np.asarray(ref),
                               rtol=1e-4, atol=1e-4)

    # Cout-tiled path (cout_p = 256 split into two 128-wide tiles): exercises
    # the cout grid axis (weights/bias/output sliced per tile, slab DMA reused).
    Cout2 = 160
    w2 = jax.random.normal(keys[6], (Cout2, Cin, K, K), jnp.float32) * 0.1
    g2 = 1.0 + 0.1 * jax.random.normal(keys[7], (Cout2,), jnp.float32)
    b2 = 0.1 * jax.random.normal(keys[8], (Cout2,), jnp.float32)
    m2 = 0.1 * jax.random.normal(keys[9], (Cout2,), jnp.float32)
    v2 = 1.0 + 0.1 * jax.random.uniform(keys[10], (Cout2,), jnp.float32)
    ref2 = _reference(x, w2, g2, b2, m2, v2)
    out2 = conv_bn_relu(x, w2, g2, b2, m2, v2, tile_h=8, tile_co=128)
    jax.block_until_ready(out2)
    np.testing.assert_allclose(np.asarray(out2), np.asarray(ref2),
                               rtol=3e-2, atol=3e-2)

    print("KERNEL_OK")
</pallas_src>

<mosaic_0001>
module attributes {stable_mosaic.version = 11 : i64} {
  func.func @_conv_bn_relu_kernel(%arg0: i32, %arg1: i32, %arg2: i32, %arg3: memref<2x576x128xbf16, #tpu.memory_space<any>>, %arg4: memref<9x128x128xbf16, #tpu.memory_space<vmem>>, %arg5: memref<1x128xf32, #tpu.memory_space<vmem>>, %arg6: memref<1x16x16x128xf32, #tpu.memory_space<vmem>>, %arg7: memref<2x608x128xbf16, #tpu.memory_space<vmem>>, %arg8: memref<2x!tpu.dma_semaphore, #tpu.memory_space<semaphore_mem>>) attributes {dimension_semantics = [#tpu.dimension_semantics<parallel>, #tpu.dimension_semantics<arbitrary>, #tpu.dimension_semantics<arbitrary>], iteration_bounds = array<i64: 2, 1, 1>, scalar_prefetch = 0 : i64, scratch_operands = 2 : i64, tpu.core_type = #tpu.core_type<tc>, window_params = [{}, {transform_indices = @transform_1, window_bounds = array<i64: 9, 128, 128>}, {transform_indices = @transform_2, window_bounds = array<i64: 1, 128>}, {transform_indices = @transform_3, window_bounds = array<i64: 1, 16, 16, 128>}]} {
    %c2_i32 = arith.constant 2 : i32
    %0 = arith.remsi %arg1, %c2_i32 : i32
    %c0_i32 = arith.constant 0 : i32
    %1 = arith.cmpi eq, %arg2, %c0_i32 : i32
    %2 = arith.extui %1 : i1 to i32
    %c0_i32_0 = arith.constant 0 : i32
    %3 = arith.cmpi ne, %2, %c0_i32_0 : i32
    scf.if %3 {
      %c0_i32_41 = arith.constant 0 : i32
      %69 = arith.cmpi eq, %arg1, %c0_i32_41 : i32
      %70 = arith.extui %69 : i1 to i32
      %c0_i32_42 = arith.constant 0 : i32
      %71 = arith.cmpi ne, %70, %c0_i32_42 : i32
      scf.if %71 {
        %cst_48 = arith.constant 0.000000e+00 : bf16
        %83 = vector.broadcast %cst_48 : bf16 to vector<32x128xbf16>
        %c0_49 = arith.constant 0 : index
        %c576 = arith.constant 576 : index
        %c0_50 = arith.constant 0 : index
        %84 = vector.load %arg7[%c0_49, %c576, %c0_50] : memref<2x608x128xbf16, #tpu.memory_space<vmem>>, vector<1x32x128xbf16>
        %85 = vector.shape_cast %84 : vector<1x32x128xbf16> to vector<32x128xbf16>
        %86 = vector.shape_cast %83 : vector<32x128xbf16> to vector<1x32x128xbf16>
        tpu.vector_store %arg7[%c0_49, %c576, %c0_50], %86 {strides = array<i32>} : memref<2x608x128xbf16, #tpu.memory_space<vmem>>, vector<1x32x128xbf16>,
        %c1_51 = arith.constant 1 : index
        %c576_52 = arith.constant 576 : index
        %c0_53 = arith.constant 0 : index
        %87 = vector.load %arg7[%c1_51, %c576_52, %c0_53] : memref<2x608x128xbf16, #tpu.memory_space<vmem>>, vector<1x32x128xbf16>
        %88 = vector.shape_cast %87 : vector<1x32x128xbf16> to vector<32x128xbf16>
        %89 = vector.shape_cast %83 : vector<32x128xbf16> to vector<1x32x128xbf16>
        tpu.vector_store %arg7[%c1_51, %c576_52, %c0_53], %89 {strides = array<i32>} : memref<2x608x128xbf16, #tpu.memory_space<vmem>>, vector<1x32x128xbf16>,
        %c0_i32_54 = arith.constant 0 : i32
        %c0_i32_55 = arith.constant 0 : i32
        %c0_i32_56 = arith.constant 0 : i32
        %c0_i32_57 = arith.constant 0 : i32
        %90 = tpu.memref_slice %arg3[%arg0, %c0_i32_56, %c0_i32_57] : memref<2x576x128xbf16, #tpu.memory_space<any>> -> memref<1x576x128xbf16, #tpu.memory_space<any>>
        %91 = tpu.memref_squeeze %90 : memref<1x576x128xbf16, #tpu.memory_space<any>> -> memref<576x128xbf16, #tpu.memory_space<any>>
        %c0_i32_58 = arith.constant 0 : i32
        %c0_i32_59 = arith.constant 0 : i32
        %92 = tpu.memref_slice %arg7[%c0_i32_54, %c0_i32_58, %c0_i32_59] : memref<2x608x128xbf16, #tpu.memory_space<vmem>> -> memref<1x576x128xbf16, #tpu.memory_space<vmem>>
        %93 = tpu.memref_squeeze %92 : memref<1x576x128xbf16, #tpu.memory_space<vmem>> -> memref<576x128xbf16, #tpu.memory_space<vmem>>
        %94 = tpu.memref_slice %arg8[%c0_i32_55] : memref<2x!tpu.dma_semaphore, #tpu.memory_space<semaphore_mem>> -> memref<1x!tpu.dma_semaphore, #tpu.memory_space<semaphore_mem>>
        %95 = tpu.memref_squeeze %94 : memref<1x!tpu.dma_semaphore, #tpu.memory_space<semaphore_mem>> -> memref<!tpu.dma_semaphore, #tpu.memory_space<semaphore_mem>>
        tpu.enqueue_dma source(%91 : memref<576x128xbf16, #tpu.memory_space<any>>) target(%93 : memref<576x128xbf16, #tpu.memory_space<vmem>>) target_semaphore(%95 : memref<!tpu.dma_semaphore, #tpu.memory_space<semaphore_mem>>)
      } else {
      }
      %c512_i32 = arith.constant 512 : i32
      %72 = arith.muli %arg1, %c512_i32 : i32
      %c0_i32_43 = arith.constant 0 : i32
      %73 = tpu.memref_slice %arg3[%arg0, %72, %c0_i32_43] : memref<2x576x128xbf16, #tpu.memory_space<any>> -> memref<1x576x128xbf16, #tpu.memory_space<any>>
      %74 = tpu.memref_squeeze %73 : memref<1x576x128xbf16, #tpu.memory_space<any>> -> memref<576x128xbf16, #tpu.memory_space<any>>
      %c0_i32_44 = arith.constant 0 : i32
      %c0_i32_45 = arith.constant 0 : i32
      %75 = tpu.memref_slice %arg7[%0, %c0_i32_44, %c0_i32_45] : memref<2x608x128xbf16, #tpu.memory_space<vmem>> -> memref<1x576x128xbf16, #tpu.memory_space<vmem>>
      %76 = tpu.memref_squeeze %75 : memref<1x576x128xbf16, #tpu.memory_space<vmem>> -> memref<576x128xbf16, #tpu.memory_space<vmem>>
      %77 = tpu.memref_slice %arg8[%0] : memref<2x!tpu.dma_semaphore, #tpu.memory_space<semaphore_mem>> -> memref<1x!tpu.dma_semaphore, #tpu.memory_space<semaphore_mem>>
      %78 = tpu.memref_squeeze %77 : memref<1x!tpu.dma_semaphore, #tpu.memory_space<semaphore_mem>> -> memref<!tpu.dma_semaphore, #tpu.memory_space<semaphore_mem>>
      tpu.wait_dma2 semaphore(%78 : memref<!tpu.dma_semaphore, #tpu.memory_space<semaphore_mem>>) src(%74 : memref<576x128xbf16, #tpu.memory_space<any>>) dst(%76 : memref<576x128xbf16, #tpu.memory_space<vmem>>)
      %c1_i32 = arith.constant 1 : i32
      %79 = arith.addi %arg1, %c1_i32 : i32
      %c1_i32_46 = arith.constant 1 : i32
      %80 = arith.cmpi slt, %79, %c1_i32_46 : i32
      %81 = arith.extui %80 : i1 to i32
      %c0_i32_47 = arith.constant 0 : i32
      %82 = arith.cmpi ne, %81, %c0_i32_47 : i32
      scf.if %82 {
        %c1_i32_48 = arith.constant 1 : i32
        %83 = arith.addi %arg1, %c1_i32_48 : i32
        %c1_i32_49 = arith.constant 1 : i32
        %84 = arith.subi %c1_i32_49, %0 : i32
        %c512_i32_50 = arith.constant 512 : i32
        %85 = arith.muli %83, %c512_i32_50 : i32
        %c0_i32_51 = arith.constant 0 : i32
        %86 = tpu.memref_slice %arg3[%arg0, %85, %c0_i32_51] : memref<2x576x128xbf16, #tpu.memory_space<any>> -> memref<1x576x128xbf16, #tpu.memory_space<any>>
        %87 = tpu.memref_squeeze %86 : memref<1x576x128xbf16, #tpu.memory_space<any>> -> memref<576x128xbf16, #tpu.memory_space<any>>
        %c0_i32_52 = arith.constant 0 : i32
        %c0_i32_53 = arith.constant 0 : i32
        %88 = tpu.memref_slice %arg7[%84, %c0_i32_52, %c0_i32_53] : memref<2x608x128xbf16, #tpu.memory_space<vmem>> -> memref<1x576x128xbf16, #tpu.memory_space<vmem>>
        %89 = tpu.memref_squeeze %88 : memref<1x576x128xbf16, #tpu.memory_space<vmem>> -> memref<576x128xbf16, #tpu.memory_space<vmem>>
        %90 = tpu.memref_slice %arg8[%84] : memref<2x!tpu.dma_semaphore, #tpu.memory_space<semaphore_mem>> -> memref<1x!tpu.dma_semaphore, #tpu.memory_space<semaphore_mem>>
        %91 = tpu.memref_squeeze %90 : memref<1x!tpu.dma_semaphore, #tpu.memory_space<semaphore_mem>> -> memref<!tpu.dma_semaphore, #tpu.memory_space<semaphore_mem>>
        tpu.enqueue_dma source(%87 : memref<576x128xbf16, #tpu.memory_space<any>>) target(%89 : memref<576x128xbf16, #tpu.memory_space<vmem>>) target_semaphore(%91 : memref<!tpu.dma_semaphore, #tpu.memory_space<semaphore_mem>>)
      } else {
      }
    } else {
    }
    %cst = arith.constant 0.000000e+00 : f32
    %4 = vector.broadcast %cst : f32 to vector<512x128xf32>
    %5 = arith.index_cast %0 : i32 to index
    %c0 = arith.constant 0 : index
    %c0_1 = arith.constant 0 : index
    %6 = vector.load %arg7[%5, %c0, %c0_1] : memref<2x608x128xbf16, #tpu.memory_space<vmem>>, vector<1x576x128xbf16>
    %7 = vector.shape_cast %6 : vector<1x576x128xbf16> to vector<576x128xbf16>
    %8 = vector.extract_strided_slice %7 {offsets = [0, 0], sizes = [512, 128], strides = [1, 1]} : vector<576x128xbf16> to vector<512x128xbf16>
    %c0_2 = arith.constant 0 : index
    %c0_3 = arith.constant 0 : index
    %c0_4 = arith.constant 0 : index
    %9 = vector.load %arg4[%c0_2, %c0_3, %c0_4] : memref<9x128x128xbf16, #tpu.memory_space<vmem>>, vector<1x128x128xbf16>
    %10 = vector.shape_cast %9 : vector<1x128x128xbf16> to vector<128x128xbf16>
    %cst_5 = arith.constant dense<0.000000e+00> : vector<512x128xf32>
    %11 = tpu.matmul %8, %10, %cst_5 {dimension_numbers = #tpu.dot_dimension_numbers<[1], [0], [0], [1], [0, 0, 1, 1], [], []>} : vector<512x128xbf16>, vector<128x128xbf16>, vector<512x128xf32> -> vector<512x128xf32>
    %12 = arith.addf %4, %11 : vector<512x128xf32>
    %13 = vector.extract_strided_slice %7 {offsets = [32, 0], sizes = [512, 128], strides = [1, 1]} : vector<576x128xbf16> to vector<512x128xbf16>
    %c3 = arith.constant 3 : index
    %c0_6 = arith.constant 0 : index
    %c0_7 = arith.constant 0 : index
    %14 = vector.load %arg4[%c3, %c0_6, %c0_7] : memref<9x128x128xbf16, #tpu.memory_space<vmem>>, vector<1x128x128xbf16>
    %15 = vector.shape_cast %14 : vector<1x128x128xbf16> to vector<128x128xbf16>
    %cst_8 = arith.constant dense<0.000000e+00> : vector<512x128xf32>
    %16 = tpu.matmul %13, %15, %cst_8 {dimension_numbers = #tpu.dot_dimension_numbers<[1], [0], [0], [1], [0, 0, 1, 1], [], []>} : vector<512x128xbf16>, vector<128x128xbf16>, vector<512x128xf32> -> vector<512x128xf32>
    %17 = arith.addf %12, %16 : vector<512x128xf32>
    %18 = vector.extract_strided_slice %7 {offsets = [64, 0], sizes = [512, 128], strides = [1, 1]} : vector<576x128xbf16> to vector<512x128xbf16>
    %c6 = arith.constant 6 : index
    %c0_9 = arith.constant 0 : index
    %c0_10 = arith.constant 0 : index
    %19 = vector.load %arg4[%c6, %c0_9, %c0_10] : memref<9x128x128xbf16, #tpu.memory_space<vmem>>, vector<1x128x128xbf16>
    %20 = vector.shape_cast %19 : vector<1x128x128xbf16> to vector<128x128xbf16>
    %cst_11 = arith.constant dense<0.000000e+00> : vector<512x128xf32>
    %21 = tpu.matmul %18, %20, %cst_11 {dimension_numbers = #tpu.dot_dimension_numbers<[1], [0], [0], [1], [0, 0, 1, 1], [], []>} : vector<512x128xbf16>, vector<128x128xbf16>, vector<512x128xf32> -> vector<512x128xf32>
    %22 = arith.addf %17, %21 : vector<512x128xf32>
    %23 = arith.index_cast %0 : i32 to index
    %c1 = arith.constant 1 : index
    %c0_12 = arith.constant 0 : index
    %24 = vector.load %arg7[%23, %c1, %c0_12] : memref<2x608x128xbf16, #tpu.memory_space<vmem>>, vector<1x576x128xbf16>
    %25 = vector.shape_cast %24 : vector<1x576x128xbf16> to vector<576x128xbf16>
    %26 = vector.extract_strided_slice %25 {offsets = [0, 0], sizes = [512, 128], strides = [1, 1]} : vector<576x128xbf16> to vector<512x128xbf16>
    %c1_13 = arith.constant 1 : index
    %c0_14 = arith.constant 0 : index
    %c0_15 = arith.constant 0 : index
    %27 = vector.load %arg4[%c1_13, %c0_14, %c0_15] : memref<9x128x128xbf16, #tpu.memory_space<vmem>>, vector<1x128x128xbf16>
    %28 = vector.shape_cast %27 : vector<1x128x128xbf16> to vector<128x128xbf16>
    %cst_16 = arith.constant dense<0.000000e+00> : vector<512x128xf32>
    %29 = tpu.matmul %26, %28, %cst_16 {dimension_numbers = #tpu.dot_dimension_numbers<[1], [0], [0], [1], [0, 0, 1, 1], [], []>} : vector<512x128xbf16>, vector<128x128xbf16>, vector<512x128xf32> -> vector<512x128xf32>
    %30 = arith.addf %22, %29 : vector<512x128xf32>
    %31 = vector.extract_strided_slice %25 {offsets = [32, 0], sizes = [512, 128], strides = [1, 1]} : vector<576x128xbf16> to vector<512x128xbf16>
    %c4 = arith.constant 4 : index
    %c0_17 = arith.constant 0 : index
    %c0_18 = arith.constant 0 : index
    %32 = vector.load %arg4[%c4, %c0_17, %c0_18] : memref<9x128x128xbf16, #tpu.memory_space<vmem>>, vector<1x128x128xbf16>
    %33 = vector.shape_cast %32 : vector<1x128x128xbf16> to vector<128x128xbf16>
    %cst_19 = arith.constant dense<0.000000e+00> : vector<512x128xf32>
    %34 = tpu.matmul %31, %33, %cst_19 {dimension_numbers = #tpu.dot_dimension_numbers<[1], [0], [0], [1], [0, 0, 1, 1], [], []>} : vector<512x128xbf16>, vector<128x128xbf16>, vector<512x128xf32> -> vector<512x128xf32>
    %35 = arith.addf %30, %34 : vector<512x128xf32>
    %36 = vector.extract_strided_slice %25 {offsets = [64, 0], sizes = [512, 128], strides = [1, 1]} : vector<576x128xbf16> to vector<512x128xbf16>
    %c7 = arith.constant 7 : index
    %c0_20 = arith.constant 0 : index
    %c0_21 = arith.constant 0 : index
    %37 = vector.load %arg4[%c7, %c0_20, %c0_21] : memref<9x128x128xbf16, #tpu.memory_space<vmem>>, vector<1x128x128xbf16>
    %38 = vector.shape_cast %37 : vector<1x128x128xbf16> to vector<128x128xbf16>
    %cst_22 = arith.constant dense<0.000000e+00> : vector<512x128xf32>
    %39 = tpu.matmul %36, %38, %cst_22 {dimension_numbers = #tpu.dot_dimension_numbers<[1], [0], [0], [1], [0, 0, 1, 1], [], []>} : vector<512x128xbf16>, vector<128x128xbf16>, vector<512x128xf32> -> vector<512x128xf32>
    %40 = arith.addf %35, %39 : vector<512x128xf32>
    %41 = arith.index_cast %0 : i32 to index
    %c2 = arith.constant 2 : index
    %c0_23 = arith.constant 0 : index
    %42 = vector.load %arg7[%41, %c2, %c0_23] : memref<2x608x128xbf16, #tpu.memory_space<vmem>>, vector<1x576x128xbf16>
    %43 = vector.shape_cast %42 : vector<1x576x128xbf16> to vector<576x128xbf16>
    %44 = vector.extract_strided_slice %43 {offsets = [0, 0], sizes = [512, 128], strides = [1, 1]} : vector<576x128xbf16> to vector<512x128xbf16>
    %c2_24 = arith.constant 2 : index
    %c0_25 = arith.constant 0 : index
    %c0_26 = arith.constant 0 : index
    %45 = vector.load %arg4[%c2_24, %c0_25, %c0_26] : memref<9x128x128xbf16, #tpu.memory_space<vmem>>, vector<1x128x128xbf16>
    %46 = vector.shape_cast %45 : vector<1x128x128xbf16> to vector<128x128xbf16>
    %cst_27 = arith.constant dense<0.000000e+00> : vector<512x128xf32>
    %47 = tpu.matmul %44, %46, %cst_27 {dimension_numbers = #tpu.dot_dimension_numbers<[1], [0], [0], [1], [0, 0, 1, 1], [], []>} : vector<512x128xbf16>, vector<128x128xbf16>, vector<512x128xf32> -> vector<512x128xf32>
    %48 = arith.addf %40, %47 : vector<512x128xf32>
    %49 = vector.extract_strided_slice %43 {offsets = [32, 0], sizes = [512, 128], strides = [1, 1]} : vector<576x128xbf16> to vector<512x128xbf16>
    %c5 = arith.constant 5 : index
    %c0_28 = arith.constant 0 : index
    %c0_29 = arith.constant 0 : index
    %50 = vector.load %arg4[%c5, %c0_28, %c0_29] : memref<9x128x128xbf16, #tpu.memory_space<vmem>>, vector<1x128x128xbf16>
    %51 = vector.shape_cast %50 : vector<1x128x128xbf16> to vector<128x128xbf16>
    %cst_30 = arith.constant dense<0.000000e+00> : vector<512x128xf32>
    %52 = tpu.matmul %49, %51, %cst_30 {dimension_numbers = #tpu.dot_dimension_numbers<[1], [0], [0], [1], [0, 0, 1, 1], [], []>} : vector<512x128xbf16>, vector<128x128xbf16>, vector<512x128xf32> -> vector<512x128xf32>
    %53 = arith.addf %48, %52 : vector<512x128xf32>
    %54 = vector.extract_strided_slice %43 {offsets = [64, 0], sizes = [512, 128], strides = [1, 1]} : vector<576x128xbf16> to vector<512x128xbf16>
    %c8 = arith.constant 8 : index
    %c0_31 = arith.constant 0 : index
    %c0_32 = arith.constant 0 : index
    %55 = vector.load %arg4[%c8, %c0_31, %c0_32] : memref<9x128x128xbf16, #tpu.memory_space<vmem>>, vector<1x128x128xbf16>
    %56 = vector.shape_cast %55 : vector<1x128x128xbf16> to vector<128x128xbf16>
    %cst_33 = arith.constant dense<0.000000e+00> : vector<512x128xf32>
    %57 = tpu.matmul %54, %56, %cst_33 {dimension_numbers = #tpu.dot_dimension_numbers<[1], [0], [0], [1], [0, 0, 1, 1], [], []>} : vector<512x128xbf16>, vector<128x128xbf16>, vector<512x128xf32> -> vector<512x128xf32>
    %58 = arith.addf %53, %57 : vector<512x128xf32>
    %c0_34 = arith.constant 0 : index
    %c0_35 = arith.constant 0 : index
    %59 = vector.load %arg5[%c0_34, %c0_35] : memref<1x128xf32, #tpu.memory_space<vmem>>, vector<1x128xf32>
    %60 = vector.broadcast %59 : vector<1x128xf32> to vector<512x128xf32>
    %61 = arith.addf %58, %60 : vector<512x128xf32>
    %cst_36 = arith.constant 0.000000e+00 : f32
    %62 = vector.broadcast %cst_36 : f32 to vector<512x128xf32>
    %63 = arith.maximumf %61, %62 : vector<512x128xf32>
    %64 = vector.shape_cast %63 : vector<512x128xf32> to vector<16x32x128xf32>
    %65 = vector.extract_strided_slice %64 {offsets = [0, 0, 0], sizes = [16, 16, 128], strides = [1, 1, 1]} : vector<16x32x128xf32> to vector<16x16x128xf32>
    %c0_37 = arith.constant 0 : index
    %c0_38 = arith.constant 0 : index
    %c0_39 = arith.constant 0 : index
    %c0_40 = arith.constant 0 : index
    %66 = vector.load %arg6[%c0_37, %c0_38, %c0_39, %c0_40] : memref<1x16x16x128xf32, #tpu.memory_space<vmem>>, vector<1x16x16x128xf32>
    %67 = vector.shape_cast %66 : vector<1x16x16x128xf32> to vector<16x16x128xf32>
    %68 = vector.shape_cast %65 : vector<16x16x128xf32> to vector<1x16x16x128xf32>
    tpu.vector_store %arg6[%c0_37, %c0_38, %c0_39, %c0_40], %68 {strides = array<i32>} : memref<1x16x16x128xf32, #tpu.memory_space<vmem>>, vector<1x16x16x128xf32>,
    return
  }
  func.func @transform_1(%arg0: i32, %arg1: i32, %arg2: i32) -> (i32, i32, i32) {
    %c0_i32 = arith.constant 0 : i32
    %c0_i32_0 = arith.constant 0 : i32
    %c0_i32_1 = arith.constant 0 : i32
    return %c0_i32, %c0_i32_0, %arg2 : i32, i32, i32
  }
  func.func @transform_2(%arg0: i32, %arg1: i32, %arg2: i32) -> (i32, i32) {
    %c0_i32 = arith.constant 0 : i32
    %c0_i32_0 = arith.constant 0 : i32
    return %c0_i32, %arg2 : i32, i32
  }
  func.func @transform_3(%arg0: i32, %arg1: i32, %arg2: i32) -> (i32, i32, i32, i32) {
    %c0_i32 = arith.constant 0 : i32
    %c0_i32_0 = arith.constant 0 : i32
    return %arg0, %arg1, %c0_i32, %arg2 : i32, i32, i32, i32
  }
}

</mosaic_0001>

<llo_original>
// kernel: tpu_custom_call.1
$region0: #{tpu_custom_call.1}
  #allocation0 [shape = 'u32[]', space=smem, size = 0x4, offset = 0x4, fixed_abs, tag = 'smem constant byte address 0x4 - core index']
  #allocation1 [shape = 'u32[72,128]{1,0:T(1,128)}', space=vmem, size = 0x9000, scoped, tag = 'internal scratch']
  #allocation2 [shape = 'bf16[2,608,128]{2,1,0:T(8,128)(2,1)}', space=vmem, size = 0x4c000, scoped, tag = 'scratch operand']
  #allocation3 [shape = 's32[2]{0}', space=sflag, size = 0x8, scoped, tag = 'scratch operand']
  #allocation8 [shape = 's32[]', space=sflag, size = 0x4, offset = 0, fixed_abs, tag = 'sflag constant byte address 0x0 - dummy sync flag']
  #allocation9 [shape = 's32[]', space=sflag, size = 0x4, offset = 0, fixed_abs, tag = 'sflag constant byte address 0x0 - dummy sync flag']
  #allocation10 [shape = 'u32[]', space=smem, size = 0x4, offset = 0x44, fixed_abs, tag = 'smem constant byte address 0x44 - assertion arg 0']
  #allocation11 [shape = 'u32[]', space=smem, size = 0x4, offset = 0x48, fixed_abs, tag = 'smem constant byte address 0x48 - assertion arg 1']
  #allocation12 [shape = 's32[]', space=sflag, size = 0x4, offset = 0, fixed_abs, tag = 'sflag constant byte address 0x0 - dummy sync flag']
  #allocation13 [shape = 's32[]', space=sflag, size = 0x4, offset = 0, fixed_abs, tag = 'sflag constant byte address 0x0 - dummy sync flag']
  %s0 = inlined_call_operand.hbm [shape: bf16[2,576,128], index: 0, kind: input, shape index: {}]
  %s1 = inlined_call_operand.hbm [shape: bf16[9,128,128], index: 1, kind: input, shape index: {}]
  %s2 = inlined_call_operand.vmem [shape: f32[1,128], index: 2, kind: input, shape index: {}]
  %s3 = inlined_call_operand.hbm [shape: f32[2,16,16,128], index: 3, kind: output, shape index: {}]
  %s4 = sld [smem:[#allocation0]]
  $region65: #{tpu_custom_call.1} parent=0
    _
  %s6 = ssub.s32 1, %s4
  %s7 = scalar_select 0, %s6, %s4
  $region1: #{tpu_custom_call.1} parent=0
    #allocation4 [shape = 'u8[294912]{0}', space=vmem, size = 0x48000, scoped, tag = 'input window, operand 1, single buffered']
    #allocation5 [shape = 's32[2]{0}', space=sflag, size = 0x8, scoped, tag = 'scoped memory for tpu_custom_call.1']
    #allocation6 [shape = 's32[2]{0}', space=sflag, size = 0x8, scoped, tag = 'scoped memory for tpu_custom_call.1']
    #allocation7 [shape = 'u8[262144]{0}', space=vmem, size = 0x40000, scoped, tag = 'output window, operand 0']
    %8 = vsyncpa [#allocation5], 0
    %9 = vsyncpa [#allocation6], 0
    %s10 = scalar_lea.sflag [#allocation6], 1
    %11 = vsyncpa %s10, 0
    loop: start=0, step=1, limit=4
    $region2: #{tpu_custom_call.1} parent=1 // loop_pre_header
      _
    $region3: #{tpu_custom_call.1} parent=1 // loop_header
      %s13 = sphi 0, %s17
      %p14 = scmp.ge.s32.totalorder %s13, 4
      %s20 = sphi 0, %s39
      %s21 = sphi 0, %s35
      %s22 = sphi 0, %s31
      %s23 = sphi 0, %s20
      %s24 = sphi 0, %s21
      %s25 = sphi 0, %s22
      %s26 = sphi 0, %s23
      %s27 = sphi 0, %s24
      %s28 = sphi 0, %s25
      %s42 = sphi 0, %s44
      %s45 = sphi 0, %s42
      %s46 = sphi 0, %s45
      %s62 = sphi 0, %s46
      %s68 = sphi 0, %s70
      %s71 = sphi 0, %s68
      %s72 = sphi 0, %s71
      %s88 = sphi 0, %s72
      %s98 = sphi 0, %s100
      %s101 = sphi 0, %s98
      %s102 = sphi 0, %s101
      %s118 = sphi 0, %s102
    $region4: #{tpu_custom_call.1} parent=1 // loop_header_branch
      %16 = sbr.rel (%p14) target = $region8
    $region5: #{tpu_custom_call.1} parent=1 // loop_body
      %s18 = ssub.s32 %s13, 1
      %s19 = ssub.s32 %s13, 2
      %s29 = sadd.s32 1, %s22
      %p30 = scmp.ge.s32.totalorder %s29, 1
      %s31 = scalar_select %p30, 0, %s29
      %s32 = sadd.s32 1, %s21
      %s33 = scalar_select %p30, %s32, %s21
      %p34 = scmp.ge.s32.totalorder %s33, 1
      %s35 = scalar_select %p34, 0, %s33
      %s36 = sadd.s32 1, %s20
      %s37 = scalar_select %p34, %s36, %s20
      %p38 = scmp.ge.s32.totalorder %s37, 2
      %s39 = scalar_select %p38, 0, %s37
      %s40 = ssub.s32 %s22, %s31
      %p41 = scmp.eq.s32.totalorder %s40, 0
      %s43 = sadd.s32 %s42, 1
      %s44 = scalar_select %p41, %s42, %s43
      %p47 = pneg %p41
      %p48 = scmp.eq.s32.totalorder %s13, 1
      %p49 = por %p47, %p48
      %p50 = scmp.ne.s32.totalorder %s42, %s45
      %p51 = scmp.eq.s32.totalorder %s13, 0
      %p52 = por %p50, %p51
      %p53 = scmp.ne.s32.totalorder %s42, %s45
      %p54 = scmp.eq.s32.totalorder %s18, 1
      %p55 = por %p53, %p54
      %p56 = scmp.ne.s32.totalorder %s45, %s46
      %p57 = scmp.eq.s32.totalorder %s18, 0
      %p58 = por %p56, %p57
      %p59 = scmp.ne.s32.totalorder %s45, %s46
      %p60 = scmp.eq.s32.totalorder %s19, 1
      %p61 = por %p59, %p60
      %p63 = scmp.ne.s32.totalorder %s46, %s62
      %p64 = scmp.eq.s32.totalorder %s19, 0
      %p65 = por %p63, %p64
      %s66 = ssub.s32 %s22, %s31
      %p67 = scmp.eq.s32.totalorder %s66, 0
      %s69 = sadd.s32 %s68, 1
      %s70 = scalar_select %p67, %s68, %s69
      %p73 = pneg %p67
      %p74 = scmp.eq.s32.totalorder %s13, 1
      %p75 = por %p73, %p74
      %p76 = scmp.ne.s32.totalorder %s68, %s71
      %p77 = scmp.eq.s32.totalorder %s13, 0
      %p78 = por %p76, %p77
      %p79 = scmp.ne.s32.totalorder %s68, %s71
      %p80 = scmp.eq.s32.totalorder %s18, 1
      %p81 = por %p79, %p80
      %p82 = scmp.ne.s32.totalorder %s71, %s72
      %p83 = scmp.eq.s32.totalorder %s18, 0
      %p84 = por %p82, %p83
      %p85 = scmp.ne.s32.totalorder %s71, %s72
      %p86 = scmp.eq.s32.totalorder %s19, 1
      %p87 = por %p85, %p86
      %p89 = scmp.ne.s32.totalorder %s72, %s88
      %p90 = scmp.eq.s32.totalorder %s19, 0
      %p91 = por %p89, %p90
      %s92 = ssub.s32 %s20, %s39
      %s93 = ssub.s32 %s21, %s35
      %s94 = sor.u32 %s92, %s93
      %s95 = ssub.s32 %s22, %s31
      %s96 = sor.u32 %s94, %s95
      %p97 = scmp.eq.s32.totalorder %s96, 0
      %s99 = sadd.s32 %s98, 1
      %s100 = scalar_select %p97, %s98, %s99
      %p103 = pneg %p97
      %p104 = scmp.eq.s32.totalorder %s13, 1
      %p105 = por %p103, %p104
      %p106 = scmp.ne.s32.totalorder %s98, %s101
      %p107 = scmp.eq.s32.totalorder %s13, 0
      %p108 = por %p106, %p107
      %p109 = scmp.ne.s32.totalorder %s98, %s101
      %p110 = scmp.eq.s32.totalorder %s18, 1
      %p111 = por %p109, %p110
      %p112 = scmp.ne.s32.totalorder %s101, %s102
      %p113 = scmp.eq.s32.totalorder %s18, 0
      %p114 = por %p112, %p113
      %p115 = scmp.ne.s32.totalorder %s101, %s102
      %p116 = scmp.eq.s32.totalorder %s19, 1
      %p117 = por %p115, %p116
      %p119 = scmp.ne.s32.totalorder %s102, %s118
      %p120 = scmp.eq.s32.totalorder %s19, 0
      %p121 = por %p119, %p120
      %p122 = scmp.le.s32.totalorder 1, %s13
      %p123 = scmp.lt.s32.totalorder %s13, 3
      %p124 = pnand %p122, %p123
      %p125 = pneg %p124
      // Predicated region
      $region9: #{tpu_custom_call.1} parent=5 // pred_check
        _
      $region10: #{tpu_custom_call.1} parent=5 // pred_check_branch
        %127 = sbr.rel (%p124) target = $region12
      $region11: #{tpu_custom_call.1} parent=5 // pred_region
        %s128 = ssub.s32 %s13, 1
        // Predicated region
        $region13: #{tpu_custom_call.1} parent=11 // pred_check
          %p129 = pneg %p58
        $region14: #{tpu_custom_call.1} parent=11 // pred_check_branch
          %131 = sbr.rel (%p129) target = $region16
        $region15: #{tpu_custom_call.1} parent=11 // pred_region
          %133 = vsyncadd [#allocation5], 0
          %s134 = smul.addr %s25, 4
          %s135 = scalar_lea.hbm %s1, %s134
          %s136 = sshll.u32 %s135, 4
          %s137 = int_to_ptr.hbm [resolvable:$true] %s136
          %s138 = sshll.u32 [#allocation4], 4
          %s139 = int_to_ptr.vmem [resolvable:$true] %s138
          %144 = dma.hbm_to_vmem [thread:$0]  %s137, 9216, %s139, [#allocation5], 64, 64, 4
        $region16: #{tpu_custom_call.1} parent=11 // pred_fallthru
          _
        // Predicated region
        $region17: #{tpu_custom_call.1} parent=11 // pred_check
          %p145 = pneg %p84
        $region18: #{tpu_custom_call.1} parent=11 // pred_check_branch
          %147 = sbr.rel (%p145) target = $region20
        $region19: #{tpu_custom_call.1} parent=11 // pred_region
          %p148 = scmp.lt.s32.totalorder %s25, 0
          %s149 = scalar_select %p148, %s25, 0
          %s150 = scalar_lea.vmem %s2, %s149
        $region20: #{tpu_custom_call.1} parent=11 // pred_fallthru
          _
      $region12: #{tpu_custom_call.1} parent=5 // pred_fallthru
        _
      %p151 = scmp.lt.s32.totalorder %s13, 2
      // Predicated region
      $region21: #{tpu_custom_call.1} parent=5 // pred_check
        %p152 = pneg %p151
      $region22: #{tpu_custom_call.1} parent=5 // pred_check_branch
        %154 = sbr.rel (%p152) target = $region24
      $region23: #{tpu_custom_call.1} parent=5 // pred_region
        _
      $region24: #{tpu_custom_call.1} parent=5 // pred_fallthru
        _
      %p155 = scmp.le.s32.totalorder 1, %s13
      %p156 = scmp.lt.s32.totalorder %s13, 3
      %p157 = pnand %p155, %p156
      %p158 = pneg %p157
      // Predicated region
      $region25: #{tpu_custom_call.1} parent=5 // pred_check
        _
      $region26: #{tpu_custom_call.1} parent=5 // pred_check_branch
        %160 = sbr.rel (%p157) target = $region28
      $region27: #{tpu_custom_call.1} parent=5 // pred_region
        %s161 = ssub.s32 %s13, 1
        // Predicated region
        $region29: #{tpu_custom_call.1} parent=27 // pred_check
          %p162 = pneg %p58
        $region30: #{tpu_custom_call.1} parent=27 // pred_check_branch
          %164 = sbr.rel (%p162) target = $region32
        $region31: #{tpu_custom_call.1} parent=27 // pred_region
          %166 = dma.done [#allocation5], 9216
        $region32: #{tpu_custom_call.1} parent=27 // pred_fallthru
          _
        %p167 = pneg %p58
        %p168 = pneg %p55
        %p169 = scmp.lt.s32.totalorder %s25, 0
        %s170 = scalar_select %p169, %s25, 0
        %s171 = scalar_lea.vmem %s2, %s170
        %p172 = pneg %p84
        %p173 = pneg %p81
        %p174 = pneg %p114
        %p175 = pneg %p111
        %s176 = sand.u32 %s101, 1
        %s177 = scalar_lea.sflag [#allocation6], %s176
        %s178 = sand.u32 %s101, 1
        %s179 = smul.addr %s178, 256
        %s180 = scalar_lea.vmem [#allocation7], %s179
        %p181 = scmp.lt.s32.totalorder %s25, 0
        %s182 = scalar_select %p181, %s25, 0
        %s183 = scalar_lea.vmem %s2, %s182
        %s184 = smul.u32 16, %s24
        %p186 = scmp.lt.s32.totalorder %s24, 0
        %s187 = ssub.s32 0, %s24
        %s188 = scalar_select %p186, %s187, %s24
        %s189 = sand.u32 %s188, 1
        %s190 = ssub.s32 0, %s189
        %s191 = scalar_select %p186, %s190, %s189
        %p192 = scmp.eq.s32.totalorder %s25, 0
        // Predicated region
        $region33: #{tpu_custom_call.1} parent=27 // pred_check
          %p193 = pneg %p192
        $region34: #{tpu_custom_call.1} parent=27 // pred_check_branch
          %195 = sbr.rel (%p193) target = $region36
        $region35: #{tpu_custom_call.1} parent=27 // pred_region
          %p196 = scmp.eq.s32.totalorder %s24, 0
          // Predicated region
          $region37: #{tpu_custom_call.1} parent=35 // pred_check
            %p197 = pneg %p196
          $region38: #{tpu_custom_call.1} parent=35 // pred_check_branch
            %199 = sbr.rel (%p197) target = $region40
          $region39: #{tpu_custom_call.1} parent=35 // pred_region
            %200 = vst [vmem:[#allocation2 + $0x120] sm:$0xf] 0
            %201 = vst [vmem:[#allocation2 + $0x124] sm:$0xf] 0
            %202 = vst [vmem:[#allocation2 + $0x128] sm:$0xf] 0
            %203 = vst [vmem:[#allocation2 + $0x12c] sm:$0xf] 0
            %s204 = scalar_lea.vmem [#allocation2], 304
            %205 = vst [vmem:[%s204 + $0x120] sm:$0xf] 0
            %206 = vst [vmem:[%s204 + $0x124] sm:$0xf] 0
            %207 = vst [vmem:[%s204 + $0x128] sm:$0xf] 0
            %208 = vst [vmem:[%s204 + $0x12c] sm:$0xf] 0
            %s209 = smul.u32 %s23, 72
            %s210 = smul.addr %s209, 4
            %s211 = scalar_lea.hbm %s0, %s210
            // Predicated region
            $region41: #{tpu_custom_call.1} parent=39 // pred_check
              _
            $region42: #{tpu_custom_call.1} parent=39 // pred_check_branch
              %213 = sbr.rel target = $region44
            $region43: #{tpu_custom_call.1} parent=39 // pred_region
              %214 = sst [smem:[#allocation10]] [#allocation9]
              %215 = sst [smem:[#allocation11]] [#allocation8]
            $region44: #{tpu_custom_call.1} parent=39 // pred_fallthru
              _
            %217 = shalt.err (0)
            %s219 = sshll.u32 %s211, 4
            %s220 = int_to_ptr.hbm [resolvable:$true] %s219
            %s221 = sshll.u32 [#allocation2], 4
            %s222 = int_to_ptr.vmem [resolvable:$true] %s221
            %224 = dma.hbm_to_vmem [thread:$0]  %s220, 4608, %s222, [#allocation3]
          $region40: #{tpu_custom_call.1} parent=35 // pred_fallthru
            _
          %s225 = scalar_lea.sflag [#allocation3], %s191
          %s226 = smul.u32 4, 72
          %s227 = smul.u32 %s226, 1
          %s228 = sshll.u32 %s227, 4
          %229 = dma.done %s225, %s228
          %s230 = sadd.s32 %s24, 1
          %p231 = scmp.lt.s32.totalorder %s230, 1
          // Predicated region
          $region45: #{tpu_custom_call.1} parent=35 // pred_check
            %p232 = pneg %p231
          $region46: #{tpu_custom_call.1} parent=35 // pred_check_branch
            %234 = sbr.rel (%p232) target = $region48
          $region47: #{tpu_custom_call.1} parent=35 // pred_region
            %s235 = ssub.s32 1, %s191
            %s236 = smul.u32 %s230, 512
            %s237 = sshra.s32 %s236, 3
            %s238 = sand.u32 %s236, 7
            %s239 = smul.u32 %s23, 72
            %s240 = sadd.s32 %s237, %s239
            %s241 = smul.addr %s240, 4
            %s242 = scalar_lea.hbm %s0, %s241
            %s243 = smul.u32 %s235, 76
            %s244 = smul.addr %s243, 4
            %s245 = scalar_lea.vmem [#allocation2], %s244
            %s246 = scalar_lea.sflag [#allocation3], %s235
            // Predicated region
            $region49: #{tpu_custom_call.1} parent=47 // pred_check
              _
            $region50: #{tpu_custom_call.1} parent=47 // pred_check_branch
              %248 = sbr.rel target = $region52
            $region51: #{tpu_custom_call.1} parent=47 // pred_region
              %249 = sst [smem:[#allocation10]] [#allocation13]
              %250 = sst [smem:[#allocation11]] [#allocation12]
            $region52: #{tpu_custom_call.1} parent=47 // pred_fallthru
              _
            %252 = shalt.err (0)
            %s254 = sshll.u32 %s242, 4
            %s255 = int_to_ptr.hbm [resolvable:$true] %s254
            %s256 = sshll.u32 %s245, 4
            %s257 = int_to_ptr.vmem [resolvable:$true] %s256
            %259 = dma.hbm_to_vmem [thread:$0]  %s255, 4608, %s257, %s246
          $region48: #{tpu_custom_call.1} parent=35 // pred_fallthru
            _
        $region36: #{tpu_custom_call.1} parent=27 // pred_fallthru
          _
        %s260 = smul.u32 %s191, 76
        %s261 = smul.addr %s260, 4
        %s262 = scalar_lea.vmem [#allocation2], %s261
        %v263 = vld [vmem:[%s262] sm:$0xf]
        %v264 = vld [vmem:[%s262 + $0x4] sm:$0xf]
        %v265 = vld [vmem:[%s262 + $0x8] sm:$0xf]
        %v266 = vld [vmem:[%s262 + $0xc] sm:$0xf]
        %v267 = vld [vmem:[%s262 + $0x10] sm:$0xf]
        %v268 = vld [vmem:[%s262 + $0x14] sm:$0xf]
        %v269 = vld [vmem:[%s262 + $0x18] sm:$0xf]
        %v270 = vld [vmem:[%s262 + $0x1c] sm:$0xf]
        %v271 = vld [vmem:[%s262 + $0x20] sm:$0xf]
        %v272 = vld [vmem:[%s262 + $0x24] sm:$0xf]
        %v273 = vld [vmem:[%s262 + $0x28] sm:$0xf]
        %v274 = vld [vmem:[%s262 + $0x2c] sm:$0xf]
        %v275 = vld [vmem:[%s262 + $0x30] sm:$0xf]
        %v276 = vld [vmem:[%s262 + $0x34] sm:$0xf]
        %v277 = vld [vmem:[%s262 + $0x38] sm:$0xf]
        %v278 = vld [vmem:[%s262 + $0x3c] sm:$0xf]
        %v279 = vld [vmem:[%s262 + $0x40] sm:$0xf]
        %v280 = vld [vmem:[%s262 + $0x44] sm:$0xf]
        %v281 = vld [vmem:[%s262 + $0x48] sm:$0xf]
        %v282 = vld [vmem:[%s262 + $0x4c] sm:$0xf]
        %v283 = vld [vmem:[%s262 + $0x50] sm:$0xf]
        %v284 = vld [vmem:[%s262 + $0x54] sm:$0xf]
        %v285 = vld [vmem:[%s262 + $0x58] sm:$0xf]
        %v286 = vld [vmem:[%s262 + $0x5c] sm:$0xf]
        %v287 = vld [vmem:[%s262 + $0x60] sm:$0xf]
        %v288 = vld [vmem:[%s262 + $0x64] sm:$0xf]
        %v289 = vld [vmem:[%s262 + $0x68] sm:$0xf]
        %v290 = vld [vmem:[%s262 + $0x6c] sm:$0xf]
        %v291 = vld [vmem:[%s262 + $0x70] sm:$0xf]
        %v292 = vld [vmem:[%s262 + $0x74] sm:$0xf]
        %v293 = vld [vmem:[%s262 + $0x78] sm:$0xf]
        %v294 = vld [vmem:[%s262 + $0x7c] sm:$0xf]
        %v295 = vld [vmem:[%s262 + $0x80] sm:$0xf]
        %v296 = vld [vmem:[%s262 + $0x84] sm:$0xf]
        %v297 = vld [vmem:[%s262 + $0x88] sm:$0xf]
        %v298 = vld [vmem:[%s262 + $0x8c] sm:$0xf]
        %v299 = vld [vmem:[%s262 + $0x90] sm:$0xf]
        %v300 = vld [vmem:[%s262 + $0x94] sm:$0xf]
        %v301 = vld [vmem:[%s262 + $0x98] sm:$0xf]
        %v302 = vld [vmem:[%s262 + $0x9c] sm:$0xf]
        %v303 = vld [vmem:[%s262 + $0xa0] sm:$0xf]
        %v304 = vld [vmem:[%s262 + $0xa4] sm:$0xf]
        %v305 = vld [vmem:[%s262 + $0xa8] sm:$0xf]
        %v306 = vld [vmem:[%s262 + $0xac] sm:$0xf]
        %v307 = vld [vmem:[%s262 + $0xb0] sm:$0xf]
        %v308 = vld [vmem:[%s262 + $0xb4] sm:$0xf]
        %v309 = vld [vmem:[%s262 + $0xb8] sm:$0xf]
        %v310 = vld [vmem:[%s262 + $0xbc] sm:$0xf]
        %v311 = vld [vmem:[%s262 + $0xc0] sm:$0xf]
        %v312 = vld [vmem:[%s262 + $0xc4] sm:$0xf]
        %v313 = vld [vmem:[%s262 + $0xc8] sm:$0xf]
        %v314 = vld [vmem:[%s262 + $0xcc] sm:$0xf]
        %v315 = vld [vmem:[%s262 + $0xd0] sm:$0xf]
        %v316 = vld [vmem:[%s262 + $0xd4] sm:$0xf]
        %v317 = vld [vmem:[%s262 + $0xd8] sm:$0xf]
        %v318 = vld [vmem:[%s262 + $0xdc] sm:$0xf]
        %v319 = vld [vmem:[%s262 + $0xe0] sm:$0xf]
        %v320 = vld [vmem:[%s262 + $0xe4] sm:$0xf]
        %v321 = vld [vmem:[%s262 + $0xe8] sm:$0xf]
        %v322 = vld [vmem:[%s262 + $0xec] sm:$0xf]
        %v323 = vld [vmem:[%s262 + $0xf0] sm:$0xf]
        %v324 = vld [vmem:[%s262 + $0xf4] sm:$0xf]
        %v325 = vld [vmem:[%s262 + $0xf8] sm:$0xf]
        %v326 = vld [vmem:[%s262 + $0xfc] sm:$0xf]
        %v327 = vld [vmem:[%s262 + $0x100] sm:$0xf]
        %v328 = vld [vmem:[%s262 + $0x104] sm:$0xf]
        %v329 = vld [vmem:[%s262 + $0x108] sm:$0xf]
        %v330 = vld [vmem:[%s262 + $0x10c] sm:$0xf]
        %v331 = vld [vmem:[%s262 + $0x110] sm:$0xf]
        %v332 = vld [vmem:[%s262 + $0x114] sm:$0xf]
        %v333 = vld [vmem:[%s262 + $0x118] sm:$0xf]
        %v334 = vld [vmem:[%s262 + $0x11c] sm:$0xf]
        %v335 = vld [vmem:[#allocation4] sm:$0xf]
        %v336 = vld [vmem:[#allocation4 + $0x4] sm:$0xf]
        %v337 = vld [vmem:[#allocation4 + $0x8] sm:$0xf]
        %v338 = vld [vmem:[#allocation4 + $0xc] sm:$0xf]
        %v339 = vld [vmem:[#allocation4 + $0x10] sm:$0xf]
        %v340 = vld [vmem:[#allocation4 + $0x14] sm:$0xf]
        %v341 = vld [vmem:[#allocation4 + $0x18] sm:$0xf]
        %v342 = vld [vmem:[#allocation4 + $0x1c] sm:$0xf]
        %v343 = vld [vmem:[#allocation4 + $0x20] sm:$0xf]
        %v344 = vld [vmem:[#allocation4 + $0x24] sm:$0xf]
        %v345 = vld [vmem:[#allocation4 + $0x28] sm:$0xf]
        %v346 = vld [vmem:[#allocation4 + $0x2c] sm:$0xf]
        %v347 = vld [vmem:[#allocation4 + $0x30] sm:$0xf]
        %v348 = vld [vmem:[#allocation4 + $0x34] sm:$0xf]
        %v349 = vld [vmem:[#allocation4 + $0x38] sm:$0xf]
        %v350 = vld [vmem:[#allocation4 + $0x3c] sm:$0xf]
        %s351 = scalar_lea.vmem [#allocation4], 192
        %v352 = vld [vmem:[%s351] sm:$0xf]
        %v353 = vld [vmem:[%s351 + $0x4] sm:$0xf]
        %v354 = vld [vmem:[%s351 + $0x8] sm:$0xf]
        %v355 = vld [vmem:[%s351 + $0xc] sm:$0xf]
        %v356 = vld [vmem:[%s351 + $0x10] sm:$0xf]
        %v357 = vld [vmem:[%s351 + $0x14] sm:$0xf]
        %v358 = vld [vmem:[%s351 + $0x18] sm:$0xf]
        %v359 = vld [vmem:[%s351 + $0x1c] sm:$0xf]
        %v360 = vld [vmem:[%s351 + $0x20] sm:$0xf]
        %v361 = vld [vmem:[%s351 + $0x24] sm:$0xf]
        %v362 = vld [vmem:[%s351 + $0x28] sm:$0xf]
        %v363 = vld [vmem:[%s351 + $0x2c] sm:$0xf]
        %v364 = vld [vmem:[%s351 + $0x30] sm:$0xf]
        %v365 = vld [vmem:[%s351 + $0x34] sm:$0xf]
        %v366 = vld [vmem:[%s351 + $0x38] sm:$0xf]
        %v367 = vld [vmem:[%s351 + $0x3c] sm:$0xf]
        %v432 = vunpack.c.l.b16 %v267
        %v433 = vunpack.c.l.b16 %v268
        %v434 = vunpack.c.l.b16 %v269
        %v435 = vunpack.c.l.b16 %v270
        %v436 = vunpack.c.l.b16 %v271
        %v437 = vunpack.c.l.b16 %v272
        %v438 = vunpack.c.l.b16 %v273
        %v439 = vunpack.c.l.b16 %v274
        %v440 = vunpack.c.l.b16 %v275
        %v441 = vunpack.c.l.b16 %v276
        %v442 = vunpack.c.l.b16 %v277
        %v443 = vunpack.c.l.b16 %v278
        %v444 = vunpack.c.l.b16 %v279
        %v445 = vunpack.c.l.b16 %v280
        %v446 = vunpack.c.l.b16 %v281
        %v447 = vunpack.c.l.b16 %v282
        %v448 = vunpack.c.l.b16 %v283
        %v449 = vunpack.c.l.b16 %v284
        %v450 = vunpack.c.l.b16 %v285
        %v451 = vunpack.c.l.b16 %v286
        %v452 = vunpack.c.l.b16 %v287
        %v453 = vunpack.c.l.b16 %v288
        %v454 = vunpack.c.l.b16 %v289
        %v455 = vunpack.c.l.b16 %v290
        %v456 = vunpack.c.l.b16 %v291
        %v457 = vunpack.c.l.b16 %v292
        %v458 = vunpack.c.l.b16 %v293
        %v459 = vunpack.c.l.b16 %v294
        %v460 = vunpack.c.l.b16 %v295
        %v461 = vunpack.c.l.b16 %v296
        %v462 = vunpack.c.l.b16 %v297
        %v463 = vunpack.c.l.b16 %v298
        %v464 = vunpack.c.l.b16 %v299
        %v465 = vunpack.c.l.b16 %v300
        %v466 = vunpack.c.l.b16 %v301
        %v467 = vunpack.c.l.b16 %v302
        %v468 = vunpack.c.l.b16 %v303
        %v469 = vunpack.c.l.b16 %v304
        %v470 = vunpack.c.l.b16 %v305
        %v471 = vunpack.c.l.b16 %v306
        %v472 = vunpack.c.l.b16 %v307
        %v473 = vunpack.c.l.b16 %v308
        %v474 = vunpack.c.l.b16 %v309
        %v475 = vunpack.c.l.b16 %v310
        %v476 = vunpack.c.l.b16 %v311
        %v477 = vunpack.c.l.b16 %v312
        %v478 = vunpack.c.l.b16 %v313
        %v479 = vunpack.c.l.b16 %v314
        %v480 = vunpack.c.l.b16 %v315
        %v481 = vunpack.c.l.b16 %v316
        %v482 = vunpack.c.l.b16 %v317
        %v483 = vunpack.c.l.b16 %v318
        %v484 = vunpack.c.l.b16 %v319
        %v485 = vunpack.c.l.b16 %v320
        %v486 = vunpack.c.l.b16 %v321
        %v487 = vunpack.c.l.b16 %v322
        %v488 = vunpack.c.l.b16 %v323
        %v489 = vunpack.c.l.b16 %v324
        %v490 = vunpack.c.l.b16 %v325
        %v491 = vunpack.c.l.b16 %v326
        %v492 = vunpack.c.l.b16 %v327
        %v493 = vunpack.c.l.b16 %v328
        %v494 = vunpack.c.l.b16 %v329
        %v495 = vunpack.c.l.b16 %v330
        %v496 = vpack.c.b16 %v433, %v432
        %v497 = vpack.c.b16 %v435, %v434
        %v498 = vpack.c.b16 %v437, %v436
        %v499 = vpack.c.b16 %v439, %v438
        %v500 = vpack.c.b16 %v441, %v440
        %v501 = vpack.c.b16 %v443, %v442
        %v502 = vpack.c.b16 %v445, %v444
        %v503 = vpack.c.b16 %v447, %v446
        %v504 = vpack.c.b16 %v449, %v448
        %v505 = vpack.c.b16 %v451, %v450
        %v506 = vpack.c.b16 %v453, %v452
        %v507 = vpack.c.b16 %v455, %v454
        %v508 = vpack.c.b16 %v457, %v456
        %v509 = vpack.c.b16 %v459, %v458
        %v510 = vpack.c.b16 %v461, %v460
        %v511 = vpack.c.b16 %v463, %v462
        %v512 = vpack.c.b16 %v465, %v464
        %v513 = vpack.c.b16 %v467, %v466
        %v514 = vpack.c.b16 %v469, %v468
        %v515 = vpack.c.b16 %v471, %v470
        %v516 = vpack.c.b16 %v473, %v472
        %v517 = vpack.c.b16 %v475, %v474
        %v518 = vpack.c.b16 %v477, %v476
        %v519 = vpack.c.b16 %v479, %v478
        %v520 = vpack.c.b16 %v481, %v480
        %v521 = vpack.c.b16 %v483, %v482
        %v522 = vpack.c.b16 %v485, %v484
        %v523 = vpack.c.b16 %v487, %v486
        %v524 = vpack.c.b16 %v489, %v488
        %v525 = vpack.c.b16 %v491, %v490
        %v526 = vpack.c.b16 %v493, %v492
        %v527 = vpack.c.b16 %v495, %v494
        %v576 = vunpack.c.l.b16 %v352
        %v577 = vunpack.c.l.b16 %v353
        %v578 = vunpack.c.l.b16 %v354
        %v579 = vunpack.c.l.b16 %v355
        %v580 = vunpack.c.l.b16 %v356
        %v581 = vunpack.c.l.b16 %v357
        %v582 = vunpack.c.l.b16 %v358
        %v583 = vunpack.c.l.b16 %v359
        %v584 = vunpack.c.l.b16 %v360
        %v585 = vunpack.c.l.b16 %v361
        %v586 = vunpack.c.l.b16 %v362
        %v587 = vunpack.c.l.b16 %v363
        %v588 = vunpack.c.l.b16 %v364
        %v589 = vunpack.c.l.b16 %v365
        %v590 = vunpack.c.l.b16 %v366
        %v591 = vunpack.c.l.b16 %v367
        %v592 = vpack.c.b16 %v577, %v576
        %v593 = vpack.c.b16 %v579, %v578
        %v594 = vpack.c.b16 %v581, %v580
        %v595 = vpack.c.b16 %v583, %v582
        %v596 = vpack.c.b16 %v585, %v584
        %v597 = vpack.c.b16 %v587, %v586
        %v598 = vpack.c.b16 %v589, %v588
        %v599 = vpack.c.b16 %v591, %v590
        %608 = vmatpush.bf16.msra.mxu0 %v599
        %609 = vmatpush.bf16.msra.mxu0 %v598
        %610 = vmatpush.bf16.msra.mxu0 %v597
        %611 = vmatpush.bf16.msra.mxu0 %v596
        %612 = vmatpush.bf16.msra.mxu0 %v595
        %613 = vmatpush.bf16.msra.mxu0 %v594
        %614 = vmatpush.bf16.msra.mxu0 %v593
        %615 = vmatpush.bf16.msra.mxu0 %v592
        %616 = vmatmul.bf16.gmra.mxu0 %v496
        %v617 = vpop.f32.mrf.mxu0
        %v618 = vadd.f32 0.0, %v617
        %v619 = vpop.f32.mrf.mxu0
        %v620 = vadd.f32 0.0, %v619
        %621 = vmatmul.bf16.gmra.mxu0 %v497
        %v622 = vpop.f32.mrf.mxu0
        %v623 = vpop.f32.mrf.mxu0
        %624 = vmatmul.bf16.gmra.mxu0 %v498
        %v625 = vpop.f32.mrf.mxu0
        %v626 = vadd.f32 0.0, %v625
        %v627 = vpop.f32.mrf.mxu0
        %v628 = vadd.f32 0.0, %v627
        %629 = vmatmul.bf16.gmra.mxu0 %v499
        %v630 = vpop.f32.mrf.mxu0
        %v631 = vpop.f32.mrf.mxu0
        %632 = vmatmul.bf16.gmra.mxu0 %v500
        %v633 = vpop.f32.mrf.mxu0
        %v634 = vadd.f32 0.0, %v633
        %v635 = vpop.f32.mrf.mxu0
        %v636 = vadd.f32 0.0, %v635
        %637 = vmatmul.bf16.gmra.mxu0 %v501
        %v638 = vpop.f32.mrf.mxu0
        %v639 = vpop.f32.mrf.mxu0
        %640 = vmatmul.bf16.gmra.mxu0 %v502
        %v641 = vpop.f32.mrf.mxu0
        %v642 = vadd.f32 0.0, %v641
        %v643 = vpop.f32.mrf.mxu0
        %v644 = vadd.f32 0.0, %v643
        %645 = vmatmul.bf16.gmra.mxu0 %v503
        %v646 = vpop.f32.mrf.mxu0
        %v647 = vpop.f32.mrf.mxu0
        %648 = vmatmul.bf16.gmra.mxu0 %v504
        %v649 = vpop.f32.mrf.mxu0
        %v650 = vadd.f32 0.0, %v649
        %v651 = vpop.f32.mrf.mxu0
        %v652 = vadd.f32 0.0, %v651
        %653 = vmatmul.bf16.gmra.mxu0 %v505
        %v654 = vpop.f32.mrf.mxu0
        %v655 = vpop.f32.mrf.mxu0
        %656 = vmatmul.bf16.gmra.mxu0 %v506
        %v657 = vpop.f32.mrf.mxu0
        %v658 = vadd.f32 0.0, %v657
        %v659 = vpop.f32.mrf.mxu0
        %v660 = vadd.f32 0.0, %v659
        %661 = vmatmul.bf16.gmra.mxu0 %v507
        %v662 = vpop.f32.mrf.mxu0
        %v663 = vpop.f32.mrf.mxu0
        %664 = vmatmul.bf16.gmra.mxu0 %v508
        %v665 = vpop.f32.mrf.mxu0
        %v666 = vadd.f32 0.0, %v665
        %v667 = vpop.f32.mrf.mxu0
        %v668 = vadd.f32 0.0, %v667
        %669 = vmatmul.bf16.gmra.mxu0 %v509
        %v670 = vpop.f32.mrf.mxu0
        %v671 = vpop.f32.mrf.mxu0
        %672 = vmatmul.bf16.gmra.mxu0 %v510
        %v673 = vpop.f32.mrf.mxu0
        %v674 = vadd.f32 0.0, %v673
        %v675 = vpop.f32.mrf.mxu0
        %v676 = vadd.f32 0.0, %v675
        %677 = vmatmul.bf16.gmra.mxu0 %v511
        %v678 = vpop.f32.mrf.mxu0
        %v679 = vpop.f32.mrf.mxu0
        %680 = vmatmul.bf16.gmra.mxu0 %v512
        %v681 = vpop.f32.mrf.mxu0
        %v682 = vadd.f32 0.0, %v681
        %v683 = vpop.f32.mrf.mxu0
        %v684 = vadd.f32 0.0, %v683
        %685 = vmatmul.bf16.gmra.mxu0 %v513
        %v686 = vpop.f32.mrf.mxu0
        %v687 = vpop.f32.mrf.mxu0
        %688 = vmatmul.bf16.gmra.mxu0 %v514
        %v689 = vpop.f32.mrf.mxu0
        %v690 = vadd.f32 0.0, %v689
        %v691 = vpop.f32.mrf.mxu0
        %v692 = vadd.f32 0.0, %v691
        %693 = vmatmul.bf16.gmra.mxu0 %v515
        %v694 = vpop.f32.mrf.mxu0
        %v695 = vpop.f32.mrf.mxu0
        %696 = vmatmul.bf16.gmra.mxu0 %v516
        %v697 = vpop.f32.mrf.mxu0
        %v698 = vadd.f32 0.0, %v697
        %v699 = vpop.f32.mrf.mxu0
        %v700 = vadd.f32 0.0, %v699
        %701 = vmatmul.bf16.gmra.mxu0 %v517
        %v702 = vpop.f32.mrf.mxu0
        %v703 = vpop.f32.mrf.mxu0
        %704 = vmatmul.bf16.gmra.mxu0 %v518
        %v705 = vpop.f32.mrf.mxu0
        %v706 = vadd.f32 0.0, %v705
        %v707 = vpop.f32.mrf.mxu0
        %v708 = vadd.f32 0.0, %v707
        %709 = vmatmul.bf16.gmra.mxu0 %v519
        %v710 = vpop.f32.mrf.mxu0
        %v711 = vpop.f32.mrf.mxu0
        %712 = vmatmul.bf16.gmra.mxu0 %v520
        %v713 = vpop.f32.mrf.mxu0
        %v714 = vadd.f32 0.0, %v713
        %v715 = vpop.f32.mrf.mxu0
        %v716 = vadd.f32 0.0, %v715
        %717 = vmatmul.bf16.gmra.mxu0 %v521
        %v718 = vpop.f32.mrf.mxu0
        %v719 = vpop.f32.mrf.mxu0
        %720 = vmatmul.bf16.gmra.mxu0 %v522
        %v721 = vpop.f32.mrf.mxu0
        %v722 = vadd.f32 0.0, %v721
        %v723 = vpop.f32.mrf.mxu0
        %v724 = vadd.f32 0.0, %v723
        %725 = vmatmul.bf16.gmra.mxu0 %v523
        %v726 = vpop.f32.mrf.mxu0
        %v727 = vpop.f32.mrf.mxu0
        %728 = vmatmul.bf16.gmra.mxu0 %v524
        %v729 = vpop.f32.mrf.mxu0
        %v730 = vadd.f32 0.0, %v729
        %v731 = vpop.f32.mrf.mxu0
        %v732 = vadd.f32 0.0, %v731
        %733 = vmatmul.bf16.gmra.mxu0 %v525
        %v734 = vpop.f32.mrf.mxu0
        %v735 = vpop.f32.mrf.mxu0
        %736 = vmatmul.bf16.gmra.mxu0 %v526
        %v737 = vpop.f32.mrf.mxu0
        %v738 = vadd.f32 0.0, %v737
        %v739 = vpop.f32.mrf.mxu0
        %v740 = vadd.f32 0.0, %v739
        %741 = vmatmul.bf16.gmra.mxu0 %v527
        %v742 = vpop.f32.mrf.mxu0
        %v743 = vpop.f32.mrf.mxu0
        %744 = vdwg.mxu0
        %v749 = vunpack.c.l.b16 %v263
        %v750 = vunpack.c.l.b16 %v264
        %v751 = vunpack.c.l.b16 %v265
        %v752 = vunpack.c.l.b16 %v266
        %v753 = vpack.c.b16 %v750, %v749
        %v754 = vpack.c.b16 %v752, %v751
        %v773 = vunpack.c.l.b16 %v335
        %v774 = vunpack.c.l.b16 %v336
        %v775 = vunpack.c.l.b16 %v337
        %v776 = vunpack.c.l.b16 %v338
        %v777 = vunpack.c.l.b16 %v339
        %v778 = vunpack.c.l.b16 %v340
        %v779 = vunpack.c.l.b16 %v341
        %v780 = vunpack.c.l.b16 %v342
        %v781 = vunpack.c.l.b16 %v343
        %v782 = vunpack.c.l.b16 %v344
        %v783 = vunpack.c.l.b16 %v345
        %v784 = vunpack.c.l.b16 %v346
        %v785 = vunpack.c.l.b16 %v347
        %v786 = vunpack.c.l.b16 %v348
        %v787 = vunpack.c.l.b16 %v349
        %v788 = vunpack.c.l.b16 %v350
        %v789 = vpack.c.b16 %v774, %v773
        %v790 = vpack.c.b16 %v776, %v775
        %v791 = vpack.c.b16 %v778, %v777
        %v792 = vpack.c.b16 %v780, %v779
        %v793 = vpack.c.b16 %v782, %v781
        %v794 = vpack.c.b16 %v784, %v783
        %v795 = vpack.c.b16 %v786, %v785
        %v796 = vpack.c.b16 %v788, %v787
        %805 = vmatpush.bf16.msra.mxu0 %v796
        %806 = vmatpush.bf16.msra.mxu0 %v795
        %807 = vmatpush.bf16.msra.mxu0 %v794
        %808 = vmatpush.bf16.msra.mxu0 %v793
        %809 = vmatpush.bf16.msra.mxu0 %v792
        %810 = vmatpush.bf16.msra.mxu0 %v791
        %811 = vmatpush.bf16.msra.mxu0 %v790
        %812 = vmatpush.bf16.msra.mxu0 %v789
        %813 = vmatmul.bf16.gmra.mxu0 %v753
        %v814 = vpop.f32.mrf.mxu0
        %v815 = vadd.f32 %v618, %v814
        %v816 = vpop.f32.mrf.mxu0
        %v817 = vadd.f32 %v620, %v816
        %818 = vmatmul.bf16.gmra.mxu0 %v754
        %v819 = vpop.f32.mrf.mxu0
        %v820 = vpop.f32.mrf.mxu0
        %821 = vmatmul.bf16.gmra.mxu0 %v496
        %v822 = vpop.f32.mrf.mxu0
        %v823 = vadd.f32 %v626, %v822
        %v824 = vpop.f32.mrf.mxu0
        %v825 = vadd.f32 %v628, %v824
        %826 = vmatmul.bf16.gmra.mxu0 %v497
        %v827 = vpop.f32.mrf.mxu0
        %v828 = vpop.f32.mrf.mxu0
        %829 = vmatmul.bf16.gmra.mxu0 %v498
        %v830 = vpop.f32.mrf.mxu0
        %v831 = vadd.f32 %v634, %v830
        %v832 = vpop.f32.mrf.mxu0
        %v833 = vadd.f32 %v636, %v832
        %834 = vmatmul.bf16.gmra.mxu0 %v499
        %v835 = vpop.f32.mrf.mxu0
        %v836 = vpop.f32.mrf.mxu0
        %837 = vmatmul.bf16.gmra.mxu0 %v500
        %v838 = vpop.f32.mrf.mxu0
        %v839 = vadd.f32 %v642, %v838
        %v840 = vpop.f32.mrf.mxu0
        %v841 = vadd.f32 %v644, %v840
        %842 = vmatmul.bf16.gmra.mxu0 %v501
        %v843 = vpop.f32.mrf.mxu0
        %v844 = vpop.f32.mrf.mxu0
        %845 = vmatmul.bf16.gmra.mxu0 %v502
        %v846 = vpop.f32.mrf.mxu0
        %v847 = vadd.f32 %v650, %v846
        %v848 = vpop.f32.mrf.mxu0
        %v849 = vadd.f32 %v652, %v848
        %850 = vmatmul.bf16.gmra.mxu0 %v503
        %v851 = vpop.f32.mrf.mxu0
        %v852 = vpop.f32.mrf.mxu0
        %853 = vmatmul.bf16.gmra.mxu0 %v504
        %v854 = vpop.f32.mrf.mxu0
        %v855 = vadd.f32 %v658, %v854
        %v856 = vpop.f32.mrf.mxu0
        %v857 = vadd.f32 %v660, %v856
        %858 = vmatmul.bf16.gmra.mxu0 %v505
        %v859 = vpop.f32.mrf.mxu0
        %v860 = vpop.f32.mrf.mxu0
        %861 = vmatmul.bf16.gmra.mxu0 %v506
        %v862 = vpop.f32.mrf.mxu0
        %v863 = vadd.f32 %v666, %v862
        %v864 = vpop.f32.mrf.mxu0
        %v865 = vadd.f32 %v668, %v864
        %866 = vmatmul.bf16.gmra.mxu0 %v507
        %v867 = vpop.f32.mrf.mxu0
        %v868 = vpop.f32.mrf.mxu0
        %869 = vmatmul.bf16.gmra.mxu0 %v508
        %v870 = vpop.f32.mrf.mxu0
        %v871 = vadd.f32 %v674, %v870
        %v872 = vpop.f32.mrf.mxu0
        %v873 = vadd.f32 %v676, %v872
        %874 = vmatmul.bf16.gmra.mxu0 %v509
        %v875 = vpop.f32.mrf.mxu0
        %v876 = vpop.f32.mrf.mxu0
        %877 = vmatmul.bf16.gmra.mxu0 %v510
        %v878 = vpop.f32.mrf.mxu0
        %v879 = vadd.f32 %v682, %v878
        %v880 = vpop.f32.mrf.mxu0
        %v881 = vadd.f32 %v684, %v880
        %882 = vmatmul.bf16.gmra.mxu0 %v511
        %v883 = vpop.f32.mrf.mxu0
        %v884 = vpop.f32.mrf.mxu0
        %885 = vmatmul.bf16.gmra.mxu0 %v512
        %v886 = vpop.f32.mrf.mxu0
        %v887 = vadd.f32 %v690, %v886
        %v888 = vpop.f32.mrf.mxu0
        %v889 = vadd.f32 %v692, %v888
        %890 = vmatmul.bf16.gmra.mxu0 %v513
        %v891 = vpop.f32.mrf.mxu0
        %v892 = vpop.f32.mrf.mxu0
        %893 = vmatmul.bf16.gmra.mxu0 %v514
        %v894 = vpop.f32.mrf.mxu0
        %v895 = vadd.f32 %v698, %v894
        %v896 = vpop.f32.mrf.mxu0
        %v897 = vadd.f32 %v700, %v896
        %898 = vmatmul.bf16.gmra.mxu0 %v515
        %v899 = vpop.f32.mrf.mxu0
        %v900 = vpop.f32.mrf.mxu0
        %901 = vmatmul.bf16.gmra.mxu0 %v516
        %v902 = vpop.f32.mrf.mxu0
        %v903 = vadd.f32 %v706, %v902
        %v904 = vpop.f32.mrf.mxu0
        %v905 = vadd.f32 %v708, %v904
        %906 = vmatmul.bf16.gmra.mxu0 %v517
        %v907 = vpop.f32.mrf.mxu0
        %v908 = vpop.f32.mrf.mxu0
        %909 = vmatmul.bf16.gmra.mxu0 %v518
        %v910 = vpop.f32.mrf.mxu0
        %v911 = vadd.f32 %v714, %v910
        %v912 = vpop.f32.mrf.mxu0
        %v913 = vadd.f32 %v716, %v912
        %914 = vmatmul.bf16.gmra.mxu0 %v519
        %v915 = vpop.f32.mrf.mxu0
        %v916 = vpop.f32.mrf.mxu0
        %917 = vmatmul.bf16.gmra.mxu0 %v520
        %v918 = vpop.f32.mrf.mxu0
        %v919 = vadd.f32 %v722, %v918
        %v920 = vpop.f32.mrf.mxu0
        %v921 = vadd.f32 %v724, %v920
        %922 = vmatmul.bf16.gmra.mxu0 %v521
        %v923 = vpop.f32.mrf.mxu0
        %v924 = vpop.f32.mrf.mxu0
        %925 = vmatmul.bf16.gmra.mxu0 %v522
        %v926 = vpop.f32.mrf.mxu0
        %v927 = vadd.f32 %v730, %v926
        %v928 = vpop.f32.mrf.mxu0
        %v929 = vadd.f32 %v732, %v928
        %930 = vmatmul.bf16.gmra.mxu0 %v523
        %v931 = vpop.f32.mrf.mxu0
        %v932 = vpop.f32.mrf.mxu0
        %933 = vmatmul.bf16.gmra.mxu0 %v524
        %v934 = vpop.f32.mrf.mxu0
        %v935 = vadd.f32 %v738, %v934
        %v936 = vpop.f32.mrf.mxu0
        %v937 = vadd.f32 %v740, %v936
        %938 = vmatmul.bf16.gmra.mxu0 %v525
        %v939 = vpop.f32.mrf.mxu0
        %v940 = vpop.f32.mrf.mxu0
        %941 = vdwg.mxu0
        %s942 = scalar_lea.vmem [#allocation4], 384
        %v943 = vld [vmem:[%s942] sm:$0xf]
        %v944 = vld [vmem:[%s942 + $0x4] sm:$0xf]
        %v945 = vld [vmem:[%s942 + $0x8] sm:$0xf]
        %v946 = vld [vmem:[%s942 + $0xc] sm:$0xf]
        %v947 = vld [vmem:[%s942 + $0x10] sm:$0xf]
        %v948 = vld [vmem:[%s942 + $0x14] sm:$0xf]
        %v949 = vld [vmem:[%s942 + $0x18] sm:$0xf]
        %v950 = vld [vmem:[%s942 + $0x1c] sm:$0xf]
        %v951 = vld [vmem:[%s942 + $0x20] sm:$0xf]
        %v952 = vld [vmem:[%s942 + $0x24] sm:$0xf]
        %v953 = vld [vmem:[%s942 + $0x28] sm:$0xf]
        %v954 = vld [vmem:[%s942 + $0x2c] sm:$0xf]
        %v955 = vld [vmem:[%s942 + $0x30] sm:$0xf]
        %v956 = vld [vmem:[%s942 + $0x34] sm:$0xf]
        %v957 = vld [vmem:[%s942 + $0x38] sm:$0xf]
        %v958 = vld [vmem:[%s942 + $0x3c] sm:$0xf]
        %v963 = vunpack.c.l.b16 %v331
        %v964 = vunpack.c.l.b16 %v332
        %v965 = vunpack.c.l.b16 %v333
        %v966 = vunpack.c.l.b16 %v334
        %v967 = vpack.c.b16 %v964, %v963
        %v968 = vpack.c.b16 %v966, %v965
        %v987 = vunpack.c.l.b16 %v943
        %v988 = vunpack.c.l.b16 %v944
        %v989 = vunpack.c.l.b16 %v945
        %v990 = vunpack.c.l.b16 %v946
        %v991 = vunpack.c.l.b16 %v947
        %v992 = vunpack.c.l.b16 %v948
        %v993 = vunpack.c.l.b16 %v949
        %v994 = vunpack.c.l.b16 %v950
        %v995 = vunpack.c.l.b16 %v951
        %v996 = vunpack.c.l.b16 %v952
        %v997 = vunpack.c.l.b16 %v953
        %v998 = vunpack.c.l.b16 %v954
        %v999 = vunpack.c.l.b16 %v955
        %v1000 = vunpack.c.l.b16 %v956
        %v1001 = vunpack.c.l.b16 %v957
        %v1002 = vunpack.c.l.b16 %v958
        %v1003 = vpack.c.b16 %v988, %v987
        %v1004 = vpack.c.b16 %v990, %v989
        %v1005 = vpack.c.b16 %v992, %v991
        %v1006 = vpack.c.b16 %v994, %v993
        %v1007 = vpack.c.b16 %v996, %v995
        %v1008 = vpack.c.b16 %v998, %v997
        %v1009 = vpack.c.b16 %v1000, %v999
        %v1010 = vpack.c.b16 %v1002, %v1001
        %1019 = vmatpush.bf16.msra.mxu0 %v1010
        %1020 = vmatpush.bf16.msra.mxu0 %v1009
        %1021 = vmatpush.bf16.msra.mxu0 %v1008
        %1022 = vmatpush.bf16.msra.mxu0 %v1007
        %1023 = vmatpush.bf16.msra.mxu0 %v1006
        %1024 = vmatpush.bf16.msra.mxu0 %v1005
        %1025 = vmatpush.bf16.msra.mxu0 %v1004
        %1026 = vmatpush.bf16.msra.mxu0 %v1003
        %1027 = vmatmul.bf16.gmra.mxu0 %v498
        %v1028 = vpop.f32.mrf.mxu0
        %v1029 = vadd.f32 0.0, %v1028
        %v1030 = vpop.f32.mrf.mxu0
        %v1031 = vadd.f32 0.0, %v1030
        %1032 = vmatmul.bf16.gmra.mxu0 %v499
        %v1033 = vpop.f32.mrf.mxu0
        %v1034 = vpop.f32.mrf.mxu0
        %1035 = vmatmul.bf16.gmra.mxu0 %v500
        %v1036 = vpop.f32.mrf.mxu0
        %v1037 = vadd.f32 0.0, %v1036
        %v1038 = vpop.f32.mrf.mxu0
        %v1039 = vadd.f32 0.0, %v1038
        %1040 = vmatmul.bf16.gmra.mxu0 %v501
        %v1041 = vpop.f32.mrf.mxu0
        %v1042 = vpop.f32.mrf.mxu0
        %1043 = vmatmul.bf16.gmra.mxu0 %v502
        %v1044 = vpop.f32.mrf.mxu0
        %v1045 = vadd.f32 0.0, %v1044
        %v1046 = vpop.f32.mrf.mxu0
        %v1047 = vadd.f32 0.0, %v1046
        %1048 = vmatmul.bf16.gmra.mxu0 %v503
        %v1049 = vpop.f32.mrf.mxu0
        %v1050 = vpop.f32.mrf.mxu0
        %1051 = vmatmul.bf16.gmra.mxu0 %v504
        %v1052 = vpop.f32.mrf.mxu0
        %v1053 = vadd.f32 0.0, %v1052
        %v1054 = vpop.f32.mrf.mxu0
        %v1055 = vadd.f32 0.0, %v1054
        %1056 = vmatmul.bf16.gmra.mxu0 %v505
        %v1057 = vpop.f32.mrf.mxu0
        %v1058 = vpop.f32.mrf.mxu0
        %1059 = vmatmul.bf16.gmra.mxu0 %v506
        %v1060 = vpop.f32.mrf.mxu0
        %v1061 = vadd.f32 0.0, %v1060
        %v1062 = vpop.f32.mrf.mxu0
        %v1063 = vadd.f32 0.0, %v1062
        %1064 = vmatmul.bf16.gmra.mxu0 %v507
        %v1065 = vpop.f32.mrf.mxu0
        %v1066 = vpop.f32.mrf.mxu0
        %1067 = vmatmul.bf16.gmra.mxu0 %v508
        %v1068 = vpop.f32.mrf.mxu0
        %v1069 = vadd.f32 0.0, %v1068
        %v1070 = vpop.f32.mrf.mxu0
        %v1071 = vadd.f32 0.0, %v1070
        %1072 = vmatmul.bf16.gmra.mxu0 %v509
        %v1073 = vpop.f32.mrf.mxu0
        %v1074 = vpop.f32.mrf.mxu0
        %1075 = vmatmul.bf16.gmra.mxu0 %v510
        %v1076 = vpop.f32.mrf.mxu0
        %v1077 = vadd.f32 0.0, %v1076
        %v1078 = vpop.f32.mrf.mxu0
        %v1079 = vadd.f32 0.0, %v1078
        %1080 = vmatmul.bf16.gmra.mxu0 %v511
        %v1081 = vpop.f32.mrf.mxu0
        %v1082 = vpop.f32.mrf.mxu0
        %1083 = vmatmul.bf16.gmra.mxu0 %v512
        %v1084 = vpop.f32.mrf.mxu0
        %v1085 = vadd.f32 0.0, %v1084
        %v1086 = vpop.f32.mrf.mxu0
        %v1087 = vadd.f32 0.0, %v1086
        %1088 = vmatmul.bf16.gmra.mxu0 %v513
        %v1089 = vpop.f32.mrf.mxu0
        %v1090 = vpop.f32.mrf.mxu0
        %1091 = vmatmul.bf16.gmra.mxu0 %v514
        %v1092 = vpop.f32.mrf.mxu0
        %v1093 = vadd.f32 0.0, %v1092
        %v1094 = vpop.f32.mrf.mxu0
        %v1095 = vadd.f32 0.0, %v1094
        %1096 = vmatmul.bf16.gmra.mxu0 %v515
        %v1097 = vpop.f32.mrf.mxu0
        %v1098 = vpop.f32.mrf.mxu0
        %1099 = vmatmul.bf16.gmra.mxu0 %v516
        %v1100 = vpop.f32.mrf.mxu0
        %v1101 = vadd.f32 0.0, %v1100
        %v1102 = vpop.f32.mrf.mxu0
        %v1103 = vadd.f32 0.0, %v1102
        %1104 = vmatmul.bf16.gmra.mxu0 %v517
        %v1105 = vpop.f32.mrf.mxu0
        %v1106 = vpop.f32.mrf.mxu0
        %1107 = vmatmul.bf16.gmra.mxu0 %v518
        %v1108 = vpop.f32.mrf.mxu0
        %v1109 = vadd.f32 0.0, %v1108
        %v1110 = vpop.f32.mrf.mxu0
        %v1111 = vadd.f32 0.0, %v1110
        %1112 = vmatmul.bf16.gmra.mxu0 %v519
        %v1113 = vpop.f32.mrf.mxu0
        %v1114 = vpop.f32.mrf.mxu0
        %1115 = vmatmul.bf16.gmra.mxu0 %v520
        %v1116 = vpop.f32.mrf.mxu0
        %v1117 = vadd.f32 0.0, %v1116
        %v1118 = vpop.f32.mrf.mxu0
        %v1119 = vadd.f32 0.0, %v1118
        %1120 = vmatmul.bf16.gmra.mxu0 %v521
        %v1121 = vpop.f32.mrf.mxu0
        %v1122 = vpop.f32.mrf.mxu0
        %1123 = vmatmul.bf16.gmra.mxu0 %v522
        %v1124 = vpop.f32.mrf.mxu0
        %v1125 = vadd.f32 0.0, %v1124
        %v1126 = vpop.f32.mrf.mxu0
        %v1127 = vadd.f32 0.0, %v1126
        %1128 = vmatmul.bf16.gmra.mxu0 %v523
        %v1129 = vpop.f32.mrf.mxu0
        %v1130 = vpop.f32.mrf.mxu0
        %1131 = vmatmul.bf16.gmra.mxu0 %v524
        %v1132 = vpop.f32.mrf.mxu0
        %v1133 = vadd.f32 0.0, %v1132
        %v1134 = vpop.f32.mrf.mxu0
        %v1135 = vadd.f32 0.0, %v1134
        %1136 = vmatmul.bf16.gmra.mxu0 %v525
        %v1137 = vpop.f32.mrf.mxu0
        %v1138 = vpop.f32.mrf.mxu0
        %1139 = vmatmul.bf16.gmra.mxu0 %v526
        %v1140 = vpop.f32.mrf.mxu0
        %v1141 = vadd.f32 0.0, %v1140
        %v1142 = vpop.f32.mrf.mxu0
        %v1143 = vadd.f32 0.0, %v1142
        %1144 = vmatmul.bf16.gmra.mxu0 %v527
        %v1145 = vpop.f32.mrf.mxu0
        %v1146 = vpop.f32.mrf.mxu0
        %1147 = vmatmul.bf16.gmra.mxu0 %v967
        %v1148 = vpop.f32.mrf.mxu0
        %v1149 = vadd.f32 0.0, %v1148
        %v1150 = vpop.f32.mrf.mxu0
        %v1151 = vadd.f32 0.0, %v1150
        %1152 = vmatmul.bf16.gmra.mxu0 %v968
        %v1153 = vpop.f32.mrf.mxu0
        %v1154 = vpop.f32.mrf.mxu0
        %1155 = vdwg.mxu0
        %v1156 = vadd.f32 %v815, %v1029
        %v1157 = vadd.f32 %v817, %v1031
        %v1158 = vadd.f32 %v823, %v1037
        %v1159 = vadd.f32 %v825, %v1039
        %v1160 = vadd.f32 %v831, %v1045
        %v1161 = vadd.f32 %v833, %v1047
        %v1162 = vadd.f32 %v839, %v1053
        %v1163 = vadd.f32 %v841, %v1055
        %v1164 = vadd.f32 %v847, %v1061
        %v1165 = vadd.f32 %v849, %v1063
        %v1166 = vadd.f32 %v855, %v1069
        %v1167 = vadd.f32 %v857, %v1071
        %v1168 = vadd.f32 %v863, %v1077
        %v1169 = vadd.f32 %v865, %v1079
        %v1170 = vadd.f32 %v871, %v1085
        %v1171 = vadd.f32 %v873, %v1087
        %v1172 = vadd.f32 %v879, %v1093
        %v1173 = vadd.f32 %v881, %v1095
        %v1174 = vadd.f32 %v887, %v1101
        %v1175 = vadd.f32 %v889, %v1103
        %v1176 = vadd.f32 %v895, %v1109
        %v1177 = vadd.f32 %v897, %v1111
        %v1178 = vadd.f32 %v903, %v1117
        %v1179 = vadd.f32 %v905, %v1119
        %v1180 = vadd.f32 %v911, %v1125
        %v1181 = vadd.f32 %v913, %v1127
        %v1182 = vadd.f32 %v919, %v1133
        %v1183 = vadd.f32 %v921, %v1135
        %v1184 = vadd.f32 %v927, %v1141
        %v1185 = vadd.f32 %v929, %v1143
        %v1186 = vadd.f32 %v935, %v1149
        %v1187 = vadd.f32 %v937, %v1151
        %v1188 = vld [vmem:[%s262] sm:$0xf]
        %v1189 = vld [vmem:[%s262 + $0x4] sm:$0xf]
        %v1190 = vld [vmem:[%s262 + $0x8] sm:$0xf]
        %v1191 = vld [vmem:[%s262 + $0xc] sm:$0xf]
        %v1192 = vld [vmem:[%s262 + $0x10] sm:$0xf]
        %v1193 = vld [vmem:[%s262 + $0x14] sm:$0xf]
        %v1194 = vld [vmem:[%s262 + $0x18] sm:$0xf]
        %v1195 = vld [vmem:[%s262 + $0x1c] sm:$0xf]
        %v1196 = vld [vmem:[%s262 + $0x20] sm:$0xf]
        %v1197 = vld [vmem:[%s262 + $0x24] sm:$0xf]
        %v1198 = vld [vmem:[%s262 + $0x28] sm:$0xf]
        %v1199 = vld [vmem:[%s262 + $0x2c] sm:$0xf]
        %v1200 = vld [vmem:[%s262 + $0x30] sm:$0xf]
        %v1201 = vld [vmem:[%s262 + $0x34] sm:$0xf]
        %v1202 = vld [vmem:[%s262 + $0x38] sm:$0xf]
        %v1203 = vld [vmem:[%s262 + $0x3c] sm:$0xf]
        %v1204 = vld [vmem:[%s262 + $0x40] sm:$0xf]
        %v1205 = vld [vmem:[%s262 + $0x44] sm:$0xf]
        %v1206 = vld [vmem:[%s262 + $0x48] sm:$0xf]
        %v1207 = vld [vmem:[%s262 + $0x4c] sm:$0xf]
        %v1208 = vld [vmem:[%s262 + $0x50] sm:$0xf]
        %v1209 = vld [vmem:[%s262 + $0x54] sm:$0xf]
        %v1210 = vld [vmem:[%s262 + $0x58] sm:$0xf]
        %v1211 = vld [vmem:[%s262 + $0x5c] sm:$0xf]
        %v1212 = vld [vmem:[%s262 + $0x60] sm:$0xf]
        %v1213 = vld [vmem:[%s262 + $0x64] sm:$0xf]
        %v1214 = vld [vmem:[%s262 + $0x68] sm:$0xf]
        %v1215 = vld [vmem:[%s262 + $0x6c] sm:$0xf]
        %v1216 = vld [vmem:[%s262 + $0x70] sm:$0xf]
        %v1217 = vld [vmem:[%s262 + $0x74] sm:$0xf]
        %v1218 = vld [vmem:[%s262 + $0x78] sm:$0xf]
        %v1219 = vld [vmem:[%s262 + $0x7c] sm:$0xf]
        %v1220 = vld [vmem:[%s262 + $0x80] sm:$0xf]
        %v1221 = vld [vmem:[%s262 + $0x84] sm:$0xf]
        %v1222 = vld [vmem:[%s262 + $0x88] sm:$0xf]
        %v1223 = vld [vmem:[%s262 + $0x8c] sm:$0xf]
        %v1224 = vld [vmem:[%s262 + $0x90] sm:$0xf]
        %v1225 = vld [vmem:[%s262 + $0x94] sm:$0xf]
        %v1226 = vld [vmem:[%s262 + $0x98] sm:$0xf]
        %v1227 = vld [vmem:[%s262 + $0x9c] sm:$0xf]
        %v1228 = vld [vmem:[%s262 + $0xa0] sm:$0xf]
        %v1229 = vld [vmem:[%s262 + $0xa4] sm:$0xf]
        %v1230 = vld [vmem:[%s262 + $0xa8] sm:$0xf]
        %v1231 = vld [vmem:[%s262 + $0xac] sm:$0xf]
        %v1232 = vld [vmem:[%s262 + $0xb0] sm:$0xf]
        %v1233 = vld [vmem:[%s262 + $0xb4] sm:$0xf]
        %v1234 = vld [vmem:[%s262 + $0xb8] sm:$0xf]
        %v1235 = vld [vmem:[%s262 + $0xbc] sm:$0xf]
        %v1236 = vld [vmem:[%s262 + $0xc0] sm:$0xf]
        %v1237 = vld [vmem:[%s262 + $0xc4] sm:$0xf]
        %v1238 = vld [vmem:[%s262 + $0xc8] sm:$0xf]
        %v1239 = vld [vmem:[%s262 + $0xcc] sm:$0xf]
        %v1240 = vld [vmem:[%s262 + $0xd0] sm:$0xf]
        %v1241 = vld [vmem:[%s262 + $0xd4] sm:$0xf]
        %v1242 = vld [vmem:[%s262 + $0xd8] sm:$0xf]
        %v1243 = vld [vmem:[%s262 + $0xdc] sm:$0xf]
        %v1244 = vld [vmem:[%s262 + $0xe0] sm:$0xf]
        %v1245 = vld [vmem:[%s262 + $0xe4] sm:$0xf]
        %v1246 = vld [vmem:[%s262 + $0xe8] sm:$0xf]
        %v1247 = vld [vmem:[%s262 + $0xec] sm:$0xf]
        %v1248 = vld [vmem:[%s262 + $0xf0] sm:$0xf]
        %v1249 = vld [vmem:[%s262 + $0xf4] sm:$0xf]
        %v1250 = vld [vmem:[%s262 + $0xf8] sm:$0xf]
        %v1251 = vld [vmem:[%s262 + $0xfc] sm:$0xf]
        %v1252 = vld [vmem:[%s262 + $0x100] sm:$0xf]
        %v1253 = vld [vmem:[%s262 + $0x104] sm:$0xf]
        %v1254 = vld [vmem:[%s262 + $0x108] sm:$0xf]
        %v1255 = vld [vmem:[%s262 + $0x10c] sm:$0xf]
        %v1256 = vld [vmem:[%s262 + $0x110] sm:$0xf]
        %v1257 = vld [vmem:[%s262 + $0x114] sm:$0xf]
        %v1258 = vld [vmem:[%s262 + $0x118] sm:$0xf]
        %v1259 = vld [vmem:[%s262 + $0x11c] sm:$0xf]
        %v1260 = vld [vmem:[%s262 + $0x120] sm:$0x1]
        %s1261 = scalar_lea.vmem [#allocation4], 64
        %v1262 = vld [vmem:[%s1261] sm:$0xf]
        %v1263 = vld [vmem:[%s1261 + $0x4] sm:$0xf]
        %v1264 = vld [vmem:[%s1261 + $0x8] sm:$0xf]
        %v1265 = vld [vmem:[%s1261 + $0xc] sm:$0xf]
        %v1266 = vld [vmem:[%s1261 + $0x10] sm:$0xf]
        %v1267 = vld [vmem:[%s1261 + $0x14] sm:$0xf]
        %v1268 = vld [vmem:[%s1261 + $0x18] sm:$0xf]
        %v1269 = vld [vmem:[%s1261 + $0x1c] sm:$0xf]
        %v1270 = vld [vmem:[%s1261 + $0x20] sm:$0xf]
        %v1271 = vld [vmem:[%s1261 + $0x24] sm:$0xf]
        %v1272 = vld [vmem:[%s1261 + $0x28] sm:$0xf]
        %v1273 = vld [vmem:[%s1261 + $0x2c] sm:$0xf]
        %v1274 = vld [vmem:[%s1261 + $0x30] sm:$0xf]
        %v1275 = vld [vmem:[%s1261 + $0x34] sm:$0xf]
        %v1276 = vld [vmem:[%s1261 + $0x38] sm:$0xf]
        %v1277 = vld [vmem:[%s1261 + $0x3c] sm:$0xf]
        %v1343 = vunpack.c.l.b16 %v1188
        %v1344 = vunpack.c.l.b16 %v1189
        %v1345 = vunpack.c.l.b16 %v1190
        %v1346 = vunpack.c.l.b16 %v1191
        %v1347 = vunpack.c.l.b16 %v1192
        %v1348 = vunpack.c.l.b16 %v1193
        %v1349 = vunpack.c.l.b16 %v1194
        %v1350 = vunpack.c.l.b16 %v1195
        %v1351 = vunpack.c.l.b16 %v1196
        %v1352 = vunpack.c.l.b16 %v1197
        %v1353 = vunpack.c.l.b16 %v1198
        %v1354 = vunpack.c.l.b16 %v1199
        %v1355 = vunpack.c.l.b16 %v1200
        %v1356 = vunpack.c.l.b16 %v1201
        %v1357 = vunpack.c.l.b16 %v1202
        %v1358 = vunpack.c.l.b16 %v1203
        %v1359 = vunpack.c.l.b16 %v1204
        %v1360 = vunpack.c.l.b16 %v1205
        %v1361 = vunpack.c.l.b16 %v1206
        %v1362 = vunpack.c.l.b16 %v1207
        %v1363 = vunpack.c.l.b16 %v1208
        %v1364 = vunpack.c.l.b16 %v1209
        %v1365 = vunpack.c.l.b16 %v1210
        %v1366 = vunpack.c.l.b16 %v1211
        %v1367 = vunpack.c.l.b16 %v1212
        %v1368 = vunpack.c.l.b16 %v1213
        %v1369 = vunpack.c.l.b16 %v1214
        %v1370 = vunpack.c.l.b16 %v1215
        %v1371 = vunpack.c.l.b16 %v1216
        %v1372 = vunpack.c.l.b16 %v1217
        %v1373 = vunpack.c.l.b16 %v1218
        %v1374 = vunpack.c.l.b16 %v1219
        %v1375 = vunpack.c.l.b16 %v1220
        %v1376 = vunpack.c.l.b16 %v1221
        %v1377 = vunpack.c.l.b16 %v1222
        %v1378 = vunpack.c.l.b16 %v1223
        %v1379 = vunpack.c.l.b16 %v1224
        %v1380 = vunpack.c.l.b16 %v1225
        %v1381 = vunpack.c.l.b16 %v1226
        %v1382 = vunpack.c.l.b16 %v1227
        %v1383 = vunpack.c.l.b16 %v1228
        %v1384 = vunpack.c.l.b16 %v1229
        %v1385 = vunpack.c.l.b16 %v1230
        %v1386 = vunpack.c.l.b16 %v1231
        %v1387 = vunpack.c.l.b16 %v1232
        %v1388 = vunpack.c.l.b16 %v1233
        %v1389 = vunpack.c.l.b16 %v1234
        %v1390 = vunpack.c.l.b16 %v1235
        %v1391 = vunpack.c.l.b16 %v1236
        %v1392 = vunpack.c.l.b16 %v1237
        %v1393 = vunpack.c.l.b16 %v1238
        %v1394 = vunpack.c.l.b16 %v1239
        %v1395 = vunpack.c.l.b16 %v1240
        %v1396 = vunpack.c.l.b16 %v1241
        %v1397 = vunpack.c.l.b16 %v1242
        %v1398 = vunpack.c.l.b16 %v1243
        %v1399 = vunpack.c.l.b16 %v1244
        %v1400 = vunpack.c.l.b16 %v1245
        %v1401 = vunpack.c.l.b16 %v1246
        %v1402 = vunpack.c.l.b16 %v1247
        %v1403 = vunpack.c.l.b16 %v1248
        %v1404 = vunpack.c.l.b16 %v1249
        %v1405 = vunpack.c.l.b16 %v1250
        %v1406 = vunpack.c.l.b16 %v1251
        %v1407 = vunpack.c.l.b16 %v1252
        %v1408 = vpack.c.b16 %v1344, %v1343
        %v1409 = vpack.c.b16 %v1346, %v1345
        %v1410 = vpack.c.b16 %v1348, %v1347
        %v1411 = vpack.c.b16 %v1350, %v1349
        %v1412 = vpack.c.b16 %v1352, %v1351
        %v1413 = vpack.c.b16 %v1354, %v1353
        %v1414 = vpack.c.b16 %v1356, %v1355
        %v1415 = vpack.c.b16 %v1358, %v1357
        %v1416 = vpack.c.b16 %v1360, %v1359
        %v1417 = vpack.c.b16 %v1362, %v1361
        %v1418 = vpack.c.b16 %v1364, %v1363
        %v1419 = vpack.c.b16 %v1366, %v1365
        %v1420 = vpack.c.b16 %v1368, %v1367
        %v1421 = vpack.c.b16 %v1370, %v1369
        %v1422 = vpack.c.b16 %v1372, %v1371
        %v1423 = vpack.c.b16 %v1374, %v1373
        %v1424 = vpack.c.b16 %v1376, %v1375
        %v1425 = vpack.c.b16 %v1378, %v1377
        %v1426 = vpack.c.b16 %v1380, %v1379
        %v1427 = vpack.c.b16 %v1382, %v1381
        %v1428 = vpack.c.b16 %v1384, %v1383
        %v1429 = vpack.c.b16 %v1386, %v1385
        %v1430 = vpack.c.b16 %v1388, %v1387
        %v1431 = vpack.c.b16 %v1390, %v1389
        %v1432 = vpack.c.b16 %v1392, %v1391
        %v1433 = vpack.c.b16 %v1394, %v1393
        %v1434 = vpack.c.b16 %v1396, %v1395
        %v1435 = vpack.c.b16 %v1398, %v1397
        %v1436 = vpack.c.b16 %v1400, %v1399
        %v1437 = vpack.c.b16 %v1402, %v1401
        %v1438 = vpack.c.b16 %v1404, %v1403
        %v1439 = vpack.c.b16 %v1406, %v1405
        %v1440 = vpack.c.b16 %v1407, %v1407
        %vm1441 = vsmask.f32 7424
        %v1443 = vshrl.u32 %v1408, 16
        %v1445 = vshll.u32 %v1408, 16
        %v1447 = vrot.slane %v1445, 1
        %v1448 = vor.u32 %v1443, %v1447
        %v1450 = vshll.u32 %v1409, 16
        %v1452 = vrot.slane %v1450, 1
        %v1453 = vsel %vm1441, %v1448, %v1452
        %v1454 = vshrl.u32 %v1409, 16
        %v1456 = vor.u32 %v1454, %v1452
        %v1458 = vshll.u32 %v1410, 16
        %v1460 = vrot.slane %v1458, 1
        %v1461 = vsel %vm1441, %v1456, %v1460
        %v1462 = vshrl.u32 %v1410, 16
        %v1464 = vor.u32 %v1462, %v1460
        %v1466 = vshll.u32 %v1411, 16
        %v1468 = vrot.slane %v1466, 1
        %v1469 = vsel %vm1441, %v1464, %v1468
        %v1470 = vshrl.u32 %v1411, 16
        %v1472 = vor.u32 %v1470, %v1468
        %v1474 = vshll.u32 %v1412, 16
        %v1476 = vrot.slane %v1474, 1
        %v1477 = vsel %vm1441, %v1472, %v1476
        %v1478 = vshrl.u32 %v1412, 16
        %v1480 = vor.u32 %v1478, %v1476
        %v1482 = vshll.u32 %v1413, 16
        %v1484 = vrot.slane %v1482, 1
        %v1485 = vsel %vm1441, %v1480, %v1484
        %v1486 = vshrl.u32 %v1413, 16
        %v1488 = vor.u32 %v1486, %v1484
        %v1490 = vshll.u32 %v1414, 16
        %v1492 = vrot.slane %v1490, 1
        %v1493 = vsel %vm1441, %v1488, %v1492
        %v1494 = vshrl.u32 %v1414, 16
        %v1496 = vor.u32 %v1494, %v1492
        %v1498 = vshll.u32 %v1415, 16
        %v1500 = vrot.slane %v1498, 1
        %v1501 = vsel %vm1441, %v1496, %v1500
        %v1502 = vshrl.u32 %v1415, 16
        %v1504 = vor.u32 %v1502, %v1500
        %v1506 = vshll.u32 %v1416, 16
        %v1508 = vrot.slane %v1506, 1
        %v1509 = vsel %vm1441, %v1504, %v1508
        %v1510 = vshrl.u32 %v1416, 16
        %v1512 = vor.u32 %v1510, %v1508
        %v1514 = vshll.u32 %v1417, 16
        %v1516 = vrot.slane %v1514, 1
        %v1517 = vsel %vm1441, %v1512, %v1516
        %v1518 = vshrl.u32 %v1417, 16
        %v1520 = vor.u32 %v1518, %v1516
        %v1522 = vshll.u32 %v1418, 16
        %v1524 = vrot.slane %v1522, 1
        %v1525 = vsel %vm1441, %v1520, %v1524
        %v1526 = vshrl.u32 %v1418, 16
        %v1528 = vor.u32 %v1526, %v1524
        %v1530 = vshll.u32 %v1419, 16
        %v1532 = vrot.slane %v1530, 1
        %v1533 = vsel %vm1441, %v1528, %v1532
        %v1534 = vshrl.u32 %v1419, 16
        %v1536 = vor.u32 %v1534, %v1532
        %v1538 = vshll.u32 %v1420, 16
        %v1540 = vrot.slane %v1538, 1
        %v1541 = vsel %vm1441, %v1536, %v1540
        %v1542 = vshrl.u32 %v1420, 16
        %v1544 = vor.u32 %v1542, %v1540
        %v1546 = vshll.u32 %v1421, 16
        %v1548 = vrot.slane %v1546, 1
        %v1549 = vsel %vm1441, %v1544, %v1548
        %v1550 = vshrl.u32 %v1421, 16
        %v1552 = vor.u32 %v1550, %v1548
        %v1554 = vshll.u32 %v1422, 16
        %v1556 = vrot.slane %v1554, 1
        %v1557 = vsel %vm1441, %v1552, %v1556
        %v1558 = vshrl.u32 %v1422, 16
        %v1560 = vor.u32 %v1558, %v1556
        %v1562 = vshll.u32 %v1423, 16
        %v1564 = vrot.slane %v1562, 1
        %v1565 = vsel %vm1441, %v1560, %v1564
        %v1566 = vshrl.u32 %v1423, 16
        %v1568 = vor.u32 %v1566, %v1564
        %v1570 = vshll.u32 %v1424, 16
        %v1572 = vrot.slane %v1570, 1
        %v1573 = vsel %vm1441, %v1568, %v1572
        %v1574 = vshrl.u32 %v1424, 16
        %v1576 = vor.u32 %v1574, %v1572
        %v1578 = vshll.u32 %v1425, 16
        %v1580 = vrot.slane %v1578, 1
        %v1581 = vsel %vm1441, %v1576, %v1580
        %v1582 = vshrl.u32 %v1425, 16
        %v1584 = vor.u32 %v1582, %v1580
        %v1586 = vshll.u32 %v1426, 16
        %v1588 = vrot.slane %v1586, 1
        %v1589 = vsel %vm1441, %v1584, %v1588
        %v1590 = vshrl.u32 %v1426, 16
        %v1592 = vor.u32 %v1590, %v1588
        %v1594 = vshll.u32 %v1427, 16
        %v1596 = vrot.slane %v1594, 1
        %v1597 = vsel %vm1441, %v1592, %v1596
        %v1598 = vshrl.u32 %v1427, 16
        %v1600 = vor.u32 %v1598, %v1596
        %v1602 = vshll.u32 %v1428, 16
        %v1604 = vrot.slane %v1602, 1
        %v1605 = vsel %vm1441, %v1600, %v1604
        %v1606 = vshrl.u32 %v1428, 16
        %v1608 = vor.u32 %v1606, %v1604
        %v1610 = vshll.u32 %v1429, 16
        %v1612 = vrot.slane %v1610, 1
        %v1613 = vsel %vm1441, %v1608, %v1612
        %v1614 = vshrl.u32 %v1429, 16
        %v1616 = vor.u32 %v1614, %v1612
        %v1618 = vshll.u32 %v1430, 16
        %v1620 = vrot.slane %v1618, 1
        %v1621 = vsel %vm1441, %v1616, %v1620
        %v1622 = vshrl.u32 %v1430, 16
        %v1624 = vor.u32 %v1622, %v1620
        %v1626 = vshll.u32 %v1431, 16
        %v1628 = vrot.slane %v1626, 1
        %v1629 = vsel %vm1441, %v1624, %v1628
        %v1630 = vshrl.u32 %v1431, 16
        %v1632 = vor.u32 %v1630, %v1628
        %v1634 = vshll.u32 %v1432, 16
        %v1636 = vrot.slane %v1634, 1
        %v1637 = vsel %vm1441, %v1632, %v1636
        %v1638 = vshrl.u32 %v1432, 16
        %v1640 = vor.u32 %v1638, %v1636
        %v1642 = vshll.u32 %v1433, 16
        %v1644 = vrot.slane %v1642, 1
        %v1645 = vsel %vm1441, %v1640, %v1644
        %v1646 = vshrl.u32 %v1433, 16
        %v1648 = vor.u32 %v1646, %v1644
        %v1650 = vshll.u32 %v1434, 16
        %v1652 = vrot.slane %v1650, 1
        %v1653 = vsel %vm1441, %v1648, %v1652
        %v1654 = vshrl.u32 %v1434, 16
        %v1656 = vor.u32 %v1654, %v1652
        %v1658 = vshll.u32 %v1435, 16
        %v1660 = vrot.slane %v1658, 1
        %v1661 = vsel %vm1441, %v1656, %v1660
        %v1662 = vshrl.u32 %v1435, 16
        %v1664 = vor.u32 %v1662, %v1660
        %v1666 = vshll.u32 %v1436, 16
        %v1668 = vrot.slane %v1666, 1
        %v1669 = vsel %vm1441, %v1664, %v1668
        %v1670 = vshrl.u32 %v1436, 16
        %v1672 = vor.u32 %v1670, %v1668
        %v1674 = vshll.u32 %v1437, 16
        %v1676 = vrot.slane %v1674, 1
        %v1677 = vsel %vm1441, %v1672, %v1676
        %v1678 = vshrl.u32 %v1437, 16
        %v1680 = vor.u32 %v1678, %v1676
        %v1682 = vshll.u32 %v1438, 16
        %v1684 = vrot.slane %v1682, 1
        %v1685 = vsel %vm1441, %v1680, %v1684
        %v1686 = vshrl.u32 %v1438, 16
        %v1688 = vor.u32 %v1686, %v1684
        %v1690 = vshll.u32 %v1439, 16
        %v1692 = vrot.slane %v1690, 1
        %v1693 = vsel %vm1441, %v1688, %v1692
        %v1694 = vshrl.u32 %v1439, 16
        %v1696 = vor.u32 %v1694, %v1692
        %v1698 = vshll.u32 %v1440, 16
        %v1700 = vrot.slane %v1698, 1
        %v1701 = vsel %vm1441, %v1696, %v1700
        %v1750 = vunpack.c.l.b16 %v1262
        %v1751 = vunpack.c.l.b16 %v1263
        %v1752 = vunpack.c.l.b16 %v1264
        %v1753 = vunpack.c.l.b16 %v1265
        %v1754 = vunpack.c.l.b16 %v1266
        %v1755 = vunpack.c.l.b16 %v1267
        %v1756 = vunpack.c.l.b16 %v1268
        %v1757 = vunpack.c.l.b16 %v1269
        %v1758 = vunpack.c.l.b16 %v1270
        %v1759 = vunpack.c.l.b16 %v1271
        %v1760 = vunpack.c.l.b16 %v1272
        %v1761 = vunpack.c.l.b16 %v1273
        %v1762 = vunpack.c.l.b16 %v1274
        %v1763 = vunpack.c.l.b16 %v1275
        %v1764 = vunpack.c.l.b16 %v1276
        %v1765 = vunpack.c.l.b16 %v1277
        %v1766 = vpack.c.b16 %v1751, %v1750
        %v1767 = vpack.c.b16 %v1753, %v1752
        %v1768 = vpack.c.b16 %v1755, %v1754
        %v1769 = vpack.c.b16 %v1757, %v1756
        %v1770 = vpack.c.b16 %v1759, %v1758
        %v1771 = vpack.c.b16 %v1761, %v1760
        %v1772 = vpack.c.b16 %v1763, %v1762
        %v1773 = vpack.c.b16 %v1765, %v1764
        %1782 = vmatpush.bf16.msra.mxu0 %v1773
        %1783 = vmatpush.bf16.msra.mxu0 %v1772
        %1784 = vmatpush.bf16.msra.mxu0 %v1771
        %1785 = vmatpush.bf16.msra.mxu0 %v1770
        %1786 = vmatpush.bf16.msra.mxu0 %v1769
        %1787 = vmatpush.bf16.msra.mxu0 %v1768
        %1788 = vmatpush.bf16.msra.mxu0 %v1767
        %1789 = vmatpush.bf16.msra.mxu0 %v1766
        %1790 = vmatmul.bf16.gmra.mxu0 %v1453
        %v1791 = vpop.f32.mrf.mxu0
        %v1792 = vadd.f32 0.0, %v1791
        %v1793 = vpop.f32.mrf.mxu0
        %v1794 = vadd.f32 0.0, %v1793
        %1795 = vmatmul.bf16.gmra.mxu0 %v1461
        %v1796 = vpop.f32.mrf.mxu0
        %v1797 = vpop.f32.mrf.mxu0
        %1798 = vmatmul.bf16.gmra.mxu0 %v1469
        %v1799 = vpop.f32.mrf.mxu0
        %v1800 = vadd.f32 0.0, %v1799
        %v1801 = vpop.f32.mrf.mxu0
        %v1802 = vadd.f32 0.0, %v1801
        %1803 = vmatmul.bf16.gmra.mxu0 %v1477
        %v1804 = vpop.f32.mrf.mxu0
        %v1805 = vpop.f32.mrf.mxu0
        %1806 = vmatmul.bf16.gmra.mxu0 %v1485
        %v1807 = vpop.f32.mrf.mxu0
        %v1808 = vadd.f32 0.0, %v1807
        %v1809 = vpop.f32.mrf.mxu0
        %v1810 = vadd.f32 0.0, %v1809
        %1811 = vmatmul.bf16.gmra.mxu0 %v1493
        %v1812 = vpop.f32.mrf.mxu0
        %v1813 = vpop.f32.mrf.mxu0
        %1814 = vmatmul.bf16.gmra.mxu0 %v1501
        %v1815 = vpop.f32.mrf.mxu0
        %v1816 = vadd.f32 0.0, %v1815
        %v1817 = vpop.f32.mrf.mxu0
        %v1818 = vadd.f32 0.0, %v1817
        %1819 = vmatmul.bf16.gmra.mxu0 %v1509
        %v1820 = vpop.f32.mrf.mxu0
        %v1821 = vpop.f32.mrf.mxu0
        %1822 = vmatmul.bf16.gmra.mxu0 %v1517
        %v1823 = vpop.f32.mrf.mxu0
        %v1824 = vadd.f32 0.0, %v1823
        %v1825 = vpop.f32.mrf.mxu0
        %v1826 = vadd.f32 0.0, %v1825
        %1827 = vmatmul.bf16.gmra.mxu0 %v1525
        %v1828 = vpop.f32.mrf.mxu0
        %v1829 = vpop.f32.mrf.mxu0
        %1830 = vmatmul.bf16.gmra.mxu0 %v1533
        %v1831 = vpop.f32.mrf.mxu0
        %v1832 = vadd.f32 0.0, %v1831
        %v1833 = vpop.f32.mrf.mxu0
        %v1834 = vadd.f32 0.0, %v1833
        %1835 = vmatmul.bf16.gmra.mxu0 %v1541
        %v1836 = vpop.f32.mrf.mxu0
        %v1837 = vpop.f32.mrf.mxu0
        %1838 = vmatmul.bf16.gmra.mxu0 %v1549
        %v1839 = vpop.f32.mrf.mxu0
        %v1840 = vadd.f32 0.0, %v1839
        %v1841 = vpop.f32.mrf.mxu0
        %v1842 = vadd.f32 0.0, %v1841
        %1843 = vmatmul.bf16.gmra.mxu0 %v1557
        %v1844 = vpop.f32.mrf.mxu0
        %v1845 = vpop.f32.mrf.mxu0
        %1846 = vmatmul.bf16.gmra.mxu0 %v1565
        %v1847 = vpop.f32.mrf.mxu0
        %v1848 = vadd.f32 0.0, %v1847
        %v1849 = vpop.f32.mrf.mxu0
        %v1850 = vadd.f32 0.0, %v1849
        %1851 = vmatmul.bf16.gmra.mxu0 %v1573
        %v1852 = vpop.f32.mrf.mxu0
        %v1853 = vpop.f32.mrf.mxu0
        %1854 = vmatmul.bf16.gmra.mxu0 %v1581
        %v1855 = vpop.f32.mrf.mxu0
        %v1856 = vadd.f32 0.0, %v1855
        %v1857 = vpop.f32.mrf.mxu0
        %v1858 = vadd.f32 0.0, %v1857
        %1859 = vmatmul.bf16.gmra.mxu0 %v1589
        %v1860 = vpop.f32.mrf.mxu0
        %v1861 = vpop.f32.mrf.mxu0
        %1862 = vmatmul.bf16.gmra.mxu0 %v1597
        %v1863 = vpop.f32.mrf.mxu0
        %v1864 = vadd.f32 0.0, %v1863
        %v1865 = vpop.f32.mrf.mxu0
        %v1866 = vadd.f32 0.0, %v1865
        %1867 = vmatmul.bf16.gmra.mxu0 %v1605
        %v1868 = vpop.f32.mrf.mxu0
        %v1869 = vpop.f32.mrf.mxu0
        %1870 = vmatmul.bf16.gmra.mxu0 %v1613
        %v1871 = vpop.f32.mrf.mxu0
        %v1872 = vadd.f32 0.0, %v1871
        %v1873 = vpop.f32.mrf.mxu0
        %v1874 = vadd.f32 0.0, %v1873
        %1875 = vmatmul.bf16.gmra.mxu0 %v1621
        %v1876 = vpop.f32.mrf.mxu0
        %v1877 = vpop.f32.mrf.mxu0
        %1878 = vmatmul.bf16.gmra.mxu0 %v1629
        %v1879 = vpop.f32.mrf.mxu0
        %v1880 = vadd.f32 0.0, %v1879
        %v1881 = vpop.f32.mrf.mxu0
        %v1882 = vadd.f32 0.0, %v1881
        %1883 = vmatmul.bf16.gmra.mxu0 %v1637
        %v1884 = vpop.f32.mrf.mxu0
        %v1885 = vpop.f32.mrf.mxu0
        %1886 = vmatmul.bf16.gmra.mxu0 %v1645
        %v1887 = vpop.f32.mrf.mxu0
        %v1888 = vadd.f32 0.0, %v1887
        %v1889 = vpop.f32.mrf.mxu0
        %v1890 = vadd.f32 0.0, %v1889
        %1891 = vmatmul.bf16.gmra.mxu0 %v1653
        %v1892 = vpop.f32.mrf.mxu0
        %v1893 = vpop.f32.mrf.mxu0
        %1894 = vmatmul.bf16.gmra.mxu0 %v1661
        %v1895 = vpop.f32.mrf.mxu0
        %v1896 = vadd.f32 0.0, %v1895
        %v1897 = vpop.f32.mrf.mxu0
        %v1898 = vadd.f32 0.0, %v1897
        %1899 = vmatmul.bf16.gmra.mxu0 %v1669
        %v1900 = vpop.f32.mrf.mxu0
        %v1901 = vpop.f32.mrf.mxu0
        %1902 = vmatmul.bf16.gmra.mxu0 %v1677
        %v1903 = vpop.f32.mrf.mxu0
        %v1904 = vadd.f32 0.0, %v1903
        %v1905 = vpop.f32.mrf.mxu0
        %v1906 = vadd.f32 0.0, %v1905
        %1907 = vmatmul.bf16.gmra.mxu0 %v1685
        %v1908 = vpop.f32.mrf.mxu0
        %v1909 = vpop.f32.mrf.mxu0
        %1910 = vmatmul.bf16.gmra.mxu0 %v1693
        %v1911 = vpop.f32.mrf.mxu0
        %v1912 = vadd.f32 0.0, %v1911
        %v1913 = vpop.f32.mrf.mxu0
        %v1914 = vadd.f32 0.0, %v1913
        %1915 = vmatmul.bf16.gmra.mxu0 %v1701
        %v1916 = vpop.f32.mrf.mxu0
        %v1917 = vpop.f32.mrf.mxu0
        %1918 = vdwg.mxu0
        %v1919 = vadd.f32 %v1156, %v1792
        %v1920 = vadd.f32 %v1157, %v1794
        %v1921 = vadd.f32 %v1158, %v1800
        %v1922 = vadd.f32 %v1159, %v1802
        %v1923 = vadd.f32 %v1160, %v1808
        %v1924 = vadd.f32 %v1161, %v1810
        %v1925 = vadd.f32 %v1162, %v1816
        %v1926 = vadd.f32 %v1163, %v1818
        %v1927 = vadd.f32 %v1164, %v1824
        %v1928 = vadd.f32 %v1165, %v1826
        %v1929 = vadd.f32 %v1166, %v1832
        %v1930 = vadd.f32 %v1167, %v1834
        %v1931 = vadd.f32 %v1168, %v1840
        %v1932 = vadd.f32 %v1169, %v1842
        %v1933 = vadd.f32 %v1170, %v1848
        %v1934 = vadd.f32 %v1171, %v1850
        %v1935 = vadd.f32 %v1172, %v1856
        %v1936 = vadd.f32 %v1173, %v1858
        %v1937 = vadd.f32 %v1174, %v1864
        %v1938 = vadd.f32 %v1175, %v1866
        %v1939 = vadd.f32 %v1176, %v1872
        %v1940 = vadd.f32 %v1177, %v1874
        %v1941 = vadd.f32 %v1178, %v1880
        %v1942 = vadd.f32 %v1179, %v1882
        %v1943 = vadd.f32 %v1180, %v1888
        %v1944 = vadd.f32 %v1181, %v1890
        %v1945 = vadd.f32 %v1182, %v1896
        %v1946 = vadd.f32 %v1183, %v1898
        %v1947 = vadd.f32 %v1184, %v1904
        %v1948 = vadd.f32 %v1185, %v1906
        %v1949 = vadd.f32 %v1186, %v1912
        %v1950 = vadd.f32 %v1187, %v1914
        %s1951 = scalar_lea.vmem [#allocation4], 256
        %v1952 = vld [vmem:[%s1951] sm:$0xf]
        %v1953 = vld [vmem:[%s1951 + $0x4] sm:$0xf]
        %v1954 = vld [vmem:[%s1951 + $0x8] sm:$0xf]
        %v1955 = vld [vmem:[%s1951 + $0xc] sm:$0xf]
        %v1956 = vld [vmem:[%s1951 + $0x10] sm:$0xf]
        %v1957 = vld [vmem:[%s1951 + $0x14] sm:$0xf]
        %v1958 = vld [vmem:[%s1951 + $0x18] sm:$0xf]
        %v1959 = vld [vmem:[%s1951 + $0x1c] sm:$0xf]
        %v1960 = vld [vmem:[%s1951 + $0x20] sm:$0xf]
        %v1961 = vld [vmem:[%s1951 + $0x24] sm:$0xf]
        %v1962 = vld [vmem:[%s1951 + $0x28] sm:$0xf]
        %v1963 = vld [vmem:[%s1951 + $0x2c] sm:$0xf]
        %v1964 = vld [vmem:[%s1951 + $0x30] sm:$0xf]
        %v1965 = vld [vmem:[%s1951 + $0x34] sm:$0xf]
        %v1966 = vld [vmem:[%s1951 + $0x38] sm:$0xf]
        %v1967 = vld [vmem:[%s1951 + $0x3c] sm:$0xf]
        %v1972 = vunpack.c.l.b16 %v1253
        %v1973 = vunpack.c.l.b16 %v1254
        %v1974 = vunpack.c.l.b16 %v1255
        %v1975 = vunpack.c.l.b16 %v1256
        %v1976 = vpack.c.b16 %v1972, %v1407
        %v1977 = vpack.c.b16 %v1974, %v1973
        %v1978 = vpack.c.b16 %v1975, %v1975
        %v1980 = vshll.u32 %v1976, 16
        %v1982 = vrot.slane %v1980, 1
        %v1983 = vsel %vm1441, %v1696, %v1982
        %v1984 = vshrl.u32 %v1976, 16
        %v1986 = vor.u32 %v1984, %v1982
        %v1988 = vshll.u32 %v1977, 16
        %v1990 = vrot.slane %v1988, 1
        %v1991 = vsel %vm1441, %v1986, %v1990
        %v1992 = vshrl.u32 %v1977, 16
        %v1994 = vor.u32 %v1992, %v1990
        %v1996 = vshll.u32 %v1978, 16
        %v1998 = vrot.slane %v1996, 1
        %v1999 = vsel %vm1441, %v1994, %v1998
        %v2019 = vunpack.c.l.b16 %v1952
        %v2020 = vunpack.c.l.b16 %v1953
        %v2021 = vunpack.c.l.b16 %v1954
        %v2022 = vunpack.c.l.b16 %v1955
        %v2023 = vunpack.c.l.b16 %v1956
        %v2024 = vunpack.c.l.b16 %v1957
        %v2025 = vunpack.c.l.b16 %v1958
        %v2026 = vunpack.c.l.b16 %v1959
        %v2027 = vunpack.c.l.b16 %v1960
        %v2028 = vunpack.c.l.b16 %v1961
        %v2029 = vunpack.c.l.b16 %v1962
        %v2030 = vunpack.c.l.b16 %v1963
        %v2031 = vunpack.c.l.b16 %v1964
        %v2032 = vunpack.c.l.b16 %v1965
        %v2033 = vunpack.c.l.b16 %v1966
        %v2034 = vunpack.c.l.b16 %v1967
        %v2035 = vpack.c.b16 %v2020, %v2019
        %v2036 = vpack.c.b16 %v2022, %v2021
        %v2037 = vpack.c.b16 %v2024, %v2023
        %v2038 = vpack.c.b16 %v2026, %v2025
        %v2039 = vpack.c.b16 %v2028, %v2027
        %v2040 = vpack.c.b16 %v2030, %v2029
        %v2041 = vpack.c.b16 %v2032, %v2031
        %v2042 = vpack.c.b16 %v2034, %v2033
        %2051 = vmatpush.bf16.msra.mxu0 %v2042
        %2052 = vmatpush.bf16.msra.mxu0 %v2041
        %2053 = vmatpush.bf16.msra.mxu0 %v2040
        %2054 = vmatpush.bf16.msra.mxu0 %v2039
        %2055 = vmatpush.bf16.msra.mxu0 %v2038
        %2056 = vmatpush.bf16.msra.mxu0 %v2037
        %2057 = vmatpush.bf16.msra.mxu0 %v2036
        %2058 = vmatpush.bf16.msra.mxu0 %v2035
        %2059 = vmatmul.bf16.gmra.mxu0 %v1469
        %v2060 = vpop.f32.mrf.mxu0
        %v2061 = vadd.f32 0.0, %v2060
        %v2062 = vpop.f32.mrf.mxu0
        %v2063 = vadd.f32 0.0, %v2062
        %2064 = vmatmul.bf16.gmra.mxu0 %v1477
        %v2065 = vpop.f32.mrf.mxu0
        %v2066 = vpop.f32.mrf.mxu0
        %2067 = vmatmul.bf16.gmra.mxu0 %v1485
        %v2068 = vpop.f32.mrf.mxu0
        %v2069 = vadd.f32 0.0, %v2068
        %v2070 = vpop.f32.mrf.mxu0
        %v2071 = vadd.f32 0.0, %v2070
        %2072 = vmatmul.bf16.gmra.mxu0 %v1493
        %v2073 = vpop.f32.mrf.mxu0
        %v2074 = vpop.f32.mrf.mxu0
        %2075 = vmatmul.bf16.gmra.mxu0 %v1501
        %v2076 = vpop.f32.mrf.mxu0
        %v2077 = vadd.f32 0.0, %v2076
        %v2078 = vpop.f32.mrf.mxu0
        %v2079 = vadd.f32 0.0, %v2078
        %2080 = vmatmul.bf16.gmra.mxu0 %v1509
        %v2081 = vpop.f32.mrf.mxu0
        %v2082 = vpop.f32.mrf.mxu0
        %2083 = vmatmul.bf16.gmra.mxu0 %v1517
        %v2084 = vpop.f32.mrf.mxu0
        %v2085 = vadd.f32 0.0, %v2084
        %v2086 = vpop.f32.mrf.mxu0
        %v2087 = vadd.f32 0.0, %v2086
        %2088 = vmatmul.bf16.gmra.mxu0 %v1525
        %v2089 = vpop.f32.mrf.mxu0
        %v2090 = vpop.f32.mrf.mxu0
        %2091 = vmatmul.bf16.gmra.mxu0 %v1533
        %v2092 = vpop.f32.mrf.mxu0
        %v2093 = vadd.f32 0.0, %v2092
        %v2094 = vpop.f32.mrf.mxu0
        %v2095 = vadd.f32 0.0, %v2094
        %2096 = vmatmul.bf16.gmra.mxu0 %v1541
        %v2097 = vpop.f32.mrf.mxu0
        %v2098 = vpop.f32.mrf.mxu0
        %2099 = vmatmul.bf16.gmra.mxu0 %v1549
        %v2100 = vpop.f32.mrf.mxu0
        %v2101 = vadd.f32 0.0, %v2100
        %v2102 = vpop.f32.mrf.mxu0
        %v2103 = vadd.f32 0.0, %v2102
        %2104 = vmatmul.bf16.gmra.mxu0 %v1557
        %v2105 = vpop.f32.mrf.mxu0
        %v2106 = vpop.f32.mrf.mxu0
        %2107 = vmatmul.bf16.gmra.mxu0 %v1565
        %v2108 = vpop.f32.mrf.mxu0
        %v2109 = vadd.f32 0.0, %v2108
        %v2110 = vpop.f32.mrf.mxu0
        %v2111 = vadd.f32 0.0, %v2110
        %2112 = vmatmul.bf16.gmra.mxu0 %v1573
        %v2113 = vpop.f32.mrf.mxu0
        %v2114 = vpop.f32.mrf.mxu0
        %2115 = vmatmul.bf16.gmra.mxu0 %v1581
        %v2116 = vpop.f32.mrf.mxu0
        %v2117 = vadd.f32 0.0, %v2116
        %v2118 = vpop.f32.mrf.mxu0
        %v2119 = vadd.f32 0.0, %v2118
        %2120 = vmatmul.bf16.gmra.mxu0 %v1589
        %v2121 = vpop.f32.mrf.mxu0
        %v2122 = vpop.f32.mrf.mxu0
        %2123 = vmatmul.bf16.gmra.mxu0 %v1597
        %v2124 = vpop.f32.mrf.mxu0
        %v2125 = vadd.f32 0.0, %v2124
        %v2126 = vpop.f32.mrf.mxu0
        %v2127 = vadd.f32 0.0, %v2126
        %2128 = vmatmul.bf16.gmra.mxu0 %v1605
        %v2129 = vpop.f32.mrf.mxu0
        %v2130 = vpop.f32.mrf.mxu0
        %2131 = vmatmul.bf16.gmra.mxu0 %v1613
        %v2132 = vpop.f32.mrf.mxu0
        %v2133 = vadd.f32 0.0, %v2132
        %v2134 = vpop.f32.mrf.mxu0
        %v2135 = vadd.f32 0.0, %v2134
        %2136 = vmatmul.bf16.gmra.mxu0 %v1621
        %v2137 = vpop.f32.mrf.mxu0
        %v2138 = vpop.f32.mrf.mxu0
        %2139 = vmatmul.bf16.gmra.mxu0 %v1629
        %v2140 = vpop.f32.mrf.mxu0
        %v2141 = vadd.f32 0.0, %v2140
        %v2142 = vpop.f32.mrf.mxu0
        %v2143 = vadd.f32 0.0, %v2142
        %2144 = vmatmul.bf16.gmra.mxu0 %v1637
        %v2145 = vpop.f32.mrf.mxu0
        %v2146 = vpop.f32.mrf.mxu0
        %2147 = vmatmul.bf16.gmra.mxu0 %v1645
        %v2148 = vpop.f32.mrf.mxu0
        %v2149 = vadd.f32 0.0, %v2148
        %v2150 = vpop.f32.mrf.mxu0
        %v2151 = vadd.f32 0.0, %v2150
        %2152 = vmatmul.bf16.gmra.mxu0 %v1653
        %v2153 = vpop.f32.mrf.mxu0
        %v2154 = vpop.f32.mrf.mxu0
        %2155 = vmatmul.bf16.gmra.mxu0 %v1661
        %v2156 = vpop.f32.mrf.mxu0
        %v2157 = vadd.f32 0.0, %v2156
        %v2158 = vpop.f32.mrf.mxu0
        %v2159 = vadd.f32 0.0, %v2158
        %2160 = vmatmul.bf16.gmra.mxu0 %v1669
        %v2161 = vpop.f32.mrf.mxu0
        %v2162 = vpop.f32.mrf.mxu0
        %2163 = vmatmul.bf16.gmra.mxu0 %v1677
        %v2164 = vpop.f32.mrf.mxu0
        %v2165 = vadd.f32 0.0, %v2164
        %v2166 = vpop.f32.mrf.mxu0
        %v2167 = vadd.f32 0.0, %v2166
        %2168 = vmatmul.bf16.gmra.mxu0 %v1685
        %v2169 = vpop.f32.mrf.mxu0
        %v2170 = vpop.f32.mrf.mxu0
        %2171 = vmatmul.bf16.gmra.mxu0 %v1693
        %v2172 = vpop.f32.mrf.mxu0
        %v2173 = vadd.f32 0.0, %v2172
        %v2174 = vpop.f32.mrf.mxu0
        %v2175 = vadd.f32 0.0, %v2174
        %2176 = vmatmul.bf16.gmra.mxu0 %v1983
        %v2177 = vpop.f32.mrf.mxu0
        %v2178 = vpop.f32.mrf.mxu0
        %2179 = vmatmul.bf16.gmra.mxu0 %v1991
        %v2180 = vpop.f32.mrf.mxu0
        %v2181 = vadd.f32 0.0, %v2180
        %v2182 = vpop.f32.mrf.mxu0
        %v2183 = vadd.f32 0.0, %v2182
        %2184 = vmatmul.bf16.gmra.mxu0 %v1999
        %v2185 = vpop.f32.mrf.mxu0
        %v2186 = vpop.f32.mrf.mxu0
        %2187 = vdwg.mxu0
        %v2188 = vadd.f32 %v1919, %v2061
        %v2189 = vadd.f32 %v1920, %v2063
        %v2190 = vadd.f32 %v1921, %v2069
        %v2191 = vadd.f32 %v1922, %v2071
        %v2192 = vadd.f32 %v1923, %v2077
        %v2193 = vadd.f32 %v1924, %v2079
        %v2194 = vadd.f32 %v1925, %v2085
        %v2195 = vadd.f32 %v1926, %v2087
        %v2196 = vadd.f32 %v1927, %v2093
        %v2197 = vadd.f32 %v1928, %v2095
        %v2198 = vadd.f32 %v1929, %v2101
        %v2199 = vadd.f32 %v1930, %v2103
        %v2200 = vadd.f32 %v1931, %v2109
        %v2201 = vadd.f32 %v1932, %v2111
        %v2202 = vadd.f32 %v1933, %v2117
        %v2203 = vadd.f32 %v1934, %v2119
        %v2204 = vadd.f32 %v1935, %v2125
        %v2205 = vadd.f32 %v1936, %v2127
        %v2206 = vadd.f32 %v1937, %v2133
        %v2207 = vadd.f32 %v1938, %v2135
        %v2208 = vadd.f32 %v1939, %v2141
        %v2209 = vadd.f32 %v1940, %v2143
        %v2210 = vadd.f32 %v1941, %v2149
        %v2211 = vadd.f32 %v1942, %v2151
        %v2212 = vadd.f32 %v1943, %v2157
        %v2213 = vadd.f32 %v1944, %v2159
        %v2214 = vadd.f32 %v1945, %v2165
        %v2215 = vadd.f32 %v1946, %v2167
        %v2216 = vadd.f32 %v1947, %v2173
        %v2217 = vadd.f32 %v1948, %v2175
        %v2218 = vadd.f32 %v1949, %v2181
        %v2219 = vadd.f32 %v1950, %v2183
        %s2220 = scalar_lea.vmem [#allocation4], 448
        %v2221 = vld [vmem:[%s2220] sm:$0xf]
        %v2222 = vld [vmem:[%s2220 + $0x4] sm:$0xf]
        %v2223 = vld [vmem:[%s2220 + $0x8] sm:$0xf]
        %v2224 = vld [vmem:[%s2220 + $0xc] sm:$0xf]
        %v2225 = vld [vmem:[%s2220 + $0x10] sm:$0xf]
        %v2226 = vld [vmem:[%s2220 + $0x14] sm:$0xf]
        %v2227 = vld [vmem:[%s2220 + $0x18] sm:$0xf]
        %v2228 = vld [vmem:[%s2220 + $0x1c] sm:$0xf]
        %v2229 = vld [vmem:[%s2220 + $0x20] sm:$0xf]
        %v2230 = vld [vmem:[%s2220 + $0x24] sm:$0xf]
        %v2231 = vld [vmem:[%s2220 + $0x28] sm:$0xf]
        %v2232 = vld [vmem:[%s2220 + $0x2c] sm:$0xf]
        %v2233 = vld [vmem:[%s2220 + $0x30] sm:$0xf]
        %v2234 = vld [vmem:[%s2220 + $0x34] sm:$0xf]
        %v2235 = vld [vmem:[%s2220 + $0x38] sm:$0xf]
        %v2236 = vld [vmem:[%s2220 + $0x3c] sm:$0xf]
        %v2241 = vunpack.c.l.b16 %v1257
        %v2242 = vunpack.c.l.b16 %v1258
        %v2243 = vunpack.c.l.b16 %v1259
        %v2244 = vunpack.c.l.b16 %v1260
        %v2245 = vpack.c.b16 %v2241, %v1975
        %v2246 = vpack.c.b16 %v2243, %v2242
        %v2247 = vpack.c.b16 %v2244, %v2244
        %v2249 = vshll.u32 %v2245, 16
        %v2251 = vrot.slane %v2249, 1
        %v2252 = vsel %vm1441, %v1994, %v2251
        %v2253 = vshrl.u32 %v2245, 16
        %v2255 = vor.u32 %v2253, %v2251
        %v2257 = vshll.u32 %v2246, 16
        %v2259 = vrot.slane %v2257, 1
        %v2260 = vsel %vm1441, %v2255, %v2259
        %v2261 = vshrl.u32 %v2246, 16
        %v2263 = vor.u32 %v2261, %v2259
        %v2265 = vshll.u32 %v2247, 16
        %v2267 = vrot.slane %v2265, 1
        %v2268 = vsel %vm1441, %v2263, %v2267
        %v2288 = vunpack.c.l.b16 %v2221
        %v2289 = vunpack.c.l.b16 %v2222
        %v2290 = vunpack.c.l.b16 %v2223
        %v2291 = vunpack.c.l.b16 %v2224
        %v2292 = vunpack.c.l.b16 %v2225
        %v2293 = vunpack.c.l.b16 %v2226
        %v2294 = vunpack.c.l.b16 %v2227
        %v2295 = vunpack.c.l.b16 %v2228
        %v2296 = vunpack.c.l.b16 %v2229
        %v2297 = vunpack.c.l.b16 %v2230
        %v2298 = vunpack.c.l.b16 %v2231
        %v2299 = vunpack.c.l.b16 %v2232
        %v2300 = vunpack.c.l.b16 %v2233
        %v2301 = vunpack.c.l.b16 %v2234
        %v2302 = vunpack.c.l.b16 %v2235
        %v2303 = vunpack.c.l.b16 %v2236
        %v2304 = vpack.c.b16 %v2289, %v2288
        %v2305 = vpack.c.b16 %v2291, %v2290
        %v2306 = vpack.c.b16 %v2293, %v2292
        %v2307 = vpack.c.b16 %v2295, %v2294
        %v2308 = vpack.c.b16 %v2297, %v2296
        %v2309 = vpack.c.b16 %v2299, %v2298
        %v2310 = vpack.c.b16 %v2301, %v2300
        %v2311 = vpack.c.b16 %v2303, %v2302
        %2320 = vmatpush.bf16.msra.mxu0 %v2311
        %2321 = vmatpush.bf16.msra.mxu0 %v2310
        %2322 = vmatpush.bf16.msra.mxu0 %v2309
        %2323 = vmatpush.bf16.msra.mxu0 %v2308
        %2324 = vmatpush.bf16.msra.mxu0 %v2307
        %2325 = vmatpush.bf16.msra.mxu0 %v2306
        %2326 = vmatpush.bf16.msra.mxu0 %v2305
        %2327 = vmatpush.bf16.msra.mxu0 %v2304
        %2328 = vmatmul.bf16.gmra.mxu0 %v1485
        %v2329 = vpop.f32.mrf.mxu0
        %v2330 = vadd.f32 0.0, %v2329
        %v2331 = vpop.f32.mrf.mxu0
        %v2332 = vadd.f32 0.0, %v2331
        %2333 = vmatmul.bf16.gmra.mxu0 %v1493
        %v2334 = vpop.f32.mrf.mxu0
        %v2335 = vpop.f32.mrf.mxu0
        %2336 = vmatmul.bf16.gmra.mxu0 %v1501
        %v2337 = vpop.f32.mrf.mxu0
        %v2338 = vadd.f32 0.0, %v2337
        %v2339 = vpop.f32.mrf.mxu0
        %v2340 = vadd.f32 0.0, %v2339
        %2341 = vmatmul.bf16.gmra.mxu0 %v1509
        %v2342 = vpop.f32.mrf.mxu0
        %v2343 = vpop.f32.mrf.mxu0
        %2344 = vmatmul.bf16.gmra.mxu0 %v1517
        %v2345 = vpop.f32.mrf.mxu0
        %v2346 = vadd.f32 0.0, %v2345
        %v2347 = vpop.f32.mrf.mxu0
        %v2348 = vadd.f32 0.0, %v2347
        %2349 = vmatmul.bf16.gmra.mxu0 %v1525
        %v2350 = vpop.f32.mrf.mxu0
        %v2351 = vpop.f32.mrf.mxu0
        %2352 = vmatmul.bf16.gmra.mxu0 %v1533
        %v2353 = vpop.f32.mrf.mxu0
        %v2354 = vadd.f32 0.0, %v2353
        %v2355 = vpop.f32.mrf.mxu0
        %v2356 = vadd.f32 0.0, %v2355
        %2357 = vmatmul.bf16.gmra.mxu0 %v1541
        %v2358 = vpop.f32.mrf.mxu0
        %v2359 = vpop.f32.mrf.mxu0
        %2360 = vmatmul.bf16.gmra.mxu0 %v1549
        %v2361 = vpop.f32.mrf.mxu0
        %v2362 = vadd.f32 0.0, %v2361
        %v2363 = vpop.f32.mrf.mxu0
        %v2364 = vadd.f32 0.0, %v2363
        %2365 = vmatmul.bf16.gmra.mxu0 %v1557
        %v2366 = vpop.f32.mrf.mxu0
        %v2367 = vpop.f32.mrf.mxu0
        %2368 = vmatmul.bf16.gmra.mxu0 %v1565
        %v2369 = vpop.f32.mrf.mxu0
        %v2370 = vadd.f32 0.0, %v2369
        %v2371 = vpop.f32.mrf.mxu0
        %v2372 = vadd.f32 0.0, %v2371
        %2373 = vmatmul.bf16.gmra.mxu0 %v1573
        %v2374 = vpop.f32.mrf.mxu0
        %v2375 = vpop.f32.mrf.mxu0
        %2376 = vmatmul.bf16.gmra.mxu0 %v1581
        %v2377 = vpop.f32.mrf.mxu0
        %v2378 = vadd.f32 0.0, %v2377
        %v2379 = vpop.f32.mrf.mxu0
        %v2380 = vadd.f32 0.0, %v2379
        %2381 = vmatmul.bf16.gmra.mxu0 %v1589
        %v2382 = vpop.f32.mrf.mxu0
        %v2383 = vpop.f32.mrf.mxu0
        %2384 = vmatmul.bf16.gmra.mxu0 %v1597
        %v2385 = vpop.f32.mrf.mxu0
        %v2386 = vadd.f32 0.0, %v2385
        %v2387 = vpop.f32.mrf.mxu0
        %v2388 = vadd.f32 0.0, %v2387
        %2389 = vmatmul.bf16.gmra.mxu0 %v1605
        %v2390 = vpop.f32.mrf.mxu0
        %v2391 = vpop.f32.mrf.mxu0
        %2392 = vmatmul.bf16.gmra.mxu0 %v1613
        %v2393 = vpop.f32.mrf.mxu0
        %v2394 = vadd.f32 0.0, %v2393
        %v2395 = vpop.f32.mrf.mxu0
        %v2396 = vadd.f32 0.0, %v2395
        %2397 = vmatmul.bf16.gmra.mxu0 %v1621
        %v2398 = vpop.f32.mrf.mxu0
        %v2399 = vpop.f32.mrf.mxu0
        %2400 = vmatmul.bf16.gmra.mxu0 %v1629
        %v2401 = vpop.f32.mrf.mxu0
        %v2402 = vadd.f32 0.0, %v2401
        %v2403 = vpop.f32.mrf.mxu0
        %v2404 = vadd.f32 0.0, %v2403
        %2405 = vmatmul.bf16.gmra.mxu0 %v1637
        %v2406 = vpop.f32.mrf.mxu0
        %v2407 = vpop.f32.mrf.mxu0
        %2408 = vmatmul.bf16.gmra.mxu0 %v1645
        %v2409 = vpop.f32.mrf.mxu0
        %v2410 = vadd.f32 0.0, %v2409
        %v2411 = vpop.f32.mrf.mxu0
        %v2412 = vadd.f32 0.0, %v2411
        %2413 = vmatmul.bf16.gmra.mxu0 %v1653
        %v2414 = vpop.f32.mrf.mxu0
        %v2415 = vpop.f32.mrf.mxu0
        %2416 = vmatmul.bf16.gmra.mxu0 %v1661
        %v2417 = vpop.f32.mrf.mxu0
        %v2418 = vadd.f32 0.0, %v2417
        %v2419 = vpop.f32.mrf.mxu0
        %v2420 = vadd.f32 0.0, %v2419
        %2421 = vmatmul.bf16.gmra.mxu0 %v1669
        %v2422 = vpop.f32.mrf.mxu0
        %v2423 = vpop.f32.mrf.mxu0
        %2424 = vmatmul.bf16.gmra.mxu0 %v1677
        %v2425 = vpop.f32.mrf.mxu0
        %v2426 = vadd.f32 0.0, %v2425
        %v2427 = vpop.f32.mrf.mxu0
        %v2428 = vadd.f32 0.0, %v2427
        %2429 = vmatmul.bf16.gmra.mxu0 %v1685
        %v2430 = vpop.f32.mrf.mxu0
        %v2431 = vpop.f32.mrf.mxu0
        %2432 = vmatmul.bf16.gmra.mxu0 %v1693
        %v2433 = vpop.f32.mrf.mxu0
        %v2434 = vadd.f32 0.0, %v2433
        %v2435 = vpop.f32.mrf.mxu0
        %v2436 = vadd.f32 0.0, %v2435
        %2437 = vmatmul.bf16.gmra.mxu0 %v1983
        %v2438 = vpop.f32.mrf.mxu0
        %v2439 = vpop.f32.mrf.mxu0
        %2440 = vmatmul.bf16.gmra.mxu0 %v1991
        %v2441 = vpop.f32.mrf.mxu0
        %v2442 = vadd.f32 0.0, %v2441
        %v2443 = vpop.f32.mrf.mxu0
        %v2444 = vadd.f32 0.0, %v2443
        %2445 = vmatmul.bf16.gmra.mxu0 %v2252
        %v2446 = vpop.f32.mrf.mxu0
        %v2447 = vpop.f32.mrf.mxu0
        %2448 = vmatmul.bf16.gmra.mxu0 %v2260
        %v2449 = vpop.f32.mrf.mxu0
        %v2450 = vadd.f32 0.0, %v2449
        %v2451 = vpop.f32.mrf.mxu0
        %v2452 = vadd.f32 0.0, %v2451
        %2453 = vmatmul.bf16.gmra.mxu0 %v2268
        %v2454 = vpop.f32.mrf.mxu0
        %v2455 = vpop.f32.mrf.mxu0
        %2456 = vdwg.mxu0
        %v2457 = vadd.f32 %v2188, %v2330
        %v2458 = vadd.f32 %v2189, %v2332
        %v2459 = vadd.f32 %v2190, %v2338
        %v2460 = vadd.f32 %v2191, %v2340
        %v2461 = vadd.f32 %v2192, %v2346
        %v2462 = vadd.f32 %v2193, %v2348
        %v2463 = vadd.f32 %v2194, %v2354
        %v2464 = vadd.f32 %v2195, %v2356
        %v2465 = vadd.f32 %v2196, %v2362
        %v2466 = vadd.f32 %v2197, %v2364
        %v2467 = vadd.f32 %v2198, %v2370
        %v2468 = vadd.f32 %v2199, %v2372
        %v2469 = vadd.f32 %v2200, %v2378
        %v2470 = vadd.f32 %v2201, %v2380
        %v2471 = vadd.f32 %v2202, %v2386
        %v2472 = vadd.f32 %v2203, %v2388
        %v2473 = vadd.f32 %v2204, %v2394
        %v2474 = vadd.f32 %v2205, %v2396
        %v2475 = vadd.f32 %v2206, %v2402
        %v2476 = vadd.f32 %v2207, %v2404
        %v2477 = vadd.f32 %v2208, %v2410
        %v2478 = vadd.f32 %v2209, %v2412
        %v2479 = vadd.f32 %v2210, %v2418
        %v2480 = vadd.f32 %v2211, %v2420
        %v2481 = vadd.f32 %v2212, %v2426
        %v2482 = vadd.f32 %v2213, %v2428
        %v2483 = vadd.f32 %v2214, %v2434
        %v2484 = vadd.f32 %v2215, %v2436
        %v2485 = vadd.f32 %v2216, %v2442
        %v2486 = vadd.f32 %v2217, %v2444
        %v2487 = vadd.f32 %v2218, %v2450
        %v2488 = vadd.f32 %v2219, %v2452
        %v2489 = vld [vmem:[%s262] sm:$0xe]
        %s2490 = scalar_lea.vmem [#allocation4], 128
        %v2491 = vld [vmem:[%s2490] sm:$0xf]
        %v2492 = vld [vmem:[%s2490 + $0x4] sm:$0xf]
        %v2493 = vld [vmem:[%s2490 + $0x8] sm:$0xf]
        %v2494 = vld [vmem:[%s2490 + $0xc] sm:$0xf]
        %v2495 = vld [vmem:[%s2490 + $0x10] sm:$0xf]
        %v2496 = vld [vmem:[%s2490 + $0x14] sm:$0xf]
        %v2497 = vld [vmem:[%s2490 + $0x18] sm:$0xf]
        %v2498 = vld [vmem:[%s2490 + $0x1c] sm:$0xf]
        %v2499 = vld [vmem:[%s2490 + $0x20] sm:$0xf]
        %v2500 = vld [vmem:[%s2490 + $0x24] sm:$0xf]
        %v2501 = vld [vmem:[%s2490 + $0x28] sm:$0xf]
        %v2502 = vld [vmem:[%s2490 + $0x2c] sm:$0xf]
        %v2503 = vld [vmem:[%s2490 + $0x30] sm:$0xf]
        %v2504 = vld [vmem:[%s2490 + $0x34] sm:$0xf]
        %v2505 = vld [vmem:[%s2490 + $0x38] sm:$0xf]
        %v2506 = vld [vmem:[%s2490 + $0x3c] sm:$0xf]
        %v2508 = vunpack.c.l.b16 %v2489
        %v2509 = vpack.c.b16 %v1344, %v2508
        %vm2510 = vcmask 1046528
        %v2511 = vrot.slane %v2509, 1
        %v2512 = vrot.slane %v1409, 1
        %v2513 = vsel %vm2510, %v2511, %v2512
        %v2514 = vrot.slane %v1410, 1
        %v2515 = vsel %vm2510, %v2512, %v2514
        %v2516 = vrot.slane %v1411, 1
        %v2517 = vsel %vm2510, %v2514, %v2516
        %v2518 = vrot.slane %v1412, 1
        %v2519 = vsel %vm2510, %v2516, %v2518
        %v2520 = vrot.slane %v1413, 1
        %v2521 = vsel %vm2510, %v2518, %v2520
        %v2522 = vrot.slane %v1414, 1
        %v2523 = vsel %vm2510, %v2520, %v2522
        %v2524 = vrot.slane %v1415, 1
        %v2525 = vsel %vm2510, %v2522, %v2524
        %v2526 = vrot.slane %v1416, 1
        %v2527 = vsel %vm2510, %v2524, %v2526
        %v2528 = vrot.slane %v1417, 1
        %v2529 = vsel %vm2510, %v2526, %v2528
        %v2530 = vrot.slane %v1418, 1
        %v2531 = vsel %vm2510, %v2528, %v2530
        %v2532 = vrot.slane %v1419, 1
        %v2533 = vsel %vm2510, %v2530, %v2532
        %v2534 = vrot.slane %v1420, 1
        %v2535 = vsel %vm2510, %v2532, %v2534
        %v2536 = vrot.slane %v1421, 1
        %v2537 = vsel %vm2510, %v2534, %v2536
        %v2538 = vrot.slane %v1422, 1
        %v2539 = vsel %vm2510, %v2536, %v2538
        %v2540 = vrot.slane %v1423, 1
        %v2541 = vsel %vm2510, %v2538, %v2540
        %v2542 = vrot.slane %v1424, 1
        %v2543 = vsel %vm2510, %v2540, %v2542
        %v2544 = vrot.slane %v1425, 1
        %v2545 = vsel %vm2510, %v2542, %v2544
        %v2546 = vrot.slane %v1426, 1
        %v2547 = vsel %vm2510, %v2544, %v2546
        %v2548 = vrot.slane %v1427, 1
        %v2549 = vsel %vm2510, %v2546, %v2548
        %v2550 = vrot.slane %v1428, 1
        %v2551 = vsel %vm2510, %v2548, %v2550
        %v2552 = vrot.slane %v1429, 1
        %v2553 = vsel %vm2510, %v2550, %v2552
        %v2554 = vrot.slane %v1430, 1
        %v2555 = vsel %vm2510, %v2552, %v2554
        %v2556 = vrot.slane %v1431, 1
        %v2557 = vsel %vm2510, %v2554, %v2556
        %v2558 = vrot.slane %v1432, 1
        %v2559 = vsel %vm2510, %v2556, %v2558
        %v2560 = vrot.slane %v1433, 1
        %v2561 = vsel %vm2510, %v2558, %v2560
        %v2562 = vrot.slane %v1434, 1
        %v2563 = vsel %vm2510, %v2560, %v2562
        %v2564 = vrot.slane %v1435, 1
        %v2565 = vsel %vm2510, %v2562, %v2564
        %v2566 = vrot.slane %v1436, 1
        %v2567 = vsel %vm2510, %v2564, %v2566
        %v2568 = vrot.slane %v1437, 1
        %v2569 = vsel %vm2510, %v2566, %v2568
        %v2570 = vrot.slane %v1438, 1
        %v2571 = vsel %vm2510, %v2568, %v2570
        %v2572 = vrot.slane %v1439, 1
        %v2573 = vsel %vm2510, %v2570, %v2572
        %v2574 = vrot.slane %v1440, 1
        %v2575 = vsel %vm2510, %v2572, %v2574
        %v2624 = vunpack.c.l.b16 %v2491
        %v2625 = vunpack.c.l.b16 %v2492
        %v2626 = vunpack.c.l.b16 %v2493
        %v2627 = vunpack.c.l.b16 %v2494
        %v2628 = vunpack.c.l.b16 %v2495
        %v2629 = vunpack.c.l.b16 %v2496
        %v2630 = vunpack.c.l.b16 %v2497
        %v2631 = vunpack.c.l.b16 %v2498
        %v2632 = vunpack.c.l.b16 %v2499
        %v2633 = vunpack.c.l.b16 %v2500
        %v2634 = vunpack.c.l.b16 %v2501
        %v2635 = vunpack.c.l.b16 %v2502
        %v2636 = vunpack.c.l.b16 %v2503
        %v2637 = vunpack.c.l.b16 %v2504
        %v2638 = vunpack.c.l.b16 %v2505
        %v2639 = vunpack.c.l.b16 %v2506
        %v2640 = vpack.c.b16 %v2625, %v2624
        %v2641 = vpack.c.b16 %v2627, %v2626
        %v2642 = vpack.c.b16 %v2629, %v2628
        %v2643 = vpack.c.b16 %v2631, %v2630
        %v2644 = vpack.c.b16 %v2633, %v2632
        %v2645 = vpack.c.b16 %v2635, %v2634
        %v2646 = vpack.c.b16 %v2637, %v2636
        %v2647 = vpack.c.b16 %v2639, %v2638
        %2656 = vmatpush.bf16.msra.mxu0 %v2647
        %2657 = vmatpush.bf16.msra.mxu0 %v2646
        %2658 = vmatpush.bf16.msra.mxu0 %v2645
        %2659 = vmatpush.bf16.msra.mxu0 %v2644
        %2660 = vmatpush.bf16.msra.mxu0 %v2643
        %2661 = vmatpush.bf16.msra.mxu0 %v2642
        %2662 = vmatpush.bf16.msra.mxu0 %v2641
        %2663 = vmatpush.bf16.msra.mxu0 %v2640
        %2664 = vmatmul.bf16.gmra.mxu0 %v2513
        %v2665 = vpop.f32.mrf.mxu0
        %v2666 = vadd.f32 0.0, %v2665
        %v2667 = vpop.f32.mrf.mxu0
        %v2668 = vadd.f32 0.0, %v2667
        %2669 = vmatmul.bf16.gmra.mxu0 %v2515
        %v2670 = vpop.f32.mrf.mxu0
        %v2671 = vpop.f32.mrf.mxu0
        %2672 = vmatmul.bf16.gmra.mxu0 %v2517
        %v2673 = vpop.f32.mrf.mxu0
        %v2674 = vadd.f32 0.0, %v2673
        %v2675 = vpop.f32.mrf.mxu0
        %v2676 = vadd.f32 0.0, %v2675
        %2677 = vmatmul.bf16.gmra.mxu0 %v2519
        %v2678 = vpop.f32.mrf.mxu0
        %v2679 = vpop.f32.mrf.mxu0
        %2680 = vmatmul.bf16.gmra.mxu0 %v2521
        %v2681 = vpop.f32.mrf.mxu0
        %v2682 = vadd.f32 0.0, %v2681
        %v2683 = vpop.f32.mrf.mxu0
        %v2684 = vadd.f32 0.0, %v2683
        %2685 = vmatmul.bf16.gmra.mxu0 %v2523
        %v2686 = vpop.f32.mrf.mxu0
        %v2687 = vpop.f32.mrf.mxu0
        %2688 = vmatmul.bf16.gmra.mxu0 %v2525
        %v2689 = vpop.f32.mrf.mxu0
        %v2690 = vadd.f32 0.0, %v2689
        %v2691 = vpop.f32.mrf.mxu0
        %v2692 = vadd.f32 0.0, %v2691
        %2693 = vmatmul.bf16.gmra.mxu0 %v2527
        %v2694 = vpop.f32.mrf.mxu0
        %v2695 = vpop.f32.mrf.mxu0
        %2696 = vmatmul.bf16.gmra.mxu0 %v2529
        %v2697 = vpop.f32.mrf.mxu0
        %v2698 = vadd.f32 0.0, %v2697
        %v2699 = vpop.f32.mrf.mxu0
        %v2700 = vadd.f32 0.0, %v2699
        %2701 = vmatmul.bf16.gmra.mxu0 %v2531
        %v2702 = vpop.f32.mrf.mxu0
        %v2703 = vpop.f32.mrf.mxu0
        %2704 = vmatmul.bf16.gmra.mxu0 %v2533
        %v2705 = vpop.f32.mrf.mxu0
        %v2706 = vadd.f32 0.0, %v2705
        %v2707 = vpop.f32.mrf.mxu0
        %v2708 = vadd.f32 0.0, %v2707
        %2709 = vmatmul.bf16.gmra.mxu0 %v2535
        %v2710 = vpop.f32.mrf.mxu0
        %v2711 = vpop.f32.mrf.mxu0
        %2712 = vmatmul.bf16.gmra.mxu0 %v2537
        %v2713 = vpop.f32.mrf.mxu0
        %v2714 = vadd.f32 0.0, %v2713
        %v2715 = vpop.f32.mrf.mxu0
        %v2716 = vadd.f32 0.0, %v2715
        %2717 = vmatmul.bf16.gmra.mxu0 %v2539
        %v2718 = vpop.f32.mrf.mxu0
        %v2719 = vpop.f32.mrf.mxu0
        %2720 = vmatmul.bf16.gmra.mxu0 %v2541
        %v2721 = vpop.f32.mrf.mxu0
        %v2722 = vadd.f32 0.0, %v2721
        %v2723 = vpop.f32.mrf.mxu0
        %v2724 = vadd.f32 0.0, %v2723
        %2725 = vmatmul.bf16.gmra.mxu0 %v2543
        %v2726 = vpop.f32.mrf.mxu0
        %v2727 = vpop.f32.mrf.mxu0
        %2728 = vmatmul.bf16.gmra.mxu0 %v2545
        %v2729 = vpop.f32.mrf.mxu0
        %v2730 = vadd.f32 0.0, %v2729
        %v2731 = vpop.f32.mrf.mxu0
        %v2732 = vadd.f32 0.0, %v2731
        %2733 = vmatmul.bf16.gmra.mxu0 %v2547
        %v2734 = vpop.f32.mrf.mxu0
        %v2735 = vpop.f32.mrf.mxu0
        %2736 = vmatmul.bf16.gmra.mxu0 %v2549
        %v2737 = vpop.f32.mrf.mxu0
        %v2738 = vadd.f32 0.0, %v2737
        %v2739 = vpop.f32.mrf.mxu0
        %v2740 = vadd.f32 0.0, %v2739
        %2741 = vmatmul.bf16.gmra.mxu0 %v2551
        %v2742 = vpop.f32.mrf.mxu0
        %v2743 = vpop.f32.mrf.mxu0
        %2744 = vmatmul.bf16.gmra.mxu0 %v2553
        %v2745 = vpop.f32.mrf.mxu0
        %v2746 = vadd.f32 0.0, %v2745
        %v2747 = vpop.f32.mrf.mxu0
        %v2748 = vadd.f32 0.0, %v2747
        %2749 = vmatmul.bf16.gmra.mxu0 %v2555
        %v2750 = vpop.f32.mrf.mxu0
        %v2751 = vpop.f32.mrf.mxu0
        %2752 = vmatmul.bf16.gmra.mxu0 %v2557
        %v2753 = vpop.f32.mrf.mxu0
        %v2754 = vadd.f32 0.0, %v2753
        %v2755 = vpop.f32.mrf.mxu0
        %v2756 = vadd.f32 0.0, %v2755
        %2757 = vmatmul.bf16.gmra.mxu0 %v2559
        %v2758 = vpop.f32.mrf.mxu0
        %v2759 = vpop.f32.mrf.mxu0
        %2760 = vmatmul.bf16.gmra.mxu0 %v2561
        %v2761 = vpop.f32.mrf.mxu0
        %v2762 = vadd.f32 0.0, %v2761
        %v2763 = vpop.f32.mrf.mxu0
        %v2764 = vadd.f32 0.0, %v2763
        %2765 = vmatmul.bf16.gmra.mxu0 %v2563
        %v2766 = vpop.f32.mrf.mxu0
        %v2767 = vpop.f32.mrf.mxu0
        %2768 = vmatmul.bf16.gmra.mxu0 %v2565
        %v2769 = vpop.f32.mrf.mxu0
        %v2770 = vadd.f32 0.0, %v2769
        %v2771 = vpop.f32.mrf.mxu0
        %v2772 = vadd.f32 0.0, %v2771
        %2773 = vmatmul.bf16.gmra.mxu0 %v2567
        %v2774 = vpop.f32.mrf.mxu0
        %v2775 = vpop.f32.mrf.mxu0
        %2776 = vmatmul.bf16.gmra.mxu0 %v2569
        %v2777 = vpop.f32.mrf.mxu0
        %v2778 = vadd.f32 0.0, %v2777
        %v2779 = vpop.f32.mrf.mxu0
        %v2780 = vadd.f32 0.0, %v2779
        %2781 = vmatmul.bf16.gmra.mxu0 %v2571
        %v2782 = vpop.f32.mrf.mxu0
        %v2783 = vpop.f32.mrf.mxu0
        %2784 = vmatmul.bf16.gmra.mxu0 %v2573
        %v2785 = vpop.f32.mrf.mxu0
        %v2786 = vadd.f32 0.0, %v2785
        %v2787 = vpop.f32.mrf.mxu0
        %v2788 = vadd.f32 0.0, %v2787
        %2789 = vmatmul.bf16.gmra.mxu0 %v2575
        %v2790 = vpop.f32.mrf.mxu0
        %v2791 = vpop.f32.mrf.mxu0
        %2792 = vdwg.mxu0
        %v2793 = vadd.f32 %v2457, %v2666
        %v2794 = vadd.f32 %v2458, %v2668
        %v2795 = vadd.f32 %v2459, %v2674
        %v2796 = vadd.f32 %v2460, %v2676
        %v2797 = vadd.f32 %v2461, %v2682
        %v2798 = vadd.f32 %v2462, %v2684
        %v2799 = vadd.f32 %v2463, %v2690
        %v2800 = vadd.f32 %v2464, %v2692
        %v2801 = vadd.f32 %v2465, %v2698
        %v2802 = vadd.f32 %v2466, %v2700
        %v2803 = vadd.f32 %v2467, %v2706
        %v2804 = vadd.f32 %v2468, %v2708
        %v2805 = vadd.f32 %v2469, %v2714
        %v2806 = vadd.f32 %v2470, %v2716
        %v2807 = vadd.f32 %v2471, %v2722
        %v2808 = vadd.f32 %v2472, %v2724
        %v2809 = vadd.f32 %v2473, %v2730
        %v2810 = vadd.f32 %v2474, %v2732
        %v2811 = vadd.f32 %v2475, %v2738
        %v2812 = vadd.f32 %v2476, %v2740
        %v2813 = vadd.f32 %v2477, %v2746
        %v2814 = vadd.f32 %v2478, %v2748
        %v2815 = vadd.f32 %v2479, %v2754
        %v2816 = vadd.f32 %v2480, %v2756
        %v2817 = vadd.f32 %v2481, %v2762
        %v2818 = vadd.f32 %v2482, %v2764
        %v2819 = vadd.f32 %v2483, %v2770
        %v2820 = vadd.f32 %v2484, %v2772
        %v2821 = vadd.f32 %v2485, %v2778
        %v2822 = vadd.f32 %v2486, %v2780
        %v2823 = vadd.f32 %v2487, %v2786
        %v2824 = vadd.f32 %v2488, %v2788
        %s2825 = scalar_lea.vmem [#allocation4], 320
        %v2826 = vld [vmem:[%s2825] sm:$0xf]
        %v2827 = vld [vmem:[%s2825 + $0x4] sm:$0xf]
        %v2828 = vld [vmem:[%s2825 + $0x8] sm:$0xf]
        %v2829 = vld [vmem:[%s2825 + $0xc] sm:$0xf]
        %v2830 = vld [vmem:[%s2825 + $0x10] sm:$0xf]
        %v2831 = vld [vmem:[%s2825 + $0x14] sm:$0xf]
        %v2832 = vld [vmem:[%s2825 + $0x18] sm:$0xf]
        %v2833 = vld [vmem:[%s2825 + $0x1c] sm:$0xf]
        %v2834 = vld [vmem:[%s2825 + $0x20] sm:$0xf]
        %v2835 = vld [vmem:[%s2825 + $0x24] sm:$0xf]
        %v2836 = vld [vmem:[%s2825 + $0x28] sm:$0xf]
        %v2837 = vld [vmem:[%s2825 + $0x2c] sm:$0xf]
        %v2838 = vld [vmem:[%s2825 + $0x30] sm:$0xf]
        %v2839 = vld [vmem:[%s2825 + $0x34] sm:$0xf]
        %v2840 = vld [vmem:[%s2825 + $0x38] sm:$0xf]
        %v2841 = vld [vmem:[%s2825 + $0x3c] sm:$0xf]
        %v2842 = vrot.slane %v1976, 1
        %v2843 = vsel %vm2510, %v2572, %v2842
        %v2844 = vrot.slane %v1977, 1
        %v2845 = vsel %vm2510, %v2842, %v2844
        %v2846 = vrot.slane %v1978, 1
        %v2847 = vsel %vm2510, %v2844, %v2846
        %v2867 = vunpack.c.l.b16 %v2826
        %v2868 = vunpack.c.l.b16 %v2827
        %v2869 = vunpack.c.l.b16 %v2828
        %v2870 = vunpack.c.l.b16 %v2829
        %v2871 = vunpack.c.l.b16 %v2830
        %v2872 = vunpack.c.l.b16 %v2831
        %v2873 = vunpack.c.l.b16 %v2832
        %v2874 = vunpack.c.l.b16 %v2833
        %v2875 = vunpack.c.l.b16 %v2834
        %v2876 = vunpack.c.l.b16 %v2835
        %v2877 = vunpack.c.l.b16 %v2836
        %v2878 = vunpack.c.l.b16 %v2837
        %v2879 = vunpack.c.l.b16 %v2838
        %v2880 = vunpack.c.l.b16 %v2839
        %v2881 = vunpack.c.l.b16 %v2840
        %v2882 = vunpack.c.l.b16 %v2841
        %v2883 = vpack.c.b16 %v2868, %v2867
        %v2884 = vpack.c.b16 %v2870, %v2869
        %v2885 = vpack.c.b16 %v2872, %v2871
        %v2886 = vpack.c.b16 %v2874, %v2873
        %v2887 = vpack.c.b16 %v2876, %v2875
        %v2888 = vpack.c.b16 %v2878, %v2877
        %v2889 = vpack.c.b16 %v2880, %v2879
        %v2890 = vpack.c.b16 %v2882, %v2881
        %2899 = vmatpush.bf16.msra.mxu0 %v2890
        %2900 = vmatpush.bf16.msra.mxu0 %v2889
        %2901 = vmatpush.bf16.msra.mxu0 %v2888
        %2902 = vmatpush.bf16.msra.mxu0 %v2887
        %2903 = vmatpush.bf16.msra.mxu0 %v2886
        %2904 = vmatpush.bf16.msra.mxu0 %v2885
        %2905 = vmatpush.bf16.msra.mxu0 %v2884
        %2906 = vmatpush.bf16.msra.mxu0 %v2883
        %2907 = vmatmul.bf16.gmra.mxu0 %v2517
        %v2908 = vpop.f32.mrf.mxu0
        %v2909 = vadd.f32 0.0, %v2908
        %v2910 = vpop.f32.mrf.mxu0
        %v2911 = vadd.f32 0.0, %v2910
        %2912 = vmatmul.bf16.gmra.mxu0 %v2519
        %v2913 = vpop.f32.mrf.mxu0
        %v2914 = vpop.f32.mrf.mxu0
        %2915 = vmatmul.bf16.gmra.mxu0 %v2521
        %v2916 = vpop.f32.mrf.mxu0
        %v2917 = vadd.f32 0.0, %v2916
        %v2918 = vpop.f32.mrf.mxu0
        %v2919 = vadd.f32 0.0, %v2918
        %2920 = vmatmul.bf16.gmra.mxu0 %v2523
        %v2921 = vpop.f32.mrf.mxu0
        %v2922 = vpop.f32.mrf.mxu0
        %2923 = vmatmul.bf16.gmra.mxu0 %v2525
        %v2924 = vpop.f32.mrf.mxu0
        %v2925 = vadd.f32 0.0, %v2924
        %v2926 = vpop.f32.mrf.mxu0
        %v2927 = vadd.f32 0.0, %v2926
        %2928 = vmatmul.bf16.gmra.mxu0 %v2527
        %v2929 = vpop.f32.mrf.mxu0
        %v2930 = vpop.f32.mrf.mxu0
        %2931 = vmatmul.bf16.gmra.mxu0 %v2529
        %v2932 = vpop.f32.mrf.mxu0
        %v2933 = vadd.f32 0.0, %v2932
        %v2934 = vpop.f32.mrf.mxu0
        %v2935 = vadd.f32 0.0, %v2934
        %2936 = vmatmul.bf16.gmra.mxu0 %v2531
        %v2937 = vpop.f32.mrf.mxu0
        %v2938 = vpop.f32.mrf.mxu0
        %2939 = vmatmul.bf16.gmra.mxu0 %v2533
        %v2940 = vpop.f32.mrf.mxu0
        %v2941 = vadd.f32 0.0, %v2940
        %v2942 = vpop.f32.mrf.mxu0
        %v2943 = vadd.f32 0.0, %v2942
        %2944 = vmatmul.bf16.gmra.mxu0 %v2535
        %v2945 = vpop.f32.mrf.mxu0
        %v2946 = vpop.f32.mrf.mxu0
        %2947 = vmatmul.bf16.gmra.mxu0 %v2537
        %v2948 = vpop.f32.mrf.mxu0
        %v2949 = vadd.f32 0.0, %v2948
        %v2950 = vpop.f32.mrf.mxu0
        %v2951 = vadd.f32 0.0, %v2950
        %2952 = vmatmul.bf16.gmra.mxu0 %v2539
        %v2953 = vpop.f32.mrf.mxu0
        %v2954 = vpop.f32.mrf.mxu0
        %2955 = vmatmul.bf16.gmra.mxu0 %v2541
        %v2956 = vpop.f32.mrf.mxu0
        %v2957 = vadd.f32 0.0, %v2956
        %v2958 = vpop.f32.mrf.mxu0
        %v2959 = vadd.f32 0.0, %v2958
        %2960 = vmatmul.bf16.gmra.mxu0 %v2543
        %v2961 = vpop.f32.mrf.mxu0
        %v2962 = vpop.f32.mrf.mxu0
        %2963 = vmatmul.bf16.gmra.mxu0 %v2545
        %v2964 = vpop.f32.mrf.mxu0
        %v2965 = vadd.f32 0.0, %v2964
        %v2966 = vpop.f32.mrf.mxu0
        %v2967 = vadd.f32 0.0, %v2966
        %2968 = vmatmul.bf16.gmra.mxu0 %v2547
        %v2969 = vpop.f32.mrf.mxu0
        %v2970 = vpop.f32.mrf.mxu0
        %2971 = vmatmul.bf16.gmra.mxu0 %v2549
        %v2972 = vpop.f32.mrf.mxu0
        %v2973 = vadd.f32 0.0, %v2972
        %v2974 = vpop.f32.mrf.mxu0
        %v2975 = vadd.f32 0.0, %v2974
        %2976 = vmatmul.bf16.gmra.mxu0 %v2551
        %v2977 = vpop.f32.mrf.mxu0
        %v2978 = vpop.f32.mrf.mxu0
        %2979 = vmatmul.bf16.gmra.mxu0 %v2553
        %v2980 = vpop.f32.mrf.mxu0
        %v2981 = vadd.f32 0.0, %v2980
        %v2982 = vpop.f32.mrf.mxu0
        %v2983 = vadd.f32 0.0, %v2982
        %2984 = vmatmul.bf16.gmra.mxu0 %v2555
        %v2985 = vpop.f32.mrf.mxu0
        %v2986 = vpop.f32.mrf.mxu0
        %2987 = vmatmul.bf16.gmra.mxu0 %v2557
        %v2988 = vpop.f32.mrf.mxu0
        %v2989 = vadd.f32 0.0, %v2988
        %v2990 = vpop.f32.mrf.mxu0
        %v2991 = vadd.f32 0.0, %v2990
        %2992 = vmatmul.bf16.gmra.mxu0 %v2559
        %v2993 = vpop.f32.mrf.mxu0
        %v2994 = vpop.f32.mrf.mxu0
        %2995 = vmatmul.bf16.gmra.mxu0 %v2561
        %v2996 = vpop.f32.mrf.mxu0
        %v2997 = vadd.f32 0.0, %v2996
        %v2998 = vpop.f32.mrf.mxu0
        %v2999 = vadd.f32 0.0, %v2998
        %3000 = vmatmul.bf16.gmra.mxu0 %v2563
        %v3001 = vpop.f32.mrf.mxu0
        %v3002 = vpop.f32.mrf.mxu0
        %3003 = vmatmul.bf16.gmra.mxu0 %v2565
        %v3004 = vpop.f32.mrf.mxu0
        %v3005 = vadd.f32 0.0, %v3004
        %v3006 = vpop.f32.mrf.mxu0
        %v3007 = vadd.f32 0.0, %v3006
        %3008 = vmatmul.bf16.gmra.mxu0 %v2567
        %v3009 = vpop.f32.mrf.mxu0
        %v3010 = vpop.f32.mrf.mxu0
        %3011 = vmatmul.bf16.gmra.mxu0 %v2569
        %v3012 = vpop.f32.mrf.mxu0
        %v3013 = vadd.f32 0.0, %v3012
        %v3014 = vpop.f32.mrf.mxu0
        %v3015 = vadd.f32 0.0, %v3014
        %3016 = vmatmul.bf16.gmra.mxu0 %v2571
        %v3017 = vpop.f32.mrf.mxu0
        %v3018 = vpop.f32.mrf.mxu0
        %3019 = vmatmul.bf16.gmra.mxu0 %v2573
        %v3020 = vpop.f32.mrf.mxu0
        %v3021 = vadd.f32 0.0, %v3020
        %v3022 = vpop.f32.mrf.mxu0
        %v3023 = vadd.f32 0.0, %v3022
        %3024 = vmatmul.bf16.gmra.mxu0 %v2843
        %v3025 = vpop.f32.mrf.mxu0
        %v3026 = vpop.f32.mrf.mxu0
        %3027 = vmatmul.bf16.gmra.mxu0 %v2845
        %v3028 = vpop.f32.mrf.mxu0
        %v3029 = vadd.f32 0.0, %v3028
        %v3030 = vpop.f32.mrf.mxu0
        %v3031 = vadd.f32 0.0, %v3030
        %3032 = vmatmul.bf16.gmra.mxu0 %v2847
        %v3033 = vpop.f32.mrf.mxu0
        %v3034 = vpop.f32.mrf.mxu0
        %3035 = vdwg.mxu0
        %v3036 = vadd.f32 %v2793, %v2909
        %v3037 = vadd.f32 %v2794, %v2911
        %v3038 = vadd.f32 %v2795, %v2917
        %v3039 = vadd.f32 %v2796, %v2919
        %v3040 = vadd.f32 %v2797, %v2925
        %v3041 = vadd.f32 %v2798, %v2927
        %v3042 = vadd.f32 %v2799, %v2933
        %v3043 = vadd.f32 %v2800, %v2935
        %v3044 = vadd.f32 %v2801, %v2941
        %v3045 = vadd.f32 %v2802, %v2943
        %v3046 = vadd.f32 %v2803, %v2949
        %v3047 = vadd.f32 %v2804, %v2951
        %v3048 = vadd.f32 %v2805, %v2957
        %v3049 = vadd.f32 %v2806, %v2959
        %v3050 = vadd.f32 %v2807, %v2965
        %v3051 = vadd.f32 %v2808, %v2967
        %v3052 = vadd.f32 %v2809, %v2973
        %v3053 = vadd.f32 %v2810, %v2975
        %v3054 = vadd.f32 %v2811, %v2981
        %v3055 = vadd.f32 %v2812, %v2983
        %v3056 = vadd.f32 %v2813, %v2989
        %v3057 = vadd.f32 %v2814, %v2991
        %v3058 = vadd.f32 %v2815, %v2997
        %v3059 = vadd.f32 %v2816, %v2999
        %v3060 = vadd.f32 %v2817, %v3005
        %v3061 = vadd.f32 %v2818, %v3007
        %v3062 = vadd.f32 %v2819, %v3013
        %v3063 = vadd.f32 %v2820, %v3015
        %v3064 = vadd.f32 %v2821, %v3021
        %v3065 = vadd.f32 %v2822, %v3023
        %v3066 = vadd.f32 %v2823, %v3029
        %v3067 = vadd.f32 %v2824, %v3031
        %s3068 = scalar_lea.vmem [#allocation4], 512
        %v3069 = vld [vmem:[%s3068] sm:$0xf]
        %v3070 = vld [vmem:[%s3068 + $0x4] sm:$0xf]
        %v3071 = vld [vmem:[%s3068 + $0x8] sm:$0xf]
        %v3072 = vld [vmem:[%s3068 + $0xc] sm:$0xf]
        %v3073 = vld [vmem:[%s3068 + $0x10] sm:$0xf]
        %v3074 = vld [vmem:[%s3068 + $0x14] sm:$0xf]
        %v3075 = vld [vmem:[%s3068 + $0x18] sm:$0xf]
        %v3076 = vld [vmem:[%s3068 + $0x1c] sm:$0xf]
        %v3077 = vld [vmem:[%s3068 + $0x20] sm:$0xf]
        %v3078 = vld [vmem:[%s3068 + $0x24] sm:$0xf]
        %v3079 = vld [vmem:[%s3068 + $0x28] sm:$0xf]
        %v3080 = vld [vmem:[%s3068 + $0x2c] sm:$0xf]
        %v3081 = vld [vmem:[%s3068 + $0x30] sm:$0xf]
        %v3082 = vld [vmem:[%s3068 + $0x34] sm:$0xf]
        %v3083 = vld [vmem:[%s3068 + $0x38] sm:$0xf]
        %v3084 = vld [vmem:[%s3068 + $0x3c] sm:$0xf]
        %v3085 = vrot.slane %v2245, 1
        %v3086 = vsel %vm2510, %v2844, %v3085
        %v3087 = vrot.slane %v2246, 1
        %v3088 = vsel %vm2510, %v3085, %v3087
        %v3089 = vrot.slane %v2247, 1
        %v3090 = vsel %vm2510, %v3087, %v3089
        %v3110 = vunpack.c.l.b16 %v3069
        %v3111 = vunpack.c.l.b16 %v3070
        %v3112 = vunpack.c.l.b16 %v3071
        %v3113 = vunpack.c.l.b16 %v3072
        %v3114 = vunpack.c.l.b16 %v3073
        %v3115 = vunpack.c.l.b16 %v3074
        %v3116 = vunpack.c.l.b16 %v3075
        %v3117 = vunpack.c.l.b16 %v3076
        %v3118 = vunpack.c.l.b16 %v3077
        %v3119 = vunpack.c.l.b16 %v3078
        %v3120 = vunpack.c.l.b16 %v3079
        %v3121 = vunpack.c.l.b16 %v3080
        %v3122 = vunpack.c.l.b16 %v3081
        %v3123 = vunpack.c.l.b16 %v3082
        %v3124 = vunpack.c.l.b16 %v3083
        %v3125 = vunpack.c.l.b16 %v3084
        %v3126 = vpack.c.b16 %v3111, %v3110
        %v3127 = vpack.c.b16 %v3113, %v3112
        %v3128 = vpack.c.b16 %v3115, %v3114
        %v3129 = vpack.c.b16 %v3117, %v3116
        %v3130 = vpack.c.b16 %v3119, %v3118
        %v3131 = vpack.c.b16 %v3121, %v3120
        %v3132 = vpack.c.b16 %v3123, %v3122
        %v3133 = vpack.c.b16 %v3125, %v3124
        %3142 = vmatpush.bf16.msra.mxu0 %v3133
        %3143 = vmatpush.bf16.msra.mxu0 %v3132
        %3144 = vmatpush.bf16.msra.mxu0 %v3131
        %3145 = vmatpush.bf16.msra.mxu0 %v3130
        %3146 = vmatpush.bf16.msra.mxu0 %v3129
        %3147 = vmatpush.bf16.msra.mxu0 %v3128
        %3148 = vmatpush.bf16.msra.mxu0 %v3127
        %3149 = vmatpush.bf16.msra.mxu0 %v3126
        %3150 = vmatmul.bf16.gmra.mxu0 %v2521
        %v3151 = vpop.f32.mrf.mxu0
        %v3152 = vadd.f32 0.0, %v3151
        %v3153 = vpop.f32.mrf.mxu0
        %v3154 = vadd.f32 0.0, %v3153
        %3155 = vmatmul.bf16.gmra.mxu0 %v2523
        %v3156 = vpop.f32.mrf.mxu0
        %v3157 = vpop.f32.mrf.mxu0
        %3158 = vmatmul.bf16.gmra.mxu0 %v2525
        %v3159 = vpop.f32.mrf.mxu0
        %v3160 = vadd.f32 0.0, %v3159
        %v3161 = vpop.f32.mrf.mxu0
        %v3162 = vadd.f32 0.0, %v3161
        %3163 = vmatmul.bf16.gmra.mxu0 %v2527
        %v3164 = vpop.f32.mrf.mxu0
        %v3165 = vpop.f32.mrf.mxu0
        %3166 = vmatmul.bf16.gmra.mxu0 %v2529
        %v3167 = vpop.f32.mrf.mxu0
        %v3168 = vadd.f32 0.0, %v3167
        %v3169 = vpop.f32.mrf.mxu0
        %v3170 = vadd.f32 0.0, %v3169
        %3171 = vmatmul.bf16.gmra.mxu0 %v2531
        %v3172 = vpop.f32.mrf.mxu0
        %v3173 = vpop.f32.mrf.mxu0
        %3174 = vmatmul.bf16.gmra.mxu0 %v2533
        %v3175 = vpop.f32.mrf.mxu0
        %v3176 = vadd.f32 0.0, %v3175
        %v3177 = vpop.f32.mrf.mxu0
        %v3178 = vadd.f32 0.0, %v3177
        %3179 = vmatmul.bf16.gmra.mxu0 %v2535
        %v3180 = vpop.f32.mrf.mxu0
        %v3181 = vpop.f32.mrf.mxu0
        %3182 = vmatmul.bf16.gmra.mxu0 %v2537
        %v3183 = vpop.f32.mrf.mxu0
        %v3184 = vadd.f32 0.0, %v3183
        %v3185 = vpop.f32.mrf.mxu0
        %v3186 = vadd.f32 0.0, %v3185
        %3187 = vmatmul.bf16.gmra.mxu0 %v2539
        %v3188 = vpop.f32.mrf.mxu0
        %v3189 = vpop.f32.mrf.mxu0
        %3190 = vmatmul.bf16.gmra.mxu0 %v2541
        %v3191 = vpop.f32.mrf.mxu0
        %v3192 = vadd.f32 0.0, %v3191
        %v3193 = vpop.f32.mrf.mxu0
        %v3194 = vadd.f32 0.0, %v3193
        %3195 = vmatmul.bf16.gmra.mxu0 %v2543
        %v3196 = vpop.f32.mrf.mxu0
        %v3197 = vpop.f32.mrf.mxu0
        %3198 = vmatmul.bf16.gmra.mxu0 %v2545
        %v3199 = vpop.f32.mrf.mxu0
        %v3200 = vadd.f32 0.0, %v3199
        %v3201 = vpop.f32.mrf.mxu0
        %v3202 = vadd.f32 0.0, %v3201
        %3203 = vmatmul.bf16.gmra.mxu0 %v2547
        %v3204 = vpop.f32.mrf.mxu0
        %v3205 = vpop.f32.mrf.mxu0
        %3206 = vmatmul.bf16.gmra.mxu0 %v2549
        %v3207 = vpop.f32.mrf.mxu0
        %v3208 = vadd.f32 0.0, %v3207
        %v3209 = vpop.f32.mrf.mxu0
        %v3210 = vadd.f32 0.0, %v3209
        %3211 = vmatmul.bf16.gmra.mxu0 %v2551
        %v3212 = vpop.f32.mrf.mxu0
        %v3213 = vpop.f32.mrf.mxu0
        %3214 = vmatmul.bf16.gmra.mxu0 %v2553
        %v3215 = vpop.f32.mrf.mxu0
        %v3216 = vadd.f32 0.0, %v3215
        %v3217 = vpop.f32.mrf.mxu0
        %v3218 = vadd.f32 0.0, %v3217
        %3219 = vmatmul.bf16.gmra.mxu0 %v2555
        %v3220 = vpop.f32.mrf.mxu0
        %v3221 = vpop.f32.mrf.mxu0
        %3222 = vmatmul.bf16.gmra.mxu0 %v2557
        %v3223 = vpop.f32.mrf.mxu0
        %v3224 = vadd.f32 0.0, %v3223
        %v3225 = vpop.f32.mrf.mxu0
        %v3226 = vadd.f32 0.0, %v3225
        %3227 = vmatmul.bf16.gmra.mxu0 %v2559
        %v3228 = vpop.f32.mrf.mxu0
        %v3229 = vpop.f32.mrf.mxu0
        %3230 = vmatmul.bf16.gmra.mxu0 %v2561
        %v3231 = vpop.f32.mrf.mxu0
        %v3232 = vadd.f32 0.0, %v3231
        %v3233 = vpop.f32.mrf.mxu0
        %v3234 = vadd.f32 0.0, %v3233
        %3235 = vmatmul.bf16.gmra.mxu0 %v2563
        %v3236 = vpop.f32.mrf.mxu0
        %v3237 = vpop.f32.mrf.mxu0
        %3238 = vmatmul.bf16.gmra.mxu0 %v2565
        %v3239 = vpop.f32.mrf.mxu0
        %v3240 = vadd.f32 0.0, %v3239
        %v3241 = vpop.f32.mrf.mxu0
        %v3242 = vadd.f32 0.0, %v3241
        %3243 = vmatmul.bf16.gmra.mxu0 %v2567
        %v3244 = vpop.f32.mrf.mxu0
        %v3245 = vpop.f32.mrf.mxu0
        %3246 = vmatmul.bf16.gmra.mxu0 %v2569
        %v3247 = vpop.f32.mrf.mxu0
        %v3248 = vadd.f32 0.0, %v3247
        %v3249 = vpop.f32.mrf.mxu0
        %v3250 = vadd.f32 0.0, %v3249
        %3251 = vmatmul.bf16.gmra.mxu0 %v2571
        %v3252 = vpop.f32.mrf.mxu0
        %v3253 = vpop.f32.mrf.mxu0
        %3254 = vmatmul.bf16.gmra.mxu0 %v2573
        %v3255 = vpop.f32.mrf.mxu0
        %v3256 = vadd.f32 0.0, %v3255
        %v3257 = vpop.f32.mrf.mxu0
        %v3258 = vadd.f32 0.0, %v3257
        %3259 = vmatmul.bf16.gmra.mxu0 %v2843
        %v3260 = vpop.f32.mrf.mxu0
        %v3261 = vpop.f32.mrf.mxu0
        %3262 = vmatmul.bf16.gmra.mxu0 %v2845
        %v3263 = vpop.f32.mrf.mxu0
        %v3264 = vadd.f32 0.0, %v3263
        %v3265 = vpop.f32.mrf.mxu0
        %v3266 = vadd.f32 0.0, %v3265
        %3267 = vmatmul.bf16.gmra.mxu0 %v3086
        %v3268 = vpop.f32.mrf.mxu0
        %v3269 = vpop.f32.mrf.mxu0
        %3270 = vmatmul.bf16.gmra.mxu0 %v3088
        %v3271 = vpop.f32.mrf.mxu0
        %v3272 = vadd.f32 0.0, %v3271
        %v3273 = vpop.f32.mrf.mxu0
        %v3274 = vadd.f32 0.0, %v3273
        %3275 = vmatmul.bf16.gmra.mxu0 %v3090
        %v3276 = vpop.f32.mrf.mxu0
        %v3277 = vpop.f32.mrf.mxu0
        %3278 = vdwg.mxu0
        %v3279 = vadd.f32 %v3036, %v3152
        %v3280 = vadd.f32 %v3037, %v3154
        %v3281 = vadd.f32 %v3038, %v3160
        %v3282 = vadd.f32 %v3039, %v3162
        %v3283 = vadd.f32 %v3040, %v3168
        %v3284 = vadd.f32 %v3041, %v3170
        %v3285 = vadd.f32 %v3042, %v3176
        %v3286 = vadd.f32 %v3043, %v3178
        %v3287 = vadd.f32 %v3044, %v3184
        %v3288 = vadd.f32 %v3045, %v3186
        %v3289 = vadd.f32 %v3046, %v3192
        %v3290 = vadd.f32 %v3047, %v3194
        %v3291 = vadd.f32 %v3048, %v3200
        %v3292 = vadd.f32 %v3049, %v3202
        %v3293 = vadd.f32 %v3050, %v3208
        %v3294 = vadd.f32 %v3051, %v3210
        %v3295 = vadd.f32 %v3052, %v3216
        %v3296 = vadd.f32 %v3053, %v3218
        %v3297 = vadd.f32 %v3054, %v3224
        %v3298 = vadd.f32 %v3055, %v3226
        %v3299 = vadd.f32 %v3056, %v3232
        %v3300 = vadd.f32 %v3057, %v3234
        %v3301 = vadd.f32 %v3058, %v3240
        %v3302 = vadd.f32 %v3059, %v3242
        %v3303 = vadd.f32 %v3060, %v3248
        %v3304 = vadd.f32 %v3061, %v3250
        %v3305 = vadd.f32 %v3062, %v3256
        %v3306 = vadd.f32 %v3063, %v3258
        %v3307 = vadd.f32 %v3064, %v3264
        %v3308 = vadd.f32 %v3065, %v3266
        %v3309 = vadd.f32 %v3066, %v3272
        %v3310 = vadd.f32 %v3067, %v3274
        %v3311 = vld [vmem:[%s183] sm:$0x1]
        %v3313 = vperm.slane %v3311, 0
        %v3315 = vadd.f32 %v3279, %v3313
        %v3316 = vadd.f32 %v3280, %v3313
        %v3317 = vadd.f32 %v3281, %v3313
        %v3318 = vadd.f32 %v3282, %v3313
        %v3319 = vadd.f32 %v3283, %v3313
        %v3320 = vadd.f32 %v3284, %v3313
        %v3321 = vadd.f32 %v3285, %v3313
        %v3322 = vadd.f32 %v3286, %v3313
        %v3323 = vadd.f32 %v3287, %v3313
        %v3324 = vadd.f32 %v3288, %v3313
        %v3325 = vadd.f32 %v3289, %v3313
        %v3326 = vadd.f32 %v3290, %v3313
        %v3327 = vadd.f32 %v3291, %v3313
        %v3328 = vadd.f32 %v3292, %v3313
        %v3329 = vadd.f32 %v3293, %v3313
        %v3330 = vadd.f32 %v3294, %v3313
        %v3331 = vadd.f32 %v3295, %v3313
        %v3332 = vadd.f32 %v3296, %v3313
        %v3333 = vadd.f32 %v3297, %v3313
        %v3334 = vadd.f32 %v3298, %v3313
        %v3335 = vadd.f32 %v3299, %v3313
        %v3336 = vadd.f32 %v3300, %v3313
        %v3337 = vadd.f32 %v3301, %v3313
        %v3338 = vadd.f32 %v3302, %v3313
        %v3339 = vadd.f32 %v3303, %v3313
        %v3340 = vadd.f32 %v3304, %v3313
        %v3341 = vadd.f32 %v3305, %v3313
        %v3342 = vadd.f32 %v3306, %v3313
        %v3343 = vadd.f32 %v3307, %v3313
        %v3344 = vadd.f32 %v3308, %v3313
        %v3345 = vadd.f32 %v3309, %v3313
        %v3346 = vadd.f32 %v3310, %v3313
        %v3347 = vmax.f32 %v3315, 0.0
        %v3348 = vmax.f32 %v3316, 0.0
        %v3349 = vmax.f32 %v3317, 0.0
        %v3350 = vmax.f32 %v3318, 0.0
        %v3351 = vmax.f32 %v3319, 0.0
        %v3352 = vmax.f32 %v3320, 0.0
        %v3353 = vmax.f32 %v3321, 0.0
        %v3354 = vmax.f32 %v3322, 0.0
        %v3355 = vmax.f32 %v3323, 0.0
        %v3356 = vmax.f32 %v3324, 0.0
        %v3357 = vmax.f32 %v3325, 0.0
        %v3358 = vmax.f32 %v3326, 0.0
        %v3359 = vmax.f32 %v3327, 0.0
        %v3360 = vmax.f32 %v3328, 0.0
        %v3361 = vmax.f32 %v3329, 0.0
        %v3362 = vmax.f32 %v3330, 0.0
        %v3363 = vmax.f32 %v3331, 0.0
        %v3364 = vmax.f32 %v3332, 0.0
        %v3365 = vmax.f32 %v3333, 0.0
        %v3366 = vmax.f32 %v3334, 0.0
        %v3367 = vmax.f32 %v3335, 0.0
        %v3368 = vmax.f32 %v3336, 0.0
        %v3369 = vmax.f32 %v3337, 0.0
        %v3370 = vmax.f32 %v3338, 0.0
        %v3371 = vmax.f32 %v3339, 0.0
        %v3372 = vmax.f32 %v3340, 0.0
        %v3373 = vmax.f32 %v3341, 0.0
        %v3374 = vmax.f32 %v3342, 0.0
        %v3375 = vmax.f32 %v3343, 0.0
        %v3376 = vmax.f32 %v3344, 0.0
        %v3377 = vmax.f32 %v3345, 0.0
        %v3378 = vmax.f32 %v3346, 0.0
        %3379 = vst [vmem:[%s180] sm:$0xff] %v3347
        %3380 = vst [vmem:[%s180 + $0x8] sm:$0xff] %v3348
        %3381 = vst [vmem:[%s180 + $0x10] sm:$0xff] %v3349
        %3382 = vst [vmem:[%s180 + $0x18] sm:$0xff] %v3350
        %3383 = vst [vmem:[%s180 + $0x20] sm:$0xff] %v3351
        %3384 = vst [vmem:[%s180 + $0x28] sm:$0xff] %v3352
        %3385 = vst [vmem:[%s180 + $0x30] sm:$0xff] %v3353
        %3386 = vst [vmem:[%s180 + $0x38] sm:$0xff] %v3354
        %3387 = vst [vmem:[%s180 + $0x40] sm:$0xff] %v3355
        %3388 = vst [vmem:[%s180 + $0x48] sm:$0xff] %v3356
        %3389 = vst [vmem:[%s180 + $0x50] sm:$0xff] %v3357
        %3390 = vst [vmem:[%s180 + $0x58] sm:$0xff] %v3358
        %3391 = vst [vmem:[%s180 + $0x60] sm:$0xff] %v3359
        %3392 = vst [vmem:[%s180 + $0x68] sm:$0xff] %v3360
        %3393 = vst [vmem:[%s180 + $0x70] sm:$0xff] %v3361
        %3394 = vst [vmem:[%s180 + $0x78] sm:$0xff] %v3362
        %3395 = vst [vmem:[%s180 + $0x80] sm:$0xff] %v3363
        %3396 = vst [vmem:[%s180 + $0x88] sm:$0xff] %v3364
        %3397 = vst [vmem:[%s180 + $0x90] sm:$0xff] %v3365
        %3398 = vst [vmem:[%s180 + $0x98] sm:$0xff] %v3366
        %3399 = vst [vmem:[%s180 + $0xa0] sm:$0xff] %v3367
        %3400 = vst [vmem:[%s180 + $0xa8] sm:$0xff] %v3368
        %3401 = vst [vmem:[%s180 + $0xb0] sm:$0xff] %v3369
        %3402 = vst [vmem:[%s180 + $0xb8] sm:$0xff] %v3370
        %3403 = vst [vmem:[%s180 + $0xc0] sm:$0xff] %v3371
        %3404 = vst [vmem:[%s180 + $0xc8] sm:$0xff] %v3372
        %3405 = vst [vmem:[%s180 + $0xd0] sm:$0xff] %v3373
        %3406 = vst [vmem:[%s180 + $0xd8] sm:$0xff] %v3374
        %3407 = vst [vmem:[%s180 + $0xe0] sm:$0xff] %v3375
        %3408 = vst [vmem:[%s180 + $0xe8] sm:$0xff] %v3376
        %3409 = vst [vmem:[%s180 + $0xf0] sm:$0xff] %v3377
        %3410 = vst [vmem:[%s180 + $0xf8] sm:$0xff] %v3378
        %s3411 = sand.u32 %s101, 1
        %s3412 = scalar_lea.sflag [#allocation6], %s3411
        %s3413 = sand.u32 %s101, 1
        %s3414 = smul.addr %s3413, 256
        %s3415 = scalar_lea.vmem [#allocation7], %s3414
        // Predicated region
        $region53: #{tpu_custom_call.1} parent=27 // pred_check
          %p3416 = pneg %p111
        $region54: #{tpu_custom_call.1} parent=27 // pred_check_branch
          %3418 = sbr.rel (%p3416) target = $region56
        $region55: #{tpu_custom_call.1} parent=27 // pred_region
          %s3419 = smul.u32 16, %s24
          %3421 = vsyncadd %s3412, 0
          %s3422 = smul.addr %s3419, 2
          %s3423 = sadd.s32 %s25, %s3422
          %s3424 = smul.addr %s23, 32
          %s3425 = sadd.s32 %s3423, %s3424
          %s3426 = smul.addr %s3425, 8
          %s3427 = scalar_lea.hbm %s3, %s3426
          %s3428 = sshll.u32 %s3415, 4
          %s3429 = int_to_ptr.vmem [resolvable:$true] %s3428
          %s3430 = sshll.u32 %s3427, 4
          %s3431 = int_to_ptr.hbm [resolvable:$true] %s3430
          %3436 = dma.vmem_to_hbm [thread:$0]  %s3429, 4096, %s3431, %s3412, 128, 128, 8
        $region56: #{tpu_custom_call.1} parent=27 // pred_fallthru
          _
      $region28: #{tpu_custom_call.1} parent=5 // pred_fallthru
        _
      %p3437 = scmp.le.s32.totalorder 2, %s13
      // Predicated region
      $region57: #{tpu_custom_call.1} parent=5 // pred_check
        %p3438 = pneg %p3437
      $region58: #{tpu_custom_call.1} parent=5 // pred_check_branch
        %3440 = sbr.rel (%p3438) target = $region60
      $region59: #{tpu_custom_call.1} parent=5 // pred_region
        %s3441 = ssub.s32 %s13, 2
        // Predicated region
        $region61: #{tpu_custom_call.1} parent=59 // pred_check
          %p3442 = pneg %p117
        $region62: #{tpu_custom_call.1} parent=59 // pred_check_branch
          %3444 = sbr.rel (%p3442) target = $region64
        $region63: #{tpu_custom_call.1} parent=59 // pred_region
          %s3445 = sand.u32 %s102, 1
          %s3446 = scalar_lea.sflag [#allocation6], %s3445
          %s3447 = sand.u32 %s102, 1
          %s3448 = smul.addr %s3447, 256
          %s3449 = scalar_lea.vmem [#allocation7], %s3448
          %3451 = dma.done %s3446, 4096
        $region64: #{tpu_custom_call.1} parent=59 // pred_fallthru
          _
      $region60: #{tpu_custom_call.1} parent=5 // pred_fallthru
        _
    $region6: #{tpu_custom_call.1} parent=1 // loop_footer
      %s17 = sadd.s32 1, %s13
    $region7: #{tpu_custom_call.1} parent=1 // loop_footer_branch
      %12 = sbr.rel target = $region3
    $region8: #{tpu_custom_call.1} parent=1 // loop_exit
      _
    %3452 = vsyncpa [#allocation5], 1
    %s3453 = scalar_lea.sflag [#allocation5], 1
    %3454 = vsyncpa %s3453, 1
    %3455 = vsyncpa [#allocation6], 1
    %s3456 = scalar_lea.sflag [#allocation6], 1
    %3457 = vsyncpa %s3456, 1
  %3458 = vsyncmov [#allocation3]
  %s3459 = vpop.sfrf %3458
  %p3460 = scmp.eq.s32.totalorder %s3459, 0
  %p3461 = pneg %p3460
  %3463 = shalt.err (%p3461)
  %s3464 = scalar_lea.sflag [#allocation3], 1
  %3465 = vsyncmov %s3464
  %s3466 = vpop.sfrf %3465
  %p3467 = scmp.eq.s32.totalorder %s3466, 0
  %p3468 = pneg %p3467
  %3470 = shalt.err (%p3468)

</llo_original>
